<compile_context>
chip_gen: v6e
topology: v6e:2x2x1
jax: 0.10.0
libtpu: 0.0.40
codegen_flags: <defaults>
</compile_context>

<pallas_src>
import jax
import jax.numpy as jnp
from jax import lax
from jax.experimental import pallas as pl
from jax.experimental.pallas import tpu as pltpu

_VMEM = pl.BlockSpec(memory_space=pltpu.MemorySpace.VMEM)
# Python floats (NOT jnp scalars) so they lower as literals instead of captured consts.
NEG_FILL = -1e32   # masked_softmax(memory_efficient=True) fill value
NEG_7 = -1e7       # replace_masked_values fill value


def _softmax_last(x):
    m = jnp.max(x, axis=-1, keepdims=True)
    e = jnp.exp(x - m)
    return e / jnp.sum(e, axis=-1, keepdims=True)


def _gru_cell(gi, gh, h, H):
    # PyTorch GRU gate order (r, z, n):  n = tanh(Wi_n x + b + r * (Wh_n h + b)).
    r = jax.nn.sigmoid(gi[:, :H] + gh[:, :H])
    z = jax.nn.sigmoid(gi[:, H:2 * H] + gh[:, H:2 * H])
    n = jnp.tanh(gi[:, 2 * H:] + r * gh[:, 2 * H:])
    return (1.0 - z) * n + z * h


def _bigru_body(x_ref, mask_ref,
                wih_f_ref, whh_f_ref, bih_f_ref, bhh_f_ref,
                wih_b_ref, whh_b_ref, bih_b_ref, bhh_b_ref,
                gif_ref, gib_ref, hf_ref, hb_ref):
    """Fused bidirectional GRU over a padded batch (time-major refs).

    Reproduces pack_padded/pad_packed semantics for trailing padding: masked
    positions emit zeros and do not update the hidden state, so the backward
    direction effectively starts at the last valid token.  Masked hidden states
    are written into hf_ref / hb_ref ([L, B, H] each).
    """
    L, B, Din = x_ref.shape
    H = whh_f_ref.shape[0]

    # Hoisted input-gate matmuls: one [L*B, D] x [D, 3H] per direction, biases folded in.
    x_flat = x_ref[...].reshape(L * B, Din)
    gif_ref[...] = (jnp.dot(x_flat, wih_f_ref[...], preferred_element_type=jnp.float32)
                    + bih_f_ref[...]).reshape(L, B, 3 * H)
    gib_ref[...] = (jnp.dot(x_flat, wih_b_ref[...], preferred_element_type=jnp.float32)
                    + bih_b_ref[...]).reshape(L, B, 3 * H)

    # Recurrent weights / biases loaded once, outside the loop.
    whh_f = whh_f_ref[...]; bhh_f = bhh_f_ref[...]
    whh_b = whh_b_ref[...]; bhh_b = bhh_b_ref[...]
    h0 = jnp.zeros((B, H), jnp.float32)

    def step(t, carry):
        h_f, h_b = carry
        tb = L - 1 - t
        # forward direction at time t
        gh_f = jnp.dot(h_f, whh_f, preferred_element_type=jnp.float32) + bhh_f
        hf_new = _gru_cell(gif_ref[t], gh_f, h_f, H)
        m_f = mask_ref[t]                                    # [B, 1]
        h_f = h_f + m_f * (hf_new - h_f)
        hf_ref[t] = m_f * h_f
        # backward direction at time L-1-t (independent -> overlaps with forward)
        gh_b = jnp.dot(h_b, whh_b, preferred_element_type=jnp.float32) + bhh_b
        hb_new = _gru_cell(gib_ref[tb], gh_b, h_b, H)
        m_b = mask_ref[tb]
        h_b = h_b + m_b * (hb_new - h_b)
        hb_ref[tb] = m_b * h_b
        return (h_f, h_b)

    lax.fori_loop(0, L, step, (h0, h0), unroll=True)


# -----------------------------------------------------------------------------
# Kernel 1: shared BiGRU encoder (text and aspect stacked along batch).
# -----------------------------------------------------------------------------
def _bigru_kernel(x_ref, mask_ref,
                  wih_f_ref, whh_f_ref, bih_f_ref, bhh_f_ref,
                  wih_b_ref, whh_b_ref, bih_b_ref, bhh_b_ref,
                  out_ref, gif_ref, gib_ref, hf_ref, hb_ref):
    _bigru_body(x_ref, mask_ref,
                wih_f_ref, whh_f_ref, bih_f_ref, bhh_f_ref,
                wih_b_ref, whh_b_ref, bih_b_ref, bhh_b_ref,
                gif_ref, gib_ref, hf_ref, hb_ref)
    # Single lane-dense [L, B, 2H] output; wrapper only transposes back to [B, L, 2H].
    out_ref[...] = jnp.concatenate([hf_ref[...], hb_ref[...]], axis=-1)


def bigru(x, mask, p):
    """x: [B, L, D_in], mask: [B, L] float -> [B, L, 2H]."""
    B, L, _ = x.shape
    H = p['whh_f'].shape[0]
    x_t = jnp.transpose(x, (1, 0, 2))                 # [L, B, D] (time-major recurrence)
    m_t = jnp.transpose(mask, (1, 0))[:, :, None]     # [L, B, 1]
    out = pl.pallas_call(
        _bigru_kernel,
        out_shape=jax.ShapeDtypeStruct((L, B, 2 * H), jnp.float32),
        in_specs=[_VMEM] * 10,
        out_specs=_VMEM,
        scratch_shapes=[pltpu.VMEM((L, B, 3 * H), jnp.float32),
                        pltpu.VMEM((L, B, 3 * H), jnp.float32),
                        pltpu.VMEM((L, B, H), jnp.float32),
                        pltpu.VMEM((L, B, H), jnp.float32)],
    )(x_t, m_t,
      p['wih_f'], p['whh_f'], p['bih_f'], p['bhh_f'],
      p['wih_b'], p['whh_b'], p['bih_b'], p['bhh_b'])
    return jnp.transpose(out, (1, 0, 2))              # [B, L, 2H]


# -----------------------------------------------------------------------------
# Kernel 2: co-attention (LinearSimilarity 'x,y,x-y,x*y'), both masked softmaxes,
# weighted sums, ESIM merge and one K=8H Linear(8H->3H)+ReLU projection.
# -----------------------------------------------------------------------------
def _coattn_project_kernel(t_ref, a_ref, tmask_ref, amask_ref,
                           wx_ref, wy_ref, wmul_ref, bias_ref,
                           wp_ref, bp_ref, out_ref):
    T = t_ref[...]                  # [B, Lt, 2H] encoded text
    A = a_ref[...]                  # [B, La, 2H] encoded aspect
    tm = tmask_ref[...]             # [B, Lt]
    am = amask_ref[...]             # [B, La]
    B, Lt, D2 = T.shape

    # sim(x,y) = w1.x + w2.y + w3.(x-y) + w4.(x*y) + b
    #          = (w1+w3).x + (w2-w3).y + (x*w4).y + b
    x_term = jnp.sum(T * wx_ref[...], axis=-1) + bias_ref[...]   # [B, Lt]
    y_term = jnp.sum(A * wy_ref[...], axis=-1)                   # [B, La]
    cross = jnp.einsum('bid,bjd->bij', T * wmul_ref[...], A,
                       preferred_element_type=jnp.float32)
    S = cross + x_term[:, :, None] + y_term[:, None, :]          # [B, Lt, La]

    am3 = am[:, None, :]                                         # [B, 1, La]
    P1 = _softmax_last(jnp.where(am3 > 0, S, NEG_FILL))          # text->aspect attn
    TA = jnp.einsum('bij,bjd->bid', P1, A,
                    preferred_element_type=jnp.float32)          # [B, Lt, 2H]

    a2t_sim = jnp.max(jnp.where(am3 > 0, S, NEG_7), axis=-1)     # [B, Lt]
    P2 = _softmax_last(jnp.where(tm > 0, a2t_sim, NEG_FILL))     # aspect->text attn
    ATV = jnp.sum(P2[:, :, None] * T, axis=1)                    # [B, 2H]
    TxATV = T * ATV[:, None, :]                                  # [B, Lt, 2H]

    # ESIM merge [T, TA, T*TA, T*ATV] -> one [B*Lt, 8H] x [8H, 3H] matmul (8H == 128).
    merged = jnp.concatenate([T, TA, T * TA, TxATV], axis=-1)    # [B, Lt, 8H]
    h = (jnp.dot(merged.reshape(B * Lt, 4 * D2), wp_ref[...],
                 preferred_element_type=jnp.float32) + bp_ref[...])
    H3 = out_ref.shape[-1]
    out_ref[...] = jnp.maximum(h, 0.0).reshape(B, Lt, H3)


def coattn_project(T, A, tmask, amask, sim, proj):
    B, Lt, _ = T.shape
    H3 = proj['bp'].shape[-1]
    return pl.pallas_call(
        _coattn_project_kernel,
        out_shape=jax.ShapeDtypeStruct((B, Lt, H3), jnp.float32),
        in_specs=[_VMEM] * 10,
        out_specs=_VMEM,
    )(T, A, tmask, amask,
      sim['wx'], sim['wy'], sim['wmul'], sim['bias'],
      proj['wp'], proj['bp'])


# -----------------------------------------------------------------------------
# Kernel 3: inference BiGRU + masked max/mean pooling + stacked class/domain heads.
# The inference hidden states live only in VMEM scratch (never written to HBM).
# -----------------------------------------------------------------------------
def _inference_heads_kernel(x_ref, mask_ref,
                            wih_f_ref, whh_f_ref, bih_f_ref, bhh_f_ref,
                            wih_b_ref, whh_b_ref, bih_b_ref, bhh_b_ref,
                            wcd1_ref, bcd1_ref, wcd2_ref, bcd2_ref,
                            out_ref, gif_ref, gib_ref, hf_ref, hb_ref):
    _bigru_body(x_ref, mask_ref,
                wih_f_ref, whh_f_ref, bih_f_ref, bhh_f_ref,
                wih_b_ref, whh_b_ref, bih_b_ref, bhh_b_ref,
                gif_ref, gib_ref, hf_ref, hb_ref)
    X = jnp.concatenate([hf_ref[...], hb_ref[...]], axis=-1)     # [L, B, 2H]
    M = mask_ref[...]                                            # [L, B, 1]

    mx = jnp.max(jnp.where(M > 0, X, NEG_7), axis=0)             # [B, 2H]
    denom = jnp.maximum(jnp.sum(M, axis=0), 1.0)                 # [B, 1] div-by-0 guard
    avg = jnp.sum(X * M, axis=0) / denom                         # [B, 2H]
    pooled = jnp.concatenate([mx, avg], axis=-1)                 # [B, 4H]

    # Stacked class|domain heads.  Dropout is identity at inference;
    # GradReverse is identity in the forward pass.
    h1 = jnp.maximum(
        jnp.dot(pooled, wcd1_ref[...], preferred_element_type=jnp.float32)
        + bcd1_ref[...], 0.0)                                    # [B, 4H]
    out_ref[...] = (jnp.dot(h1, wcd2_ref[...], preferred_element_type=jnp.float32)
                    + bcd2_ref[...])                             # [B, C+2]


def inference_heads(x, mask, gp, hp):
    """x: [B, L, 3H] modeled text, mask: [B, L] -> [B, C+2] stacked logits."""
    B, L, _ = x.shape
    H = gp['whh_f'].shape[0]
    C_tot = hp['bcd2'].shape[-1]
    x_t = jnp.transpose(x, (1, 0, 2))
    m_t = jnp.transpose(mask, (1, 0))[:, :, None]
    return pl.pallas_call(
        _inference_heads_kernel,
        out_shape=jax.ShapeDtypeStruct((B, C_tot), jnp.float32),
        in_specs=[_VMEM] * 14,
        out_specs=_VMEM,
        scratch_shapes=[pltpu.VMEM((L, B, 3 * H), jnp.float32),
                        pltpu.VMEM((L, B, 3 * H), jnp.float32),
                        pltpu.VMEM((L, B, H), jnp.float32),
                        pltpu.VMEM((L, B, H), jnp.float32)],
    )(x_t, m_t,
      gp['wih_f'], gp['whh_f'], gp['bih_f'], gp['bhh_f'],
      gp['wih_b'], gp['whh_b'], gp['bih_b'], gp['bhh_b'],
      hp['wcd1'], hp['bcd1'], hp['wcd2'], hp['bcd2'])


# -----------------------------------------------------------------------------
# Parameters (deterministic, synthetic) and full forward pass
# -----------------------------------------------------------------------------
def _rand(key, shape, scale=0.1):
    return jax.random.normal(key, shape, dtype=jnp.float32) * scale


def make_gru_params(key, in_dim, H):
    ks = jax.random.split(key, 8)
    return dict(
        wih_f=_rand(ks[0], (in_dim, 3 * H)), whh_f=_rand(ks[1], (H, 3 * H)),
        bih_f=_rand(ks[2], (1, 3 * H)), bhh_f=_rand(ks[3], (1, 3 * H)),
        wih_b=_rand(ks[4], (in_dim, 3 * H)), whh_b=_rand(ks[5], (H, 3 * H)),
        bih_b=_rand(ks[6], (1, 3 * H)), bhh_b=_rand(ks[7], (1, 3 * H)))


def init_params(key, vocab, D, H, C):
    ks = jax.random.split(key, 16)
    emb = _rand(ks[0], (vocab, D)).at[0].set(0.0)       # padding_idx=0, frozen
    # LinearSimilarity 'x,y,x-y,x*y': weight vector [8H] + scalar bias (decomposed).
    w_sim = _rand(ks[3], (4, 2 * H))
    w1, w2, w3, w4 = w_sim
    sim = dict(wx=(w1 + w3).reshape(1, 2 * H),
               wy=(w2 - w3).reshape(1, 2 * H),
               wmul=w4.reshape(1, 2 * H),
               bias=_rand(ks[4], (1, 1)))
    proj = dict(wp=_rand(ks[5], (8 * H, 3 * H)),        # Linear(8H, 3H)
                bp=_rand(ks[6], (1, 3 * H)))
    # Classification / domain heads, stacked along the output dim.
    wc1 = _rand(ks[7], (4 * H, 2 * H)); bc1 = _rand(ks[8], (1, 2 * H))
    wc2 = _rand(ks[9], (2 * H, C));     bc2 = _rand(ks[10], (1, C))
    wd1 = _rand(ks[11], (4 * H, 2 * H)); bd1 = _rand(ks[12], (1, 2 * H))
    wd2 = _rand(ks[13], (2 * H, 2));     bd2 = _rand(ks[14], (1, 2))
    wcd1 = jnp.concatenate([wc1, wd1], axis=1)          # [4H, 4H]
    bcd1 = jnp.concatenate([bc1, bd1], axis=1)          # [1, 4H]
    wcd2 = jnp.zeros((4 * H, C + 2), jnp.float32)
    wcd2 = wcd2.at[:2 * H, :C].set(wc2).at[2 * H:, C:].set(wd2)   # block-diag
    bcd2 = jnp.concatenate([bc2, bd2], axis=1)          # [1, C+2]
    heads = dict(wcd1=wcd1, bcd1=bcd1, wcd2=wcd2, bcd2=bcd2)
    return dict(embedding=emb,
                encoder=make_gru_params(ks[1], D, H),
                inf_encoder=make_gru_params(ks[2], 3 * H, H),
                sim=sim, proj=proj, heads=heads, num_classes=C)


def acsa2absa_forward(params, text, aspect, alpha):
    del alpha  # GradReverse only scales gradients; its forward is identity
    emb = params['embedding']
    B, Lt = text.shape
    La = aspect.shape[1]
    Lmax = max(Lt, La)

    # Text and aspect share the encoder -> stack them along batch and run ONE BiGRU
    # call (pad the shorter one with token id 0, i.e. mask 0, which the GRU ignores).
    text_p = jnp.pad(text, ((0, 0), (0, Lmax - Lt)))
    aspect_p = jnp.pad(aspect, ((0, 0), (0, Lmax - La)))
    tokens = jnp.concatenate([text_p, aspect_p], axis=0)         # [2B, Lmax]
    mask_all = (tokens != 0).astype(jnp.float32)                 # [2B, Lmax]
    embedded = emb[tokens]                                       # [2B, Lmax, D]
    # TODO(synk): SequenceDropout(p=0.35)/Dropout are stochastic only in training;
    # eval-mode identity is used here.
    encoded = bigru(embedded, mask_all, params['encoder'])       # [2B, Lmax, 2H]

    encode_text = encoded[:B, :Lt]
    encode_aspect = encoded[B:, :La]
    text_mask = mask_all[:B, :Lt]
    aspect_mask = mask_all[B:, :La]

    modeled_text = coattn_project(encode_text, encode_aspect, text_mask,
                                  aspect_mask, params['sim'], params['proj'])
    logits = inference_heads(modeled_text, text_mask,
                             params['inf_encoder'], params['heads'])  # [B, C+2]
    C = params['num_classes']
    return logits[:, :C], logits[:, C:]


if __name__ == "__main__":
    B, LT, LA = 2, 8, 8
    V, D, H, C = 50, 16, 16, 3

    key = jax.random.PRNGKey(0)
    k_text, k_aspect, k_params = jax.random.split(key, 3)
    params = init_params(k_params, V, D, H, C)

    text = jax.random.randint(k_text, (B, LT), 1, V, dtype=jnp.int32)
    aspect = jax.random.randint(k_aspect, (B, LA), 1, V, dtype=jnp.int32)
    # trailing padding (token id 0) to exercise the mask / variable-length paths
    text = text * jnp.array([[1] * 6 + [0] * 2, [1] * 4 + [0] * 4], dtype=jnp.int32)
    aspect = aspect * jnp.array([[1] * 3 + [0] * 5, [1] * 2 + [0] * 6], dtype=jnp.int32)
    alpha = 0.5

    class_out, domain_out = acsa2absa_forward(params, text, aspect, alpha)
    jax.block_until_ready((class_out, domain_out))
    assert class_out.shape == (B, C) and domain_out.shape == (B, 2)
    assert bool(jnp.all(jnp.isfinite(class_out))) and bool(jnp.all(jnp.isfinite(domain_out)))
    print("KERNEL_OK")
</pallas_src>

<mosaic_0001>
module attributes {stable_mosaic.version = 11 : i64} {
  func.func @_bigru_kernel(%arg0: memref<8x4x16xf32, #tpu.memory_space<vmem>>, %arg1: memref<8x4x1xf32, #tpu.memory_space<vmem>>, %arg2: memref<16x48xf32, #tpu.memory_space<vmem>>, %arg3: memref<16x48xf32, #tpu.memory_space<vmem>>, %arg4: memref<1x48xf32, #tpu.memory_space<vmem>>, %arg5: memref<1x48xf32, #tpu.memory_space<vmem>>, %arg6: memref<16x48xf32, #tpu.memory_space<vmem>>, %arg7: memref<16x48xf32, #tpu.memory_space<vmem>>, %arg8: memref<1x48xf32, #tpu.memory_space<vmem>>, %arg9: memref<1x48xf32, #tpu.memory_space<vmem>>, %arg10: memref<8x4x32xf32, #tpu.memory_space<vmem>>, %arg11: memref<8x4x48xf32, #tpu.memory_space<vmem>>, %arg12: memref<8x4x48xf32, #tpu.memory_space<vmem>>, %arg13: memref<8x4x16xf32, #tpu.memory_space<vmem>>, %arg14: memref<8x4x16xf32, #tpu.memory_space<vmem>>) attributes {dimension_semantics = [], scalar_prefetch = 0 : i64, scratch_operands = 4 : i64, tpu.core_type = #tpu.core_type<tc>} {
    %c0 = arith.constant 0 : index
    %c0_0 = arith.constant 0 : index
    %c0_1 = arith.constant 0 : index
    %0 = vector.load %arg0[%c0, %c0_0, %c0_1] : memref<8x4x16xf32, #tpu.memory_space<vmem>>, vector<8x4x16xf32>
    %1 = vector.shape_cast %0 : vector<8x4x16xf32> to vector<32x16xf32>
    %c0_2 = arith.constant 0 : index
    %c0_3 = arith.constant 0 : index
    %2 = vector.load %arg2[%c0_2, %c0_3] : memref<16x48xf32, #tpu.memory_space<vmem>>, vector<16x48xf32>
    %cst = arith.constant dense<0.000000e+00> : vector<32x48xf32>
    %3 = tpu.matmul %1, %2, %cst {dimension_numbers = #tpu.dot_dimension_numbers<[1], [0], [0], [1], [0, 0, 1, 1], [], []>} : vector<32x16xf32>, vector<16x48xf32>, vector<32x48xf32> -> vector<32x48xf32>
    %c0_4 = arith.constant 0 : index
    %c0_5 = arith.constant 0 : index
    %4 = vector.load %arg4[%c0_4, %c0_5] : memref<1x48xf32, #tpu.memory_space<vmem>>, vector<1x48xf32>
    %5 = vector.broadcast %4 : vector<1x48xf32> to vector<32x48xf32>
    %6 = arith.addf %3, %5 : vector<32x48xf32>
    %7 = vector.shape_cast %6 : vector<32x48xf32> to vector<8x4x48xf32>
    %c0_6 = arith.constant 0 : index
    %c0_7 = arith.constant 0 : index
    %c0_8 = arith.constant 0 : index
    %8 = vector.load %arg11[%c0_6, %c0_7, %c0_8] : memref<8x4x48xf32, #tpu.memory_space<vmem>>, vector<8x4x48xf32>
    tpu.vector_store %arg11[%c0_6, %c0_7, %c0_8], %7 {strides = array<i32>} : memref<8x4x48xf32, #tpu.memory_space<vmem>>, vector<8x4x48xf32>,
    %c0_9 = arith.constant 0 : index
    %c0_10 = arith.constant 0 : index
    %9 = vector.load %arg6[%c0_9, %c0_10] : memref<16x48xf32, #tpu.memory_space<vmem>>, vector<16x48xf32>
    %cst_11 = arith.constant dense<0.000000e+00> : vector<32x48xf32>
    %10 = tpu.matmul %1, %9, %cst_11 {dimension_numbers = #tpu.dot_dimension_numbers<[1], [0], [0], [1], [0, 0, 1, 1], [], []>} : vector<32x16xf32>, vector<16x48xf32>, vector<32x48xf32> -> vector<32x48xf32>
    %c0_12 = arith.constant 0 : index
    %c0_13 = arith.constant 0 : index
    %11 = vector.load %arg8[%c0_12, %c0_13] : memref<1x48xf32, #tpu.memory_space<vmem>>, vector<1x48xf32>
    %12 = vector.broadcast %11 : vector<1x48xf32> to vector<32x48xf32>
    %13 = arith.addf %10, %12 : vector<32x48xf32>
    %14 = vector.shape_cast %13 : vector<32x48xf32> to vector<8x4x48xf32>
    %c0_14 = arith.constant 0 : index
    %c0_15 = arith.constant 0 : index
    %c0_16 = arith.constant 0 : index
    %15 = vector.load %arg12[%c0_14, %c0_15, %c0_16] : memref<8x4x48xf32, #tpu.memory_space<vmem>>, vector<8x4x48xf32>
    tpu.vector_store %arg12[%c0_14, %c0_15, %c0_16], %14 {strides = array<i32>} : memref<8x4x48xf32, #tpu.memory_space<vmem>>, vector<8x4x48xf32>,
    %c0_17 = arith.constant 0 : index
    %c0_18 = arith.constant 0 : index
    %16 = vector.load %arg3[%c0_17, %c0_18] : memref<16x48xf32, #tpu.memory_space<vmem>>, vector<16x48xf32>
    %c0_19 = arith.constant 0 : index
    %c0_20 = arith.constant 0 : index
    %17 = vector.load %arg5[%c0_19, %c0_20] : memref<1x48xf32, #tpu.memory_space<vmem>>, vector<1x48xf32>
    %c0_21 = arith.constant 0 : index
    %c0_22 = arith.constant 0 : index
    %18 = vector.load %arg7[%c0_21, %c0_22] : memref<16x48xf32, #tpu.memory_space<vmem>>, vector<16x48xf32>
    %c0_23 = arith.constant 0 : index
    %c0_24 = arith.constant 0 : index
    %19 = vector.load %arg9[%c0_23, %c0_24] : memref<1x48xf32, #tpu.memory_space<vmem>>, vector<1x48xf32>
    %cst_25 = arith.constant 0.000000e+00 : f32
    %20 = vector.broadcast %cst_25 : f32 to vector<4x16xf32>
    %c0_i32 = arith.constant 0 : i32
    %c7_i32 = arith.constant 7 : i32
    %21 = arith.subi %c7_i32, %c0_i32 : i32
    %cst_26 = arith.constant dense<0.000000e+00> : vector<4x48xf32>
    %22 = tpu.matmul %20, %16, %cst_26 {dimension_numbers = #tpu.dot_dimension_numbers<[1], [0], [0], [1], [0, 0, 1, 1], [], []>} : vector<4x16xf32>, vector<16x48xf32>, vector<4x48xf32> -> vector<4x48xf32>
    %23 = vector.broadcast %17 : vector<1x48xf32> to vector<4x48xf32>
    %24 = arith.addf %22, %23 : vector<4x48xf32>
    %25 = arith.index_cast %c0_i32 : i32 to index
    %c0_27 = arith.constant 0 : index
    %c0_28 = arith.constant 0 : index
    %26 = vector.load %arg11[%25, %c0_27, %c0_28] : memref<8x4x48xf32, #tpu.memory_space<vmem>>, vector<1x4x48xf32>
    %27 = vector.shape_cast %26 : vector<1x4x48xf32> to vector<4x48xf32>
    %28 = vector.extract_strided_slice %27 {offsets = [0, 0], sizes = [4, 16], strides = [1, 1]} : vector<4x48xf32> to vector<4x16xf32>
    %29 = vector.extract_strided_slice %24 {offsets = [0, 0], sizes = [4, 16], strides = [1, 1]} : vector<4x48xf32> to vector<4x16xf32>
    %30 = arith.addf %28, %29 : vector<4x16xf32>
    %31 = arith.negf %30 : vector<4x16xf32>
    %32 = math.exp %31 : vector<4x16xf32>
    %cst_29 = arith.constant 1.000000e+00 : f32
    %33 = vector.broadcast %cst_29 : f32 to vector<4x16xf32>
    %34 = arith.addf %33, %32 : vector<4x16xf32>
    %35 = arith.divf %33, %34 : vector<4x16xf32>
    %36 = vector.extract_strided_slice %27 {offsets = [0, 16], sizes = [4, 16], strides = [1, 1]} : vector<4x48xf32> to vector<4x16xf32>
    %37 = vector.extract_strided_slice %24 {offsets = [0, 16], sizes = [4, 16], strides = [1, 1]} : vector<4x48xf32> to vector<4x16xf32>
    %38 = arith.addf %36, %37 : vector<4x16xf32>
    %39 = arith.negf %38 : vector<4x16xf32>
    %40 = math.exp %39 : vector<4x16xf32>
    %cst_30 = arith.constant 1.000000e+00 : f32
    %41 = vector.broadcast %cst_30 : f32 to vector<4x16xf32>
    %42 = arith.addf %41, %40 : vector<4x16xf32>
    %43 = arith.divf %41, %42 : vector<4x16xf32>
    %44 = vector.extract_strided_slice %27 {offsets = [0, 32], sizes = [4, 16], strides = [1, 1]} : vector<4x48xf32> to vector<4x16xf32>
    %45 = vector.extract_strided_slice %24 {offsets = [0, 32], sizes = [4, 16], strides = [1, 1]} : vector<4x48xf32> to vector<4x16xf32>
    %46 = arith.mulf %35, %45 : vector<4x16xf32>
    %47 = arith.addf %44, %46 : vector<4x16xf32>
    %48 = math.tanh %47 : vector<4x16xf32>
    %cst_31 = arith.constant 1.000000e+00 : f32
    %49 = vector.broadcast %cst_31 : f32 to vector<4x16xf32>
    %50 = arith.subf %49, %43 : vector<4x16xf32>
    %51 = arith.mulf %50, %48 : vector<4x16xf32>
    %52 = arith.mulf %43, %20 : vector<4x16xf32>
    %53 = arith.addf %51, %52 : vector<4x16xf32>
    %54 = arith.index_cast %c0_i32 : i32 to index
    %c0_32 = arith.constant 0 : index
    %c0_33 = arith.constant 0 : index
    %55 = vector.load %arg1[%54, %c0_32, %c0_33] : memref<8x4x1xf32, #tpu.memory_space<vmem>>, vector<1x4x1xf32>
    %56 = vector.shape_cast %55 : vector<1x4x1xf32> to vector<4x1xf32>
    %57 = arith.subf %53, %20 : vector<4x16xf32>
    %58 = vector.broadcast %56 : vector<4x1xf32> to vector<4x16xf32>
    %59 = arith.mulf %58, %57 : vector<4x16xf32>
    %60 = arith.addf %20, %59 : vector<4x16xf32>
    %61 = vector.broadcast %56 : vector<4x1xf32> to vector<4x16xf32>
    %62 = arith.mulf %61, %60 : vector<4x16xf32>
    %63 = arith.index_cast %c0_i32 : i32 to index
    %c0_34 = arith.constant 0 : index
    %c0_35 = arith.constant 0 : index
    %64 = vector.load %arg13[%63, %c0_34, %c0_35] : memref<8x4x16xf32, #tpu.memory_space<vmem>>, vector<1x4x16xf32>
    %65 = vector.shape_cast %64 : vector<1x4x16xf32> to vector<4x16xf32>
    %66 = vector.shape_cast %62 : vector<4x16xf32> to vector<1x4x16xf32>
    tpu.vector_store %arg13[%63, %c0_34, %c0_35], %66 {strides = array<i32>} : memref<8x4x16xf32, #tpu.memory_space<vmem>>, vector<1x4x16xf32>,
    %cst_36 = arith.constant dense<0.000000e+00> : vector<4x48xf32>
    %67 = tpu.matmul %20, %18, %cst_36 {dimension_numbers = #tpu.dot_dimension_numbers<[1], [0], [0], [1], [0, 0, 1, 1], [], []>} : vector<4x16xf32>, vector<16x48xf32>, vector<4x48xf32> -> vector<4x48xf32>
    %68 = vector.broadcast %19 : vector<1x48xf32> to vector<4x48xf32>
    %69 = arith.addf %67, %68 : vector<4x48xf32>
    %70 = arith.index_cast %21 : i32 to index
    %c0_37 = arith.constant 0 : index
    %c0_38 = arith.constant 0 : index
    %71 = vector.load %arg12[%70, %c0_37, %c0_38] : memref<8x4x48xf32, #tpu.memory_space<vmem>>, vector<1x4x48xf32>
    %72 = vector.shape_cast %71 : vector<1x4x48xf32> to vector<4x48xf32>
    %73 = vector.extract_strided_slice %72 {offsets = [0, 0], sizes = [4, 16], strides = [1, 1]} : vector<4x48xf32> to vector<4x16xf32>
    %74 = vector.extract_strided_slice %69 {offsets = [0, 0], sizes = [4, 16], strides = [1, 1]} : vector<4x48xf32> to vector<4x16xf32>
    %75 = arith.addf %73, %74 : vector<4x16xf32>
    %76 = arith.negf %75 : vector<4x16xf32>
    %77 = math.exp %76 : vector<4x16xf32>
    %cst_39 = arith.constant 1.000000e+00 : f32
    %78 = vector.broadcast %cst_39 : f32 to vector<4x16xf32>
    %79 = arith.addf %78, %77 : vector<4x16xf32>
    %80 = arith.divf %78, %79 : vector<4x16xf32>
    %81 = vector.extract_strided_slice %72 {offsets = [0, 16], sizes = [4, 16], strides = [1, 1]} : vector<4x48xf32> to vector<4x16xf32>
    %82 = vector.extract_strided_slice %69 {offsets = [0, 16], sizes = [4, 16], strides = [1, 1]} : vector<4x48xf32> to vector<4x16xf32>
    %83 = arith.addf %81, %82 : vector<4x16xf32>
    %84 = arith.negf %83 : vector<4x16xf32>
    %85 = math.exp %84 : vector<4x16xf32>
    %cst_40 = arith.constant 1.000000e+00 : f32
    %86 = vector.broadcast %cst_40 : f32 to vector<4x16xf32>
    %87 = arith.addf %86, %85 : vector<4x16xf32>
    %88 = arith.divf %86, %87 : vector<4x16xf32>
    %89 = vector.extract_strided_slice %72 {offsets = [0, 32], sizes = [4, 16], strides = [1, 1]} : vector<4x48xf32> to vector<4x16xf32>
    %90 = vector.extract_strided_slice %69 {offsets = [0, 32], sizes = [4, 16], strides = [1, 1]} : vector<4x48xf32> to vector<4x16xf32>
    %91 = arith.mulf %80, %90 : vector<4x16xf32>
    %92 = arith.addf %89, %91 : vector<4x16xf32>
    %93 = math.tanh %92 : vector<4x16xf32>
    %cst_41 = arith.constant 1.000000e+00 : f32
    %94 = vector.broadcast %cst_41 : f32 to vector<4x16xf32>
    %95 = arith.subf %94, %88 : vector<4x16xf32>
    %96 = arith.mulf %95, %93 : vector<4x16xf32>
    %97 = arith.mulf %88, %20 : vector<4x16xf32>
    %98 = arith.addf %96, %97 : vector<4x16xf32>
    %99 = arith.index_cast %21 : i32 to index
    %c0_42 = arith.constant 0 : index
    %c0_43 = arith.constant 0 : index
    %100 = vector.load %arg1[%99, %c0_42, %c0_43] : memref<8x4x1xf32, #tpu.memory_space<vmem>>, vector<1x4x1xf32>
    %101 = vector.shape_cast %100 : vector<1x4x1xf32> to vector<4x1xf32>
    %102 = arith.subf %98, %20 : vector<4x16xf32>
    %103 = vector.broadcast %101 : vector<4x1xf32> to vector<4x16xf32>
    %104 = arith.mulf %103, %102 : vector<4x16xf32>
    %105 = arith.addf %20, %104 : vector<4x16xf32>
    %106 = vector.broadcast %101 : vector<4x1xf32> to vector<4x16xf32>
    %107 = arith.mulf %106, %105 : vector<4x16xf32>
    %108 = arith.index_cast %21 : i32 to index
    %c0_44 = arith.constant 0 : index
    %c0_45 = arith.constant 0 : index
    %109 = vector.load %arg14[%108, %c0_44, %c0_45] : memref<8x4x16xf32, #tpu.memory_space<vmem>>, vector<1x4x16xf32>
    %110 = vector.shape_cast %109 : vector<1x4x16xf32> to vector<4x16xf32>
    %111 = vector.shape_cast %107 : vector<4x16xf32> to vector<1x4x16xf32>
    tpu.vector_store %arg14[%108, %c0_44, %c0_45], %111 {strides = array<i32>} : memref<8x4x16xf32, #tpu.memory_space<vmem>>, vector<1x4x16xf32>,
    %c1_i32 = arith.constant 1 : i32
    %c7_i32_46 = arith.constant 7 : i32
    %112 = arith.subi %c7_i32_46, %c1_i32 : i32
    %cst_47 = arith.constant dense<0.000000e+00> : vector<4x48xf32>
    %113 = tpu.matmul %60, %16, %cst_47 {dimension_numbers = #tpu.dot_dimension_numbers<[1], [0], [0], [1], [0, 0, 1, 1], [], []>} : vector<4x16xf32>, vector<16x48xf32>, vector<4x48xf32> -> vector<4x48xf32>
    %114 = vector.broadcast %17 : vector<1x48xf32> to vector<4x48xf32>
    %115 = arith.addf %113, %114 : vector<4x48xf32>
    %116 = arith.index_cast %c1_i32 : i32 to index
    %c0_48 = arith.constant 0 : index
    %c0_49 = arith.constant 0 : index
    %117 = vector.load %arg11[%116, %c0_48, %c0_49] : memref<8x4x48xf32, #tpu.memory_space<vmem>>, vector<1x4x48xf32>
    %118 = vector.shape_cast %117 : vector<1x4x48xf32> to vector<4x48xf32>
    %119 = vector.extract_strided_slice %118 {offsets = [0, 0], sizes = [4, 16], strides = [1, 1]} : vector<4x48xf32> to vector<4x16xf32>
    %120 = vector.extract_strided_slice %115 {offsets = [0, 0], sizes = [4, 16], strides = [1, 1]} : vector<4x48xf32> to vector<4x16xf32>
    %121 = arith.addf %119, %120 : vector<4x16xf32>
    %122 = arith.negf %121 : vector<4x16xf32>
    %123 = math.exp %122 : vector<4x16xf32>
    %cst_50 = arith.constant 1.000000e+00 : f32
    %124 = vector.broadcast %cst_50 : f32 to vector<4x16xf32>
    %125 = arith.addf %124, %123 : vector<4x16xf32>
    %126 = arith.divf %124, %125 : vector<4x16xf32>
    %127 = vector.extract_strided_slice %118 {offsets = [0, 16], sizes = [4, 16], strides = [1, 1]} : vector<4x48xf32> to vector<4x16xf32>
    %128 = vector.extract_strided_slice %115 {offsets = [0, 16], sizes = [4, 16], strides = [1, 1]} : vector<4x48xf32> to vector<4x16xf32>
    %129 = arith.addf %127, %128 : vector<4x16xf32>
    %130 = arith.negf %129 : vector<4x16xf32>
    %131 = math.exp %130 : vector<4x16xf32>
    %cst_51 = arith.constant 1.000000e+00 : f32
    %132 = vector.broadcast %cst_51 : f32 to vector<4x16xf32>
    %133 = arith.addf %132, %131 : vector<4x16xf32>
    %134 = arith.divf %132, %133 : vector<4x16xf32>
    %135 = vector.extract_strided_slice %118 {offsets = [0, 32], sizes = [4, 16], strides = [1, 1]} : vector<4x48xf32> to vector<4x16xf32>
    %136 = vector.extract_strided_slice %115 {offsets = [0, 32], sizes = [4, 16], strides = [1, 1]} : vector<4x48xf32> to vector<4x16xf32>
    %137 = arith.mulf %126, %136 : vector<4x16xf32>
    %138 = arith.addf %135, %137 : vector<4x16xf32>
    %139 = math.tanh %138 : vector<4x16xf32>
    %cst_52 = arith.constant 1.000000e+00 : f32
    %140 = vector.broadcast %cst_52 : f32 to vector<4x16xf32>
    %141 = arith.subf %140, %134 : vector<4x16xf32>
    %142 = arith.mulf %141, %139 : vector<4x16xf32>
    %143 = arith.mulf %134, %60 : vector<4x16xf32>
    %144 = arith.addf %142, %143 : vector<4x16xf32>
    %145 = arith.index_cast %c1_i32 : i32 to index
    %c0_53 = arith.constant 0 : index
    %c0_54 = arith.constant 0 : index
    %146 = vector.load %arg1[%145, %c0_53, %c0_54] : memref<8x4x1xf32, #tpu.memory_space<vmem>>, vector<1x4x1xf32>
    %147 = vector.shape_cast %146 : vector<1x4x1xf32> to vector<4x1xf32>
    %148 = arith.subf %144, %60 : vector<4x16xf32>
    %149 = vector.broadcast %147 : vector<4x1xf32> to vector<4x16xf32>
    %150 = arith.mulf %149, %148 : vector<4x16xf32>
    %151 = arith.addf %60, %150 : vector<4x16xf32>
    %152 = vector.broadcast %147 : vector<4x1xf32> to vector<4x16xf32>
    %153 = arith.mulf %152, %151 : vector<4x16xf32>
    %154 = arith.index_cast %c1_i32 : i32 to index
    %c0_55 = arith.constant 0 : index
    %c0_56 = arith.constant 0 : index
    %155 = vector.load %arg13[%154, %c0_55, %c0_56] : memref<8x4x16xf32, #tpu.memory_space<vmem>>, vector<1x4x16xf32>
    %156 = vector.shape_cast %155 : vector<1x4x16xf32> to vector<4x16xf32>
    %157 = vector.shape_cast %153 : vector<4x16xf32> to vector<1x4x16xf32>
    tpu.vector_store %arg13[%154, %c0_55, %c0_56], %157 {strides = array<i32>} : memref<8x4x16xf32, #tpu.memory_space<vmem>>, vector<1x4x16xf32>,
    %cst_57 = arith.constant dense<0.000000e+00> : vector<4x48xf32>
    %158 = tpu.matmul %105, %18, %cst_57 {dimension_numbers = #tpu.dot_dimension_numbers<[1], [0], [0], [1], [0, 0, 1, 1], [], []>} : vector<4x16xf32>, vector<16x48xf32>, vector<4x48xf32> -> vector<4x48xf32>
    %159 = vector.broadcast %19 : vector<1x48xf32> to vector<4x48xf32>
    %160 = arith.addf %158, %159 : vector<4x48xf32>
    %161 = arith.index_cast %112 : i32 to index
    %c0_58 = arith.constant 0 : index
    %c0_59 = arith.constant 0 : index
    %162 = vector.load %arg12[%161, %c0_58, %c0_59] : memref<8x4x48xf32, #tpu.memory_space<vmem>>, vector<1x4x48xf32>
    %163 = vector.shape_cast %162 : vector<1x4x48xf32> to vector<4x48xf32>
    %164 = vector.extract_strided_slice %163 {offsets = [0, 0], sizes = [4, 16], strides = [1, 1]} : vector<4x48xf32> to vector<4x16xf32>
    %165 = vector.extract_strided_slice %160 {offsets = [0, 0], sizes = [4, 16], strides = [1, 1]} : vector<4x48xf32> to vector<4x16xf32>
    %166 = arith.addf %164, %165 : vector<4x16xf32>
    %167 = arith.negf %166 : vector<4x16xf32>
    %168 = math.exp %167 : vector<4x16xf32>
    %cst_60 = arith.constant 1.000000e+00 : f32
    %169 = vector.broadcast %cst_60 : f32 to vector<4x16xf32>
    %170 = arith.addf %169, %168 : vector<4x16xf32>
    %171 = arith.divf %169, %170 : vector<4x16xf32>
    %172 = vector.extract_strided_slice %163 {offsets = [0, 16], sizes = [4, 16], strides = [1, 1]} : vector<4x48xf32> to vector<4x16xf32>
    %173 = vector.extract_strided_slice %160 {offsets = [0, 16], sizes = [4, 16], strides = [1, 1]} : vector<4x48xf32> to vector<4x16xf32>
    %174 = arith.addf %172, %173 : vector<4x16xf32>
    %175 = arith.negf %174 : vector<4x16xf32>
    %176 = math.exp %175 : vector<4x16xf32>
    %cst_61 = arith.constant 1.000000e+00 : f32
    %177 = vector.broadcast %cst_61 : f32 to vector<4x16xf32>
    %178 = arith.addf %177, %176 : vector<4x16xf32>
    %179 = arith.divf %177, %178 : vector<4x16xf32>
    %180 = vector.extract_strided_slice %163 {offsets = [0, 32], sizes = [4, 16], strides = [1, 1]} : vector<4x48xf32> to vector<4x16xf32>
    %181 = vector.extract_strided_slice %160 {offsets = [0, 32], sizes = [4, 16], strides = [1, 1]} : vector<4x48xf32> to vector<4x16xf32>
    %182 = arith.mulf %171, %181 : vector<4x16xf32>
    %183 = arith.addf %180, %182 : vector<4x16xf32>
    %184 = math.tanh %183 : vector<4x16xf32>
    %cst_62 = arith.constant 1.000000e+00 : f32
    %185 = vector.broadcast %cst_62 : f32 to vector<4x16xf32>
    %186 = arith.subf %185, %179 : vector<4x16xf32>
    %187 = arith.mulf %186, %184 : vector<4x16xf32>
    %188 = arith.mulf %179, %105 : vector<4x16xf32>
    %189 = arith.addf %187, %188 : vector<4x16xf32>
    %190 = arith.index_cast %112 : i32 to index
    %c0_63 = arith.constant 0 : index
    %c0_64 = arith.constant 0 : index
    %191 = vector.load %arg1[%190, %c0_63, %c0_64] : memref<8x4x1xf32, #tpu.memory_space<vmem>>, vector<1x4x1xf32>
    %192 = vector.shape_cast %191 : vector<1x4x1xf32> to vector<4x1xf32>
    %193 = arith.subf %189, %105 : vector<4x16xf32>
    %194 = vector.broadcast %192 : vector<4x1xf32> to vector<4x16xf32>
    %195 = arith.mulf %194, %193 : vector<4x16xf32>
    %196 = arith.addf %105, %195 : vector<4x16xf32>
    %197 = vector.broadcast %192 : vector<4x1xf32> to vector<4x16xf32>
    %198 = arith.mulf %197, %196 : vector<4x16xf32>
    %199 = arith.index_cast %112 : i32 to index
    %c0_65 = arith.constant 0 : index
    %c0_66 = arith.constant 0 : index
    %200 = vector.load %arg14[%199, %c0_65, %c0_66] : memref<8x4x16xf32, #tpu.memory_space<vmem>>, vector<1x4x16xf32>
    %201 = vector.shape_cast %200 : vector<1x4x16xf32> to vector<4x16xf32>
    %202 = vector.shape_cast %198 : vector<4x16xf32> to vector<1x4x16xf32>
    tpu.vector_store %arg14[%199, %c0_65, %c0_66], %202 {strides = array<i32>} : memref<8x4x16xf32, #tpu.memory_space<vmem>>, vector<1x4x16xf32>,
    %c2_i32 = arith.constant 2 : i32
    %c7_i32_67 = arith.constant 7 : i32
    %203 = arith.subi %c7_i32_67, %c2_i32 : i32
    %cst_68 = arith.constant dense<0.000000e+00> : vector<4x48xf32>
    %204 = tpu.matmul %151, %16, %cst_68 {dimension_numbers = #tpu.dot_dimension_numbers<[1], [0], [0], [1], [0, 0, 1, 1], [], []>} : vector<4x16xf32>, vector<16x48xf32>, vector<4x48xf32> -> vector<4x48xf32>
    %205 = vector.broadcast %17 : vector<1x48xf32> to vector<4x48xf32>
    %206 = arith.addf %204, %205 : vector<4x48xf32>
    %207 = arith.index_cast %c2_i32 : i32 to index
    %c0_69 = arith.constant 0 : index
    %c0_70 = arith.constant 0 : index
    %208 = vector.load %arg11[%207, %c0_69, %c0_70] : memref<8x4x48xf32, #tpu.memory_space<vmem>>, vector<1x4x48xf32>
    %209 = vector.shape_cast %208 : vector<1x4x48xf32> to vector<4x48xf32>
    %210 = vector.extract_strided_slice %209 {offsets = [0, 0], sizes = [4, 16], strides = [1, 1]} : vector<4x48xf32> to vector<4x16xf32>
    %211 = vector.extract_strided_slice %206 {offsets = [0, 0], sizes = [4, 16], strides = [1, 1]} : vector<4x48xf32> to vector<4x16xf32>
    %212 = arith.addf %210, %211 : vector<4x16xf32>
    %213 = arith.negf %212 : vector<4x16xf32>
    %214 = math.exp %213 : vector<4x16xf32>
    %cst_71 = arith.constant 1.000000e+00 : f32
    %215 = vector.broadcast %cst_71 : f32 to vector<4x16xf32>
    %216 = arith.addf %215, %214 : vector<4x16xf32>
    %217 = arith.divf %215, %216 : vector<4x16xf32>
    %218 = vector.extract_strided_slice %209 {offsets = [0, 16], sizes = [4, 16], strides = [1, 1]} : vector<4x48xf32> to vector<4x16xf32>
    %219 = vector.extract_strided_slice %206 {offsets = [0, 16], sizes = [4, 16], strides = [1, 1]} : vector<4x48xf32> to vector<4x16xf32>
    %220 = arith.addf %218, %219 : vector<4x16xf32>
    %221 = arith.negf %220 : vector<4x16xf32>
    %222 = math.exp %221 : vector<4x16xf32>
    %cst_72 = arith.constant 1.000000e+00 : f32
    %223 = vector.broadcast %cst_72 : f32 to vector<4x16xf32>
    %224 = arith.addf %223, %222 : vector<4x16xf32>
    %225 = arith.divf %223, %224 : vector<4x16xf32>
    %226 = vector.extract_strided_slice %209 {offsets = [0, 32], sizes = [4, 16], strides = [1, 1]} : vector<4x48xf32> to vector<4x16xf32>
    %227 = vector.extract_strided_slice %206 {offsets = [0, 32], sizes = [4, 16], strides = [1, 1]} : vector<4x48xf32> to vector<4x16xf32>
    %228 = arith.mulf %217, %227 : vector<4x16xf32>
    %229 = arith.addf %226, %228 : vector<4x16xf32>
    %230 = math.tanh %229 : vector<4x16xf32>
    %cst_73 = arith.constant 1.000000e+00 : f32
    %231 = vector.broadcast %cst_73 : f32 to vector<4x16xf32>
    %232 = arith.subf %231, %225 : vector<4x16xf32>
    %233 = arith.mulf %232, %230 : vector<4x16xf32>
    %234 = arith.mulf %225, %151 : vector<4x16xf32>
    %235 = arith.addf %233, %234 : vector<4x16xf32>
    %236 = arith.index_cast %c2_i32 : i32 to index
    %c0_74 = arith.constant 0 : index
    %c0_75 = arith.constant 0 : index
    %237 = vector.load %arg1[%236, %c0_74, %c0_75] : memref<8x4x1xf32, #tpu.memory_space<vmem>>, vector<1x4x1xf32>
    %238 = vector.shape_cast %237 : vector<1x4x1xf32> to vector<4x1xf32>
    %239 = arith.subf %235, %151 : vector<4x16xf32>
    %240 = vector.broadcast %238 : vector<4x1xf32> to vector<4x16xf32>
    %241 = arith.mulf %240, %239 : vector<4x16xf32>
    %242 = arith.addf %151, %241 : vector<4x16xf32>
    %243 = vector.broadcast %238 : vector<4x1xf32> to vector<4x16xf32>
    %244 = arith.mulf %243, %242 : vector<4x16xf32>
    %245 = arith.index_cast %c2_i32 : i32 to index
    %c0_76 = arith.constant 0 : index
    %c0_77 = arith.constant 0 : index
    %246 = vector.load %arg13[%245, %c0_76, %c0_77] : memref<8x4x16xf32, #tpu.memory_space<vmem>>, vector<1x4x16xf32>
    %247 = vector.shape_cast %246 : vector<1x4x16xf32> to vector<4x16xf32>
    %248 = vector.shape_cast %244 : vector<4x16xf32> to vector<1x4x16xf32>
    tpu.vector_store %arg13[%245, %c0_76, %c0_77], %248 {strides = array<i32>} : memref<8x4x16xf32, #tpu.memory_space<vmem>>, vector<1x4x16xf32>,
    %cst_78 = arith.constant dense<0.000000e+00> : vector<4x48xf32>
    %249 = tpu.matmul %196, %18, %cst_78 {dimension_numbers = #tpu.dot_dimension_numbers<[1], [0], [0], [1], [0, 0, 1, 1], [], []>} : vector<4x16xf32>, vector<16x48xf32>, vector<4x48xf32> -> vector<4x48xf32>
    %250 = vector.broadcast %19 : vector<1x48xf32> to vector<4x48xf32>
    %251 = arith.addf %249, %250 : vector<4x48xf32>
    %252 = arith.index_cast %203 : i32 to index
    %c0_79 = arith.constant 0 : index
    %c0_80 = arith.constant 0 : index
    %253 = vector.load %arg12[%252, %c0_79, %c0_80] : memref<8x4x48xf32, #tpu.memory_space<vmem>>, vector<1x4x48xf32>
    %254 = vector.shape_cast %253 : vector<1x4x48xf32> to vector<4x48xf32>
    %255 = vector.extract_strided_slice %254 {offsets = [0, 0], sizes = [4, 16], strides = [1, 1]} : vector<4x48xf32> to vector<4x16xf32>
    %256 = vector.extract_strided_slice %251 {offsets = [0, 0], sizes = [4, 16], strides = [1, 1]} : vector<4x48xf32> to vector<4x16xf32>
    %257 = arith.addf %255, %256 : vector<4x16xf32>
    %258 = arith.negf %257 : vector<4x16xf32>
    %259 = math.exp %258 : vector<4x16xf32>
    %cst_81 = arith.constant 1.000000e+00 : f32
    %260 = vector.broadcast %cst_81 : f32 to vector<4x16xf32>
    %261 = arith.addf %260, %259 : vector<4x16xf32>
    %262 = arith.divf %260, %261 : vector<4x16xf32>
    %263 = vector.extract_strided_slice %254 {offsets = [0, 16], sizes = [4, 16], strides = [1, 1]} : vector<4x48xf32> to vector<4x16xf32>
    %264 = vector.extract_strided_slice %251 {offsets = [0, 16], sizes = [4, 16], strides = [1, 1]} : vector<4x48xf32> to vector<4x16xf32>
    %265 = arith.addf %263, %264 : vector<4x16xf32>
    %266 = arith.negf %265 : vector<4x16xf32>
    %267 = math.exp %266 : vector<4x16xf32>
    %cst_82 = arith.constant 1.000000e+00 : f32
    %268 = vector.broadcast %cst_82 : f32 to vector<4x16xf32>
    %269 = arith.addf %268, %267 : vector<4x16xf32>
    %270 = arith.divf %268, %269 : vector<4x16xf32>
    %271 = vector.extract_strided_slice %254 {offsets = [0, 32], sizes = [4, 16], strides = [1, 1]} : vector<4x48xf32> to vector<4x16xf32>
    %272 = vector.extract_strided_slice %251 {offsets = [0, 32], sizes = [4, 16], strides = [1, 1]} : vector<4x48xf32> to vector<4x16xf32>
    %273 = arith.mulf %262, %272 : vector<4x16xf32>
    %274 = arith.addf %271, %273 : vector<4x16xf32>
    %275 = math.tanh %274 : vector<4x16xf32>
    %cst_83 = arith.constant 1.000000e+00 : f32
    %276 = vector.broadcast %cst_83 : f32 to vector<4x16xf32>
    %277 = arith.subf %276, %270 : vector<4x16xf32>
    %278 = arith.mulf %277, %275 : vector<4x16xf32>
    %279 = arith.mulf %270, %196 : vector<4x16xf32>
    %280 = arith.addf %278, %279 : vector<4x16xf32>
    %281 = arith.index_cast %203 : i32 to index
    %c0_84 = arith.constant 0 : index
    %c0_85 = arith.constant 0 : index
    %282 = vector.load %arg1[%281, %c0_84, %c0_85] : memref<8x4x1xf32, #tpu.memory_space<vmem>>, vector<1x4x1xf32>
    %283 = vector.shape_cast %282 : vector<1x4x1xf32> to vector<4x1xf32>
    %284 = arith.subf %280, %196 : vector<4x16xf32>
    %285 = vector.broadcast %283 : vector<4x1xf32> to vector<4x16xf32>
    %286 = arith.mulf %285, %284 : vector<4x16xf32>
    %287 = arith.addf %196, %286 : vector<4x16xf32>
    %288 = vector.broadcast %283 : vector<4x1xf32> to vector<4x16xf32>
    %289 = arith.mulf %288, %287 : vector<4x16xf32>
    %290 = arith.index_cast %203 : i32 to index
    %c0_86 = arith.constant 0 : index
    %c0_87 = arith.constant 0 : index
    %291 = vector.load %arg14[%290, %c0_86, %c0_87] : memref<8x4x16xf32, #tpu.memory_space<vmem>>, vector<1x4x16xf32>
    %292 = vector.shape_cast %291 : vector<1x4x16xf32> to vector<4x16xf32>
    %293 = vector.shape_cast %289 : vector<4x16xf32> to vector<1x4x16xf32>
    tpu.vector_store %arg14[%290, %c0_86, %c0_87], %293 {strides = array<i32>} : memref<8x4x16xf32, #tpu.memory_space<vmem>>, vector<1x4x16xf32>,
    %c3_i32 = arith.constant 3 : i32
    %c7_i32_88 = arith.constant 7 : i32
    %294 = arith.subi %c7_i32_88, %c3_i32 : i32
    %cst_89 = arith.constant dense<0.000000e+00> : vector<4x48xf32>
    %295 = tpu.matmul %242, %16, %cst_89 {dimension_numbers = #tpu.dot_dimension_numbers<[1], [0], [0], [1], [0, 0, 1, 1], [], []>} : vector<4x16xf32>, vector<16x48xf32>, vector<4x48xf32> -> vector<4x48xf32>
    %296 = vector.broadcast %17 : vector<1x48xf32> to vector<4x48xf32>
    %297 = arith.addf %295, %296 : vector<4x48xf32>
    %298 = arith.index_cast %c3_i32 : i32 to index
    %c0_90 = arith.constant 0 : index
    %c0_91 = arith.constant 0 : index
    %299 = vector.load %arg11[%298, %c0_90, %c0_91] : memref<8x4x48xf32, #tpu.memory_space<vmem>>, vector<1x4x48xf32>
    %300 = vector.shape_cast %299 : vector<1x4x48xf32> to vector<4x48xf32>
    %301 = vector.extract_strided_slice %300 {offsets = [0, 0], sizes = [4, 16], strides = [1, 1]} : vector<4x48xf32> to vector<4x16xf32>
    %302 = vector.extract_strided_slice %297 {offsets = [0, 0], sizes = [4, 16], strides = [1, 1]} : vector<4x48xf32> to vector<4x16xf32>
    %303 = arith.addf %301, %302 : vector<4x16xf32>
    %304 = arith.negf %303 : vector<4x16xf32>
    %305 = math.exp %304 : vector<4x16xf32>
    %cst_92 = arith.constant 1.000000e+00 : f32
    %306 = vector.broadcast %cst_92 : f32 to vector<4x16xf32>
    %307 = arith.addf %306, %305 : vector<4x16xf32>
    %308 = arith.divf %306, %307 : vector<4x16xf32>
    %309 = vector.extract_strided_slice %300 {offsets = [0, 16], sizes = [4, 16], strides = [1, 1]} : vector<4x48xf32> to vector<4x16xf32>
    %310 = vector.extract_strided_slice %297 {offsets = [0, 16], sizes = [4, 16], strides = [1, 1]} : vector<4x48xf32> to vector<4x16xf32>
    %311 = arith.addf %309, %310 : vector<4x16xf32>
    %312 = arith.negf %311 : vector<4x16xf32>
    %313 = math.exp %312 : vector<4x16xf32>
    %cst_93 = arith.constant 1.000000e+00 : f32
    %314 = vector.broadcast %cst_93 : f32 to vector<4x16xf32>
    %315 = arith.addf %314, %313 : vector<4x16xf32>
    %316 = arith.divf %314, %315 : vector<4x16xf32>
    %317 = vector.extract_strided_slice %300 {offsets = [0, 32], sizes = [4, 16], strides = [1, 1]} : vector<4x48xf32> to vector<4x16xf32>
    %318 = vector.extract_strided_slice %297 {offsets = [0, 32], sizes = [4, 16], strides = [1, 1]} : vector<4x48xf32> to vector<4x16xf32>
    %319 = arith.mulf %308, %318 : vector<4x16xf32>
    %320 = arith.addf %317, %319 : vector<4x16xf32>
    %321 = math.tanh %320 : vector<4x16xf32>
    %cst_94 = arith.constant 1.000000e+00 : f32
    %322 = vector.broadcast %cst_94 : f32 to vector<4x16xf32>
    %323 = arith.subf %322, %316 : vector<4x16xf32>
    %324 = arith.mulf %323, %321 : vector<4x16xf32>
    %325 = arith.mulf %316, %242 : vector<4x16xf32>
    %326 = arith.addf %324, %325 : vector<4x16xf32>
    %327 = arith.index_cast %c3_i32 : i32 to index
    %c0_95 = arith.constant 0 : index
    %c0_96 = arith.constant 0 : index
    %328 = vector.load %arg1[%327, %c0_95, %c0_96] : memref<8x4x1xf32, #tpu.memory_space<vmem>>, vector<1x4x1xf32>
    %329 = vector.shape_cast %328 : vector<1x4x1xf32> to vector<4x1xf32>
    %330 = arith.subf %326, %242 : vector<4x16xf32>
    %331 = vector.broadcast %329 : vector<4x1xf32> to vector<4x16xf32>
    %332 = arith.mulf %331, %330 : vector<4x16xf32>
    %333 = arith.addf %242, %332 : vector<4x16xf32>
    %334 = vector.broadcast %329 : vector<4x1xf32> to vector<4x16xf32>
    %335 = arith.mulf %334, %333 : vector<4x16xf32>
    %336 = arith.index_cast %c3_i32 : i32 to index
    %c0_97 = arith.constant 0 : index
    %c0_98 = arith.constant 0 : index
    %337 = vector.load %arg13[%336, %c0_97, %c0_98] : memref<8x4x16xf32, #tpu.memory_space<vmem>>, vector<1x4x16xf32>
    %338 = vector.shape_cast %337 : vector<1x4x16xf32> to vector<4x16xf32>
    %339 = vector.shape_cast %335 : vector<4x16xf32> to vector<1x4x16xf32>
    tpu.vector_store %arg13[%336, %c0_97, %c0_98], %339 {strides = array<i32>} : memref<8x4x16xf32, #tpu.memory_space<vmem>>, vector<1x4x16xf32>,
    %cst_99 = arith.constant dense<0.000000e+00> : vector<4x48xf32>
    %340 = tpu.matmul %287, %18, %cst_99 {dimension_numbers = #tpu.dot_dimension_numbers<[1], [0], [0], [1], [0, 0, 1, 1], [], []>} : vector<4x16xf32>, vector<16x48xf32>, vector<4x48xf32> -> vector<4x48xf32>
    %341 = vector.broadcast %19 : vector<1x48xf32> to vector<4x48xf32>
    %342 = arith.addf %340, %341 : vector<4x48xf32>
    %343 = arith.index_cast %294 : i32 to index
    %c0_100 = arith.constant 0 : index
    %c0_101 = arith.constant 0 : index
    %344 = vector.load %arg12[%343, %c0_100, %c0_101] : memref<8x4x48xf32, #tpu.memory_space<vmem>>, vector<1x4x48xf32>
    %345 = vector.shape_cast %344 : vector<1x4x48xf32> to vector<4x48xf32>
    %346 = vector.extract_strided_slice %345 {offsets = [0, 0], sizes = [4, 16], strides = [1, 1]} : vector<4x48xf32> to vector<4x16xf32>
    %347 = vector.extract_strided_slice %342 {offsets = [0, 0], sizes = [4, 16], strides = [1, 1]} : vector<4x48xf32> to vector<4x16xf32>
    %348 = arith.addf %346, %347 : vector<4x16xf32>
    %349 = arith.negf %348 : vector<4x16xf32>
    %350 = math.exp %349 : vector<4x16xf32>
    %cst_102 = arith.constant 1.000000e+00 : f32
    %351 = vector.broadcast %cst_102 : f32 to vector<4x16xf32>
    %352 = arith.addf %351, %350 : vector<4x16xf32>
    %353 = arith.divf %351, %352 : vector<4x16xf32>
    %354 = vector.extract_strided_slice %345 {offsets = [0, 16], sizes = [4, 16], strides = [1, 1]} : vector<4x48xf32> to vector<4x16xf32>
    %355 = vector.extract_strided_slice %342 {offsets = [0, 16], sizes = [4, 16], strides = [1, 1]} : vector<4x48xf32> to vector<4x16xf32>
    %356 = arith.addf %354, %355 : vector<4x16xf32>
    %357 = arith.negf %356 : vector<4x16xf32>
    %358 = math.exp %357 : vector<4x16xf32>
    %cst_103 = arith.constant 1.000000e+00 : f32
    %359 = vector.broadcast %cst_103 : f32 to vector<4x16xf32>
    %360 = arith.addf %359, %358 : vector<4x16xf32>
    %361 = arith.divf %359, %360 : vector<4x16xf32>
    %362 = vector.extract_strided_slice %345 {offsets = [0, 32], sizes = [4, 16], strides = [1, 1]} : vector<4x48xf32> to vector<4x16xf32>
    %363 = vector.extract_strided_slice %342 {offsets = [0, 32], sizes = [4, 16], strides = [1, 1]} : vector<4x48xf32> to vector<4x16xf32>
    %364 = arith.mulf %353, %363 : vector<4x16xf32>
    %365 = arith.addf %362, %364 : vector<4x16xf32>
    %366 = math.tanh %365 : vector<4x16xf32>
    %cst_104 = arith.constant 1.000000e+00 : f32
    %367 = vector.broadcast %cst_104 : f32 to vector<4x16xf32>
    %368 = arith.subf %367, %361 : vector<4x16xf32>
    %369 = arith.mulf %368, %366 : vector<4x16xf32>
    %370 = arith.mulf %361, %287 : vector<4x16xf32>
    %371 = arith.addf %369, %370 : vector<4x16xf32>
    %372 = arith.index_cast %294 : i32 to index
    %c0_105 = arith.constant 0 : index
    %c0_106 = arith.constant 0 : index
    %373 = vector.load %arg1[%372, %c0_105, %c0_106] : memref<8x4x1xf32, #tpu.memory_space<vmem>>, vector<1x4x1xf32>
    %374 = vector.shape_cast %373 : vector<1x4x1xf32> to vector<4x1xf32>
    %375 = arith.subf %371, %287 : vector<4x16xf32>
    %376 = vector.broadcast %374 : vector<4x1xf32> to vector<4x16xf32>
    %377 = arith.mulf %376, %375 : vector<4x16xf32>
    %378 = arith.addf %287, %377 : vector<4x16xf32>
    %379 = vector.broadcast %374 : vector<4x1xf32> to vector<4x16xf32>
    %380 = arith.mulf %379, %378 : vector<4x16xf32>
    %381 = arith.index_cast %294 : i32 to index
    %c0_107 = arith.constant 0 : index
    %c0_108 = arith.constant 0 : index
    %382 = vector.load %arg14[%381, %c0_107, %c0_108] : memref<8x4x16xf32, #tpu.memory_space<vmem>>, vector<1x4x16xf32>
    %383 = vector.shape_cast %382 : vector<1x4x16xf32> to vector<4x16xf32>
    %384 = vector.shape_cast %380 : vector<4x16xf32> to vector<1x4x16xf32>
    tpu.vector_store %arg14[%381, %c0_107, %c0_108], %384 {strides = array<i32>} : memref<8x4x16xf32, #tpu.memory_space<vmem>>, vector<1x4x16xf32>,
    %c4_i32 = arith.constant 4 : i32
    %c7_i32_109 = arith.constant 7 : i32
    %385 = arith.subi %c7_i32_109, %c4_i32 : i32
    %cst_110 = arith.constant dense<0.000000e+00> : vector<4x48xf32>
    %386 = tpu.matmul %333, %16, %cst_110 {dimension_numbers = #tpu.dot_dimension_numbers<[1], [0], [0], [1], [0, 0, 1, 1], [], []>} : vector<4x16xf32>, vector<16x48xf32>, vector<4x48xf32> -> vector<4x48xf32>
    %387 = vector.broadcast %17 : vector<1x48xf32> to vector<4x48xf32>
    %388 = arith.addf %386, %387 : vector<4x48xf32>
    %389 = arith.index_cast %c4_i32 : i32 to index
    %c0_111 = arith.constant 0 : index
    %c0_112 = arith.constant 0 : index
    %390 = vector.load %arg11[%389, %c0_111, %c0_112] : memref<8x4x48xf32, #tpu.memory_space<vmem>>, vector<1x4x48xf32>
    %391 = vector.shape_cast %390 : vector<1x4x48xf32> to vector<4x48xf32>
    %392 = vector.extract_strided_slice %391 {offsets = [0, 0], sizes = [4, 16], strides = [1, 1]} : vector<4x48xf32> to vector<4x16xf32>
    %393 = vector.extract_strided_slice %388 {offsets = [0, 0], sizes = [4, 16], strides = [1, 1]} : vector<4x48xf32> to vector<4x16xf32>
    %394 = arith.addf %392, %393 : vector<4x16xf32>
    %395 = arith.negf %394 : vector<4x16xf32>
    %396 = math.exp %395 : vector<4x16xf32>
    %cst_113 = arith.constant 1.000000e+00 : f32
    %397 = vector.broadcast %cst_113 : f32 to vector<4x16xf32>
    %398 = arith.addf %397, %396 : vector<4x16xf32>
    %399 = arith.divf %397, %398 : vector<4x16xf32>
    %400 = vector.extract_strided_slice %391 {offsets = [0, 16], sizes = [4, 16], strides = [1, 1]} : vector<4x48xf32> to vector<4x16xf32>
    %401 = vector.extract_strided_slice %388 {offsets = [0, 16], sizes = [4, 16], strides = [1, 1]} : vector<4x48xf32> to vector<4x16xf32>
    %402 = arith.addf %400, %401 : vector<4x16xf32>
    %403 = arith.negf %402 : vector<4x16xf32>
    %404 = math.exp %403 : vector<4x16xf32>
    %cst_114 = arith.constant 1.000000e+00 : f32
    %405 = vector.broadcast %cst_114 : f32 to vector<4x16xf32>
    %406 = arith.addf %405, %404 : vector<4x16xf32>
    %407 = arith.divf %405, %406 : vector<4x16xf32>
    %408 = vector.extract_strided_slice %391 {offsets = [0, 32], sizes = [4, 16], strides = [1, 1]} : vector<4x48xf32> to vector<4x16xf32>
    %409 = vector.extract_strided_slice %388 {offsets = [0, 32], sizes = [4, 16], strides = [1, 1]} : vector<4x48xf32> to vector<4x16xf32>
    %410 = arith.mulf %399, %409 : vector<4x16xf32>
    %411 = arith.addf %408, %410 : vector<4x16xf32>
    %412 = math.tanh %411 : vector<4x16xf32>
    %cst_115 = arith.constant 1.000000e+00 : f32
    %413 = vector.broadcast %cst_115 : f32 to vector<4x16xf32>
    %414 = arith.subf %413, %407 : vector<4x16xf32>
    %415 = arith.mulf %414, %412 : vector<4x16xf32>
    %416 = arith.mulf %407, %333 : vector<4x16xf32>
    %417 = arith.addf %415, %416 : vector<4x16xf32>
    %418 = arith.index_cast %c4_i32 : i32 to index
    %c0_116 = arith.constant 0 : index
    %c0_117 = arith.constant 0 : index
    %419 = vector.load %arg1[%418, %c0_116, %c0_117] : memref<8x4x1xf32, #tpu.memory_space<vmem>>, vector<1x4x1xf32>
    %420 = vector.shape_cast %419 : vector<1x4x1xf32> to vector<4x1xf32>
    %421 = arith.subf %417, %333 : vector<4x16xf32>
    %422 = vector.broadcast %420 : vector<4x1xf32> to vector<4x16xf32>
    %423 = arith.mulf %422, %421 : vector<4x16xf32>
    %424 = arith.addf %333, %423 : vector<4x16xf32>
    %425 = vector.broadcast %420 : vector<4x1xf32> to vector<4x16xf32>
    %426 = arith.mulf %425, %424 : vector<4x16xf32>
    %427 = arith.index_cast %c4_i32 : i32 to index
    %c0_118 = arith.constant 0 : index
    %c0_119 = arith.constant 0 : index
    %428 = vector.load %arg13[%427, %c0_118, %c0_119] : memref<8x4x16xf32, #tpu.memory_space<vmem>>, vector<1x4x16xf32>
    %429 = vector.shape_cast %428 : vector<1x4x16xf32> to vector<4x16xf32>
    %430 = vector.shape_cast %426 : vector<4x16xf32> to vector<1x4x16xf32>
    tpu.vector_store %arg13[%427, %c0_118, %c0_119], %430 {strides = array<i32>} : memref<8x4x16xf32, #tpu.memory_space<vmem>>, vector<1x4x16xf32>,
    %cst_120 = arith.constant dense<0.000000e+00> : vector<4x48xf32>
    %431 = tpu.matmul %378, %18, %cst_120 {dimension_numbers = #tpu.dot_dimension_numbers<[1], [0], [0], [1], [0, 0, 1, 1], [], []>} : vector<4x16xf32>, vector<16x48xf32>, vector<4x48xf32> -> vector<4x48xf32>
    %432 = vector.broadcast %19 : vector<1x48xf32> to vector<4x48xf32>
    %433 = arith.addf %431, %432 : vector<4x48xf32>
    %434 = arith.index_cast %385 : i32 to index
    %c0_121 = arith.constant 0 : index
    %c0_122 = arith.constant 0 : index
    %435 = vector.load %arg12[%434, %c0_121, %c0_122] : memref<8x4x48xf32, #tpu.memory_space<vmem>>, vector<1x4x48xf32>
    %436 = vector.shape_cast %435 : vector<1x4x48xf32> to vector<4x48xf32>
    %437 = vector.extract_strided_slice %436 {offsets = [0, 0], sizes = [4, 16], strides = [1, 1]} : vector<4x48xf32> to vector<4x16xf32>
    %438 = vector.extract_strided_slice %433 {offsets = [0, 0], sizes = [4, 16], strides = [1, 1]} : vector<4x48xf32> to vector<4x16xf32>
    %439 = arith.addf %437, %438 : vector<4x16xf32>
    %440 = arith.negf %439 : vector<4x16xf32>
    %441 = math.exp %440 : vector<4x16xf32>
    %cst_123 = arith.constant 1.000000e+00 : f32
    %442 = vector.broadcast %cst_123 : f32 to vector<4x16xf32>
    %443 = arith.addf %442, %441 : vector<4x16xf32>
    %444 = arith.divf %442, %443 : vector<4x16xf32>
    %445 = vector.extract_strided_slice %436 {offsets = [0, 16], sizes = [4, 16], strides = [1, 1]} : vector<4x48xf32> to vector<4x16xf32>
    %446 = vector.extract_strided_slice %433 {offsets = [0, 16], sizes = [4, 16], strides = [1, 1]} : vector<4x48xf32> to vector<4x16xf32>
    %447 = arith.addf %445, %446 : vector<4x16xf32>
    %448 = arith.negf %447 : vector<4x16xf32>
    %449 = math.exp %448 : vector<4x16xf32>
    %cst_124 = arith.constant 1.000000e+00 : f32
    %450 = vector.broadcast %cst_124 : f32 to vector<4x16xf32>
    %451 = arith.addf %450, %449 : vector<4x16xf32>
    %452 = arith.divf %450, %451 : vector<4x16xf32>
    %453 = vector.extract_strided_slice %436 {offsets = [0, 32], sizes = [4, 16], strides = [1, 1]} : vector<4x48xf32> to vector<4x16xf32>
    %454 = vector.extract_strided_slice %433 {offsets = [0, 32], sizes = [4, 16], strides = [1, 1]} : vector<4x48xf32> to vector<4x16xf32>
    %455 = arith.mulf %444, %454 : vector<4x16xf32>
    %456 = arith.addf %453, %455 : vector<4x16xf32>
    %457 = math.tanh %456 : vector<4x16xf32>
    %cst_125 = arith.constant 1.000000e+00 : f32
    %458 = vector.broadcast %cst_125 : f32 to vector<4x16xf32>
    %459 = arith.subf %458, %452 : vector<4x16xf32>
    %460 = arith.mulf %459, %457 : vector<4x16xf32>
    %461 = arith.mulf %452, %378 : vector<4x16xf32>
    %462 = arith.addf %460, %461 : vector<4x16xf32>
    %463 = arith.index_cast %385 : i32 to index
    %c0_126 = arith.constant 0 : index
    %c0_127 = arith.constant 0 : index
    %464 = vector.load %arg1[%463, %c0_126, %c0_127] : memref<8x4x1xf32, #tpu.memory_space<vmem>>, vector<1x4x1xf32>
    %465 = vector.shape_cast %464 : vector<1x4x1xf32> to vector<4x1xf32>
    %466 = arith.subf %462, %378 : vector<4x16xf32>
    %467 = vector.broadcast %465 : vector<4x1xf32> to vector<4x16xf32>
    %468 = arith.mulf %467, %466 : vector<4x16xf32>
    %469 = arith.addf %378, %468 : vector<4x16xf32>
    %470 = vector.broadcast %465 : vector<4x1xf32> to vector<4x16xf32>
    %471 = arith.mulf %470, %469 : vector<4x16xf32>
    %472 = arith.index_cast %385 : i32 to index
    %c0_128 = arith.constant 0 : index
    %c0_129 = arith.constant 0 : index
    %473 = vector.load %arg14[%472, %c0_128, %c0_129] : memref<8x4x16xf32, #tpu.memory_space<vmem>>, vector<1x4x16xf32>
    %474 = vector.shape_cast %473 : vector<1x4x16xf32> to vector<4x16xf32>
    %475 = vector.shape_cast %471 : vector<4x16xf32> to vector<1x4x16xf32>
    tpu.vector_store %arg14[%472, %c0_128, %c0_129], %475 {strides = array<i32>} : memref<8x4x16xf32, #tpu.memory_space<vmem>>, vector<1x4x16xf32>,
    %c5_i32 = arith.constant 5 : i32
    %c7_i32_130 = arith.constant 7 : i32
    %476 = arith.subi %c7_i32_130, %c5_i32 : i32
    %cst_131 = arith.constant dense<0.000000e+00> : vector<4x48xf32>
    %477 = tpu.matmul %424, %16, %cst_131 {dimension_numbers = #tpu.dot_dimension_numbers<[1], [0], [0], [1], [0, 0, 1, 1], [], []>} : vector<4x16xf32>, vector<16x48xf32>, vector<4x48xf32> -> vector<4x48xf32>
    %478 = vector.broadcast %17 : vector<1x48xf32> to vector<4x48xf32>
    %479 = arith.addf %477, %478 : vector<4x48xf32>
    %480 = arith.index_cast %c5_i32 : i32 to index
    %c0_132 = arith.constant 0 : index
    %c0_133 = arith.constant 0 : index
    %481 = vector.load %arg11[%480, %c0_132, %c0_133] : memref<8x4x48xf32, #tpu.memory_space<vmem>>, vector<1x4x48xf32>
    %482 = vector.shape_cast %481 : vector<1x4x48xf32> to vector<4x48xf32>
    %483 = vector.extract_strided_slice %482 {offsets = [0, 0], sizes = [4, 16], strides = [1, 1]} : vector<4x48xf32> to vector<4x16xf32>
    %484 = vector.extract_strided_slice %479 {offsets = [0, 0], sizes = [4, 16], strides = [1, 1]} : vector<4x48xf32> to vector<4x16xf32>
    %485 = arith.addf %483, %484 : vector<4x16xf32>
    %486 = arith.negf %485 : vector<4x16xf32>
    %487 = math.exp %486 : vector<4x16xf32>
    %cst_134 = arith.constant 1.000000e+00 : f32
    %488 = vector.broadcast %cst_134 : f32 to vector<4x16xf32>
    %489 = arith.addf %488, %487 : vector<4x16xf32>
    %490 = arith.divf %488, %489 : vector<4x16xf32>
    %491 = vector.extract_strided_slice %482 {offsets = [0, 16], sizes = [4, 16], strides = [1, 1]} : vector<4x48xf32> to vector<4x16xf32>
    %492 = vector.extract_strided_slice %479 {offsets = [0, 16], sizes = [4, 16], strides = [1, 1]} : vector<4x48xf32> to vector<4x16xf32>
    %493 = arith.addf %491, %492 : vector<4x16xf32>
    %494 = arith.negf %493 : vector<4x16xf32>
    %495 = math.exp %494 : vector<4x16xf32>
    %cst_135 = arith.constant 1.000000e+00 : f32
    %496 = vector.broadcast %cst_135 : f32 to vector<4x16xf32>
    %497 = arith.addf %496, %495 : vector<4x16xf32>
    %498 = arith.divf %496, %497 : vector<4x16xf32>
    %499 = vector.extract_strided_slice %482 {offsets = [0, 32], sizes = [4, 16], strides = [1, 1]} : vector<4x48xf32> to vector<4x16xf32>
    %500 = vector.extract_strided_slice %479 {offsets = [0, 32], sizes = [4, 16], strides = [1, 1]} : vector<4x48xf32> to vector<4x16xf32>
    %501 = arith.mulf %490, %500 : vector<4x16xf32>
    %502 = arith.addf %499, %501 : vector<4x16xf32>
    %503 = math.tanh %502 : vector<4x16xf32>
    %cst_136 = arith.constant 1.000000e+00 : f32
    %504 = vector.broadcast %cst_136 : f32 to vector<4x16xf32>
    %505 = arith.subf %504, %498 : vector<4x16xf32>
    %506 = arith.mulf %505, %503 : vector<4x16xf32>
    %507 = arith.mulf %498, %424 : vector<4x16xf32>
    %508 = arith.addf %506, %507 : vector<4x16xf32>
    %509 = arith.index_cast %c5_i32 : i32 to index
    %c0_137 = arith.constant 0 : index
    %c0_138 = arith.constant 0 : index
    %510 = vector.load %arg1[%509, %c0_137, %c0_138] : memref<8x4x1xf32, #tpu.memory_space<vmem>>, vector<1x4x1xf32>
    %511 = vector.shape_cast %510 : vector<1x4x1xf32> to vector<4x1xf32>
    %512 = arith.subf %508, %424 : vector<4x16xf32>
    %513 = vector.broadcast %511 : vector<4x1xf32> to vector<4x16xf32>
    %514 = arith.mulf %513, %512 : vector<4x16xf32>
    %515 = arith.addf %424, %514 : vector<4x16xf32>
    %516 = vector.broadcast %511 : vector<4x1xf32> to vector<4x16xf32>
    %517 = arith.mulf %516, %515 : vector<4x16xf32>
    %518 = arith.index_cast %c5_i32 : i32 to index
    %c0_139 = arith.constant 0 : index
    %c0_140 = arith.constant 0 : index
    %519 = vector.load %arg13[%518, %c0_139, %c0_140] : memref<8x4x16xf32, #tpu.memory_space<vmem>>, vector<1x4x16xf32>
    %520 = vector.shape_cast %519 : vector<1x4x16xf32> to vector<4x16xf32>
    %521 = vector.shape_cast %517 : vector<4x16xf32> to vector<1x4x16xf32>
    tpu.vector_store %arg13[%518, %c0_139, %c0_140], %521 {strides = array<i32>} : memref<8x4x16xf32, #tpu.memory_space<vmem>>, vector<1x4x16xf32>,
    %cst_141 = arith.constant dense<0.000000e+00> : vector<4x48xf32>
    %522 = tpu.matmul %469, %18, %cst_141 {dimension_numbers = #tpu.dot_dimension_numbers<[1], [0], [0], [1], [0, 0, 1, 1], [], []>} : vector<4x16xf32>, vector<16x48xf32>, vector<4x48xf32> -> vector<4x48xf32>
    %523 = vector.broadcast %19 : vector<1x48xf32> to vector<4x48xf32>
    %524 = arith.addf %522, %523 : vector<4x48xf32>
    %525 = arith.index_cast %476 : i32 to index
    %c0_142 = arith.constant 0 : index
    %c0_143 = arith.constant 0 : index
    %526 = vector.load %arg12[%525, %c0_142, %c0_143] : memref<8x4x48xf32, #tpu.memory_space<vmem>>, vector<1x4x48xf32>
    %527 = vector.shape_cast %526 : vector<1x4x48xf32> to vector<4x48xf32>
    %528 = vector.extract_strided_slice %527 {offsets = [0, 0], sizes = [4, 16], strides = [1, 1]} : vector<4x48xf32> to vector<4x16xf32>
    %529 = vector.extract_strided_slice %524 {offsets = [0, 0], sizes = [4, 16], strides = [1, 1]} : vector<4x48xf32> to vector<4x16xf32>
    %530 = arith.addf %528, %529 : vector<4x16xf32>
    %531 = arith.negf %530 : vector<4x16xf32>
    %532 = math.exp %531 : vector<4x16xf32>
    %cst_144 = arith.constant 1.000000e+00 : f32
    %533 = vector.broadcast %cst_144 : f32 to vector<4x16xf32>
    %534 = arith.addf %533, %532 : vector<4x16xf32>
    %535 = arith.divf %533, %534 : vector<4x16xf32>
    %536 = vector.extract_strided_slice %527 {offsets = [0, 16], sizes = [4, 16], strides = [1, 1]} : vector<4x48xf32> to vector<4x16xf32>
    %537 = vector.extract_strided_slice %524 {offsets = [0, 16], sizes = [4, 16], strides = [1, 1]} : vector<4x48xf32> to vector<4x16xf32>
    %538 = arith.addf %536, %537 : vector<4x16xf32>
    %539 = arith.negf %538 : vector<4x16xf32>
    %540 = math.exp %539 : vector<4x16xf32>
    %cst_145 = arith.constant 1.000000e+00 : f32
    %541 = vector.broadcast %cst_145 : f32 to vector<4x16xf32>
    %542 = arith.addf %541, %540 : vector<4x16xf32>
    %543 = arith.divf %541, %542 : vector<4x16xf32>
    %544 = vector.extract_strided_slice %527 {offsets = [0, 32], sizes = [4, 16], strides = [1, 1]} : vector<4x48xf32> to vector<4x16xf32>
    %545 = vector.extract_strided_slice %524 {offsets = [0, 32], sizes = [4, 16], strides = [1, 1]} : vector<4x48xf32> to vector<4x16xf32>
    %546 = arith.mulf %535, %545 : vector<4x16xf32>
    %547 = arith.addf %544, %546 : vector<4x16xf32>
    %548 = math.tanh %547 : vector<4x16xf32>
    %cst_146 = arith.constant 1.000000e+00 : f32
    %549 = vector.broadcast %cst_146 : f32 to vector<4x16xf32>
    %550 = arith.subf %549, %543 : vector<4x16xf32>
    %551 = arith.mulf %550, %548 : vector<4x16xf32>
    %552 = arith.mulf %543, %469 : vector<4x16xf32>
    %553 = arith.addf %551, %552 : vector<4x16xf32>
    %554 = arith.index_cast %476 : i32 to index
    %c0_147 = arith.constant 0 : index
    %c0_148 = arith.constant 0 : index
    %555 = vector.load %arg1[%554, %c0_147, %c0_148] : memref<8x4x1xf32, #tpu.memory_space<vmem>>, vector<1x4x1xf32>
    %556 = vector.shape_cast %555 : vector<1x4x1xf32> to vector<4x1xf32>
    %557 = arith.subf %553, %469 : vector<4x16xf32>
    %558 = vector.broadcast %556 : vector<4x1xf32> to vector<4x16xf32>
    %559 = arith.mulf %558, %557 : vector<4x16xf32>
    %560 = arith.addf %469, %559 : vector<4x16xf32>
    %561 = vector.broadcast %556 : vector<4x1xf32> to vector<4x16xf32>
    %562 = arith.mulf %561, %560 : vector<4x16xf32>
    %563 = arith.index_cast %476 : i32 to index
    %c0_149 = arith.constant 0 : index
    %c0_150 = arith.constant 0 : index
    %564 = vector.load %arg14[%563, %c0_149, %c0_150] : memref<8x4x16xf32, #tpu.memory_space<vmem>>, vector<1x4x16xf32>
    %565 = vector.shape_cast %564 : vector<1x4x16xf32> to vector<4x16xf32>
    %566 = vector.shape_cast %562 : vector<4x16xf32> to vector<1x4x16xf32>
    tpu.vector_store %arg14[%563, %c0_149, %c0_150], %566 {strides = array<i32>} : memref<8x4x16xf32, #tpu.memory_space<vmem>>, vector<1x4x16xf32>,
    %c6_i32 = arith.constant 6 : i32
    %c7_i32_151 = arith.constant 7 : i32
    %567 = arith.subi %c7_i32_151, %c6_i32 : i32
    %cst_152 = arith.constant dense<0.000000e+00> : vector<4x48xf32>
    %568 = tpu.matmul %515, %16, %cst_152 {dimension_numbers = #tpu.dot_dimension_numbers<[1], [0], [0], [1], [0, 0, 1, 1], [], []>} : vector<4x16xf32>, vector<16x48xf32>, vector<4x48xf32> -> vector<4x48xf32>
    %569 = vector.broadcast %17 : vector<1x48xf32> to vector<4x48xf32>
    %570 = arith.addf %568, %569 : vector<4x48xf32>
    %571 = arith.index_cast %c6_i32 : i32 to index
    %c0_153 = arith.constant 0 : index
    %c0_154 = arith.constant 0 : index
    %572 = vector.load %arg11[%571, %c0_153, %c0_154] : memref<8x4x48xf32, #tpu.memory_space<vmem>>, vector<1x4x48xf32>
    %573 = vector.shape_cast %572 : vector<1x4x48xf32> to vector<4x48xf32>
    %574 = vector.extract_strided_slice %573 {offsets = [0, 0], sizes = [4, 16], strides = [1, 1]} : vector<4x48xf32> to vector<4x16xf32>
    %575 = vector.extract_strided_slice %570 {offsets = [0, 0], sizes = [4, 16], strides = [1, 1]} : vector<4x48xf32> to vector<4x16xf32>
    %576 = arith.addf %574, %575 : vector<4x16xf32>
    %577 = arith.negf %576 : vector<4x16xf32>
    %578 = math.exp %577 : vector<4x16xf32>
    %cst_155 = arith.constant 1.000000e+00 : f32
    %579 = vector.broadcast %cst_155 : f32 to vector<4x16xf32>
    %580 = arith.addf %579, %578 : vector<4x16xf32>
    %581 = arith.divf %579, %580 : vector<4x16xf32>
    %582 = vector.extract_strided_slice %573 {offsets = [0, 16], sizes = [4, 16], strides = [1, 1]} : vector<4x48xf32> to vector<4x16xf32>
    %583 = vector.extract_strided_slice %570 {offsets = [0, 16], sizes = [4, 16], strides = [1, 1]} : vector<4x48xf32> to vector<4x16xf32>
    %584 = arith.addf %582, %583 : vector<4x16xf32>
    %585 = arith.negf %584 : vector<4x16xf32>
    %586 = math.exp %585 : vector<4x16xf32>
    %cst_156 = arith.constant 1.000000e+00 : f32
    %587 = vector.broadcast %cst_156 : f32 to vector<4x16xf32>
    %588 = arith.addf %587, %586 : vector<4x16xf32>
    %589 = arith.divf %587, %588 : vector<4x16xf32>
    %590 = vector.extract_strided_slice %573 {offsets = [0, 32], sizes = [4, 16], strides = [1, 1]} : vector<4x48xf32> to vector<4x16xf32>
    %591 = vector.extract_strided_slice %570 {offsets = [0, 32], sizes = [4, 16], strides = [1, 1]} : vector<4x48xf32> to vector<4x16xf32>
    %592 = arith.mulf %581, %591 : vector<4x16xf32>
    %593 = arith.addf %590, %592 : vector<4x16xf32>
    %594 = math.tanh %593 : vector<4x16xf32>
    %cst_157 = arith.constant 1.000000e+00 : f32
    %595 = vector.broadcast %cst_157 : f32 to vector<4x16xf32>
    %596 = arith.subf %595, %589 : vector<4x16xf32>
    %597 = arith.mulf %596, %594 : vector<4x16xf32>
    %598 = arith.mulf %589, %515 : vector<4x16xf32>
    %599 = arith.addf %597, %598 : vector<4x16xf32>
    %600 = arith.index_cast %c6_i32 : i32 to index
    %c0_158 = arith.constant 0 : index
    %c0_159 = arith.constant 0 : index
    %601 = vector.load %arg1[%600, %c0_158, %c0_159] : memref<8x4x1xf32, #tpu.memory_space<vmem>>, vector<1x4x1xf32>
    %602 = vector.shape_cast %601 : vector<1x4x1xf32> to vector<4x1xf32>
    %603 = arith.subf %599, %515 : vector<4x16xf32>
    %604 = vector.broadcast %602 : vector<4x1xf32> to vector<4x16xf32>
    %605 = arith.mulf %604, %603 : vector<4x16xf32>
    %606 = arith.addf %515, %605 : vector<4x16xf32>
    %607 = vector.broadcast %602 : vector<4x1xf32> to vector<4x16xf32>
    %608 = arith.mulf %607, %606 : vector<4x16xf32>
    %609 = arith.index_cast %c6_i32 : i32 to index
    %c0_160 = arith.constant 0 : index
    %c0_161 = arith.constant 0 : index
    %610 = vector.load %arg13[%609, %c0_160, %c0_161] : memref<8x4x16xf32, #tpu.memory_space<vmem>>, vector<1x4x16xf32>
    %611 = vector.shape_cast %610 : vector<1x4x16xf32> to vector<4x16xf32>
    %612 = vector.shape_cast %608 : vector<4x16xf32> to vector<1x4x16xf32>
    tpu.vector_store %arg13[%609, %c0_160, %c0_161], %612 {strides = array<i32>} : memref<8x4x16xf32, #tpu.memory_space<vmem>>, vector<1x4x16xf32>,
    %cst_162 = arith.constant dense<0.000000e+00> : vector<4x48xf32>
    %613 = tpu.matmul %560, %18, %cst_162 {dimension_numbers = #tpu.dot_dimension_numbers<[1], [0], [0], [1], [0, 0, 1, 1], [], []>} : vector<4x16xf32>, vector<16x48xf32>, vector<4x48xf32> -> vector<4x48xf32>
    %614 = vector.broadcast %19 : vector<1x48xf32> to vector<4x48xf32>
    %615 = arith.addf %613, %614 : vector<4x48xf32>
    %616 = arith.index_cast %567 : i32 to index
    %c0_163 = arith.constant 0 : index
    %c0_164 = arith.constant 0 : index
    %617 = vector.load %arg12[%616, %c0_163, %c0_164] : memref<8x4x48xf32, #tpu.memory_space<vmem>>, vector<1x4x48xf32>
    %618 = vector.shape_cast %617 : vector<1x4x48xf32> to vector<4x48xf32>
    %619 = vector.extract_strided_slice %618 {offsets = [0, 0], sizes = [4, 16], strides = [1, 1]} : vector<4x48xf32> to vector<4x16xf32>
    %620 = vector.extract_strided_slice %615 {offsets = [0, 0], sizes = [4, 16], strides = [1, 1]} : vector<4x48xf32> to vector<4x16xf32>
    %621 = arith.addf %619, %620 : vector<4x16xf32>
    %622 = arith.negf %621 : vector<4x16xf32>
    %623 = math.exp %622 : vector<4x16xf32>
    %cst_165 = arith.constant 1.000000e+00 : f32
    %624 = vector.broadcast %cst_165 : f32 to vector<4x16xf32>
    %625 = arith.addf %624, %623 : vector<4x16xf32>
    %626 = arith.divf %624, %625 : vector<4x16xf32>
    %627 = vector.extract_strided_slice %618 {offsets = [0, 16], sizes = [4, 16], strides = [1, 1]} : vector<4x48xf32> to vector<4x16xf32>
    %628 = vector.extract_strided_slice %615 {offsets = [0, 16], sizes = [4, 16], strides = [1, 1]} : vector<4x48xf32> to vector<4x16xf32>
    %629 = arith.addf %627, %628 : vector<4x16xf32>
    %630 = arith.negf %629 : vector<4x16xf32>
    %631 = math.exp %630 : vector<4x16xf32>
    %cst_166 = arith.constant 1.000000e+00 : f32
    %632 = vector.broadcast %cst_166 : f32 to vector<4x16xf32>
    %633 = arith.addf %632, %631 : vector<4x16xf32>
    %634 = arith.divf %632, %633 : vector<4x16xf32>
    %635 = vector.extract_strided_slice %618 {offsets = [0, 32], sizes = [4, 16], strides = [1, 1]} : vector<4x48xf32> to vector<4x16xf32>
    %636 = vector.extract_strided_slice %615 {offsets = [0, 32], sizes = [4, 16], strides = [1, 1]} : vector<4x48xf32> to vector<4x16xf32>
    %637 = arith.mulf %626, %636 : vector<4x16xf32>
    %638 = arith.addf %635, %637 : vector<4x16xf32>
    %639 = math.tanh %638 : vector<4x16xf32>
    %cst_167 = arith.constant 1.000000e+00 : f32
    %640 = vector.broadcast %cst_167 : f32 to vector<4x16xf32>
    %641 = arith.subf %640, %634 : vector<4x16xf32>
    %642 = arith.mulf %641, %639 : vector<4x16xf32>
    %643 = arith.mulf %634, %560 : vector<4x16xf32>
    %644 = arith.addf %642, %643 : vector<4x16xf32>
    %645 = arith.index_cast %567 : i32 to index
    %c0_168 = arith.constant 0 : index
    %c0_169 = arith.constant 0 : index
    %646 = vector.load %arg1[%645, %c0_168, %c0_169] : memref<8x4x1xf32, #tpu.memory_space<vmem>>, vector<1x4x1xf32>
    %647 = vector.shape_cast %646 : vector<1x4x1xf32> to vector<4x1xf32>
    %648 = arith.subf %644, %560 : vector<4x16xf32>
    %649 = vector.broadcast %647 : vector<4x1xf32> to vector<4x16xf32>
    %650 = arith.mulf %649, %648 : vector<4x16xf32>
    %651 = arith.addf %560, %650 : vector<4x16xf32>
    %652 = vector.broadcast %647 : vector<4x1xf32> to vector<4x16xf32>
    %653 = arith.mulf %652, %651 : vector<4x16xf32>
    %654 = arith.index_cast %567 : i32 to index
    %c0_170 = arith.constant 0 : index
    %c0_171 = arith.constant 0 : index
    %655 = vector.load %arg14[%654, %c0_170, %c0_171] : memref<8x4x16xf32, #tpu.memory_space<vmem>>, vector<1x4x16xf32>
    %656 = vector.shape_cast %655 : vector<1x4x16xf32> to vector<4x16xf32>
    %657 = vector.shape_cast %653 : vector<4x16xf32> to vector<1x4x16xf32>
    tpu.vector_store %arg14[%654, %c0_170, %c0_171], %657 {strides = array<i32>} : memref<8x4x16xf32, #tpu.memory_space<vmem>>, vector<1x4x16xf32>,
    %c7_i32_172 = arith.constant 7 : i32
    %c7_i32_173 = arith.constant 7 : i32
    %658 = arith.subi %c7_i32_173, %c7_i32_172 : i32
    %cst_174 = arith.constant dense<0.000000e+00> : vector<4x48xf32>
    %659 = tpu.matmul %606, %16, %cst_174 {dimension_numbers = #tpu.dot_dimension_numbers<[1], [0], [0], [1], [0, 0, 1, 1], [], []>} : vector<4x16xf32>, vector<16x48xf32>, vector<4x48xf32> -> vector<4x48xf32>
    %660 = vector.broadcast %17 : vector<1x48xf32> to vector<4x48xf32>
    %661 = arith.addf %659, %660 : vector<4x48xf32>
    %662 = arith.index_cast %c7_i32_172 : i32 to index
    %c0_175 = arith.constant 0 : index
    %c0_176 = arith.constant 0 : index
    %663 = vector.load %arg11[%662, %c0_175, %c0_176] : memref<8x4x48xf32, #tpu.memory_space<vmem>>, vector<1x4x48xf32>
    %664 = vector.shape_cast %663 : vector<1x4x48xf32> to vector<4x48xf32>
    %665 = vector.extract_strided_slice %664 {offsets = [0, 0], sizes = [4, 16], strides = [1, 1]} : vector<4x48xf32> to vector<4x16xf32>
    %666 = vector.extract_strided_slice %661 {offsets = [0, 0], sizes = [4, 16], strides = [1, 1]} : vector<4x48xf32> to vector<4x16xf32>
    %667 = arith.addf %665, %666 : vector<4x16xf32>
    %668 = arith.negf %667 : vector<4x16xf32>
    %669 = math.exp %668 : vector<4x16xf32>
    %cst_177 = arith.constant 1.000000e+00 : f32
    %670 = vector.broadcast %cst_177 : f32 to vector<4x16xf32>
    %671 = arith.addf %670, %669 : vector<4x16xf32>
    %672 = arith.divf %670, %671 : vector<4x16xf32>
    %673 = vector.extract_strided_slice %664 {offsets = [0, 16], sizes = [4, 16], strides = [1, 1]} : vector<4x48xf32> to vector<4x16xf32>
    %674 = vector.extract_strided_slice %661 {offsets = [0, 16], sizes = [4, 16], strides = [1, 1]} : vector<4x48xf32> to vector<4x16xf32>
    %675 = arith.addf %673, %674 : vector<4x16xf32>
    %676 = arith.negf %675 : vector<4x16xf32>
    %677 = math.exp %676 : vector<4x16xf32>
    %cst_178 = arith.constant 1.000000e+00 : f32
    %678 = vector.broadcast %cst_178 : f32 to vector<4x16xf32>
    %679 = arith.addf %678, %677 : vector<4x16xf32>
    %680 = arith.divf %678, %679 : vector<4x16xf32>
    %681 = vector.extract_strided_slice %664 {offsets = [0, 32], sizes = [4, 16], strides = [1, 1]} : vector<4x48xf32> to vector<4x16xf32>
    %682 = vector.extract_strided_slice %661 {offsets = [0, 32], sizes = [4, 16], strides = [1, 1]} : vector<4x48xf32> to vector<4x16xf32>
    %683 = arith.mulf %672, %682 : vector<4x16xf32>
    %684 = arith.addf %681, %683 : vector<4x16xf32>
    %685 = math.tanh %684 : vector<4x16xf32>
    %cst_179 = arith.constant 1.000000e+00 : f32
    %686 = vector.broadcast %cst_179 : f32 to vector<4x16xf32>
    %687 = arith.subf %686, %680 : vector<4x16xf32>
    %688 = arith.mulf %687, %685 : vector<4x16xf32>
    %689 = arith.mulf %680, %606 : vector<4x16xf32>
    %690 = arith.addf %688, %689 : vector<4x16xf32>
    %691 = arith.index_cast %c7_i32_172 : i32 to index
    %c0_180 = arith.constant 0 : index
    %c0_181 = arith.constant 0 : index
    %692 = vector.load %arg1[%691, %c0_180, %c0_181] : memref<8x4x1xf32, #tpu.memory_space<vmem>>, vector<1x4x1xf32>
    %693 = vector.shape_cast %692 : vector<1x4x1xf32> to vector<4x1xf32>
    %694 = arith.subf %690, %606 : vector<4x16xf32>
    %695 = vector.broadcast %693 : vector<4x1xf32> to vector<4x16xf32>
    %696 = arith.mulf %695, %694 : vector<4x16xf32>
    %697 = arith.addf %606, %696 : vector<4x16xf32>
    %698 = vector.broadcast %693 : vector<4x1xf32> to vector<4x16xf32>
    %699 = arith.mulf %698, %697 : vector<4x16xf32>
    %700 = arith.index_cast %c7_i32_172 : i32 to index
    %c0_182 = arith.constant 0 : index
    %c0_183 = arith.constant 0 : index
    %701 = vector.load %arg13[%700, %c0_182, %c0_183] : memref<8x4x16xf32, #tpu.memory_space<vmem>>, vector<1x4x16xf32>
    %702 = vector.shape_cast %701 : vector<1x4x16xf32> to vector<4x16xf32>
    %703 = vector.shape_cast %699 : vector<4x16xf32> to vector<1x4x16xf32>
    tpu.vector_store %arg13[%700, %c0_182, %c0_183], %703 {strides = array<i32>} : memref<8x4x16xf32, #tpu.memory_space<vmem>>, vector<1x4x16xf32>,
    %cst_184 = arith.constant dense<0.000000e+00> : vector<4x48xf32>
    %704 = tpu.matmul %651, %18, %cst_184 {dimension_numbers = #tpu.dot_dimension_numbers<[1], [0], [0], [1], [0, 0, 1, 1], [], []>} : vector<4x16xf32>, vector<16x48xf32>, vector<4x48xf32> -> vector<4x48xf32>
    %705 = vector.broadcast %19 : vector<1x48xf32> to vector<4x48xf32>
    %706 = arith.addf %704, %705 : vector<4x48xf32>
    %707 = arith.index_cast %658 : i32 to index
    %c0_185 = arith.constant 0 : index
    %c0_186 = arith.constant 0 : index
    %708 = vector.load %arg12[%707, %c0_185, %c0_186] : memref<8x4x48xf32, #tpu.memory_space<vmem>>, vector<1x4x48xf32>
    %709 = vector.shape_cast %708 : vector<1x4x48xf32> to vector<4x48xf32>
    %710 = vector.extract_strided_slice %709 {offsets = [0, 0], sizes = [4, 16], strides = [1, 1]} : vector<4x48xf32> to vector<4x16xf32>
    %711 = vector.extract_strided_slice %706 {offsets = [0, 0], sizes = [4, 16], strides = [1, 1]} : vector<4x48xf32> to vector<4x16xf32>
    %712 = arith.addf %710, %711 : vector<4x16xf32>
    %713 = arith.negf %712 : vector<4x16xf32>
    %714 = math.exp %713 : vector<4x16xf32>
    %cst_187 = arith.constant 1.000000e+00 : f32
    %715 = vector.broadcast %cst_187 : f32 to vector<4x16xf32>
    %716 = arith.addf %715, %714 : vector<4x16xf32>
    %717 = arith.divf %715, %716 : vector<4x16xf32>
    %718 = vector.extract_strided_slice %709 {offsets = [0, 16], sizes = [4, 16], strides = [1, 1]} : vector<4x48xf32> to vector<4x16xf32>
    %719 = vector.extract_strided_slice %706 {offsets = [0, 16], sizes = [4, 16], strides = [1, 1]} : vector<4x48xf32> to vector<4x16xf32>
    %720 = arith.addf %718, %719 : vector<4x16xf32>
    %721 = arith.negf %720 : vector<4x16xf32>
    %722 = math.exp %721 : vector<4x16xf32>
    %cst_188 = arith.constant 1.000000e+00 : f32
    %723 = vector.broadcast %cst_188 : f32 to vector<4x16xf32>
    %724 = arith.addf %723, %722 : vector<4x16xf32>
    %725 = arith.divf %723, %724 : vector<4x16xf32>
    %726 = vector.extract_strided_slice %709 {offsets = [0, 32], sizes = [4, 16], strides = [1, 1]} : vector<4x48xf32> to vector<4x16xf32>
    %727 = vector.extract_strided_slice %706 {offsets = [0, 32], sizes = [4, 16], strides = [1, 1]} : vector<4x48xf32> to vector<4x16xf32>
    %728 = arith.mulf %717, %727 : vector<4x16xf32>
    %729 = arith.addf %726, %728 : vector<4x16xf32>
    %730 = math.tanh %729 : vector<4x16xf32>
    %cst_189 = arith.constant 1.000000e+00 : f32
    %731 = vector.broadcast %cst_189 : f32 to vector<4x16xf32>
    %732 = arith.subf %731, %725 : vector<4x16xf32>
    %733 = arith.mulf %732, %730 : vector<4x16xf32>
    %734 = arith.mulf %725, %651 : vector<4x16xf32>
    %735 = arith.addf %733, %734 : vector<4x16xf32>
    %736 = arith.index_cast %658 : i32 to index
    %c0_190 = arith.constant 0 : index
    %c0_191 = arith.constant 0 : index
    %737 = vector.load %arg1[%736, %c0_190, %c0_191] : memref<8x4x1xf32, #tpu.memory_space<vmem>>, vector<1x4x1xf32>
    %738 = vector.shape_cast %737 : vector<1x4x1xf32> to vector<4x1xf32>
    %739 = arith.subf %735, %651 : vector<4x16xf32>
    %740 = vector.broadcast %738 : vector<4x1xf32> to vector<4x16xf32>
    %741 = arith.mulf %740, %739 : vector<4x16xf32>
    %742 = arith.addf %651, %741 : vector<4x16xf32>
    %743 = vector.broadcast %738 : vector<4x1xf32> to vector<4x16xf32>
    %744 = arith.mulf %743, %742 : vector<4x16xf32>
    %745 = arith.index_cast %658 : i32 to index
    %c0_192 = arith.constant 0 : index
    %c0_193 = arith.constant 0 : index
    %746 = vector.load %arg14[%745, %c0_192, %c0_193] : memref<8x4x16xf32, #tpu.memory_space<vmem>>, vector<1x4x16xf32>
    %747 = vector.shape_cast %746 : vector<1x4x16xf32> to vector<4x16xf32>
    %748 = vector.shape_cast %744 : vector<4x16xf32> to vector<1x4x16xf32>
    tpu.vector_store %arg14[%745, %c0_192, %c0_193], %748 {strides = array<i32>} : memref<8x4x16xf32, #tpu.memory_space<vmem>>, vector<1x4x16xf32>,
    %c8_i32 = arith.constant 8 : i32
    %c0_194 = arith.constant 0 : index
    %c0_195 = arith.constant 0 : index
    %c0_196 = arith.constant 0 : index
    %749 = vector.load %arg13[%c0_194, %c0_195, %c0_196] : memref<8x4x16xf32, #tpu.memory_space<vmem>>, vector<8x4x16xf32>
    %c0_197 = arith.constant 0 : index
    %c0_198 = arith.constant 0 : index
    %c0_199 = arith.constant 0 : index
    %750 = vector.load %arg14[%c0_197, %c0_198, %c0_199] : memref<8x4x16xf32, #tpu.memory_space<vmem>>, vector<8x4x16xf32>
    %751 = tpu.concatenate %749, %750 in 2 : vector<8x4x16xf32>, vector<8x4x16xf32> -> vector<8x4x32xf32>
    %c0_200 = arith.constant 0 : index
    %c0_201 = arith.constant 0 : index
    %c0_202 = arith.constant 0 : index
    %752 = vector.load %arg10[%c0_200, %c0_201, %c0_202] : memref<8x4x32xf32, #tpu.memory_space<vmem>>, vector<8x4x32xf32>
    tpu.vector_store %arg10[%c0_200, %c0_201, %c0_202], %751 {strides = array<i32>} : memref<8x4x32xf32, #tpu.memory_space<vmem>>, vector<8x4x32xf32>,
    return
  }
}

</mosaic_0001>

<llo_original>
// kernel: tpu_custom_call.1
$region0: #{tpu_custom_call.1}
  #allocation0 [shape = 'u32[]', space=smem, size = 0x4, offset = 0x4, fixed_abs, tag = 'smem constant byte address 0x4 - core index']
  #allocation1 [shape = 'u32[144,128]{1,0:T(1,128)}', space=vmem, size = 0x12000, scoped, tag = 'internal scratch']
  #allocation2 [shape = 'f32[8,4,48]{2,1,0:T(4,128)}', space=vmem, size = 0x4000, scoped, tag = 'scratch operand']
  #allocation3 [shape = 'f32[8,4,48]{2,1,0:T(4,128)}', space=vmem, size = 0x4000, scoped, tag = 'scratch operand']
  #allocation4 [shape = 'f32[8,4,16]{2,1,0:T(4,128)}', space=vmem, size = 0x4000, scoped, tag = 'scratch operand']
  #allocation5 [shape = 'f32[8,4,16]{2,1,0:T(4,128)}', space=vmem, size = 0x4000, scoped, tag = 'scratch operand']
  %s0 = inlined_call_operand.vmem [shape: f32[8,4,16], index: 0, kind: input, shape index: {}]
  %s1 = inlined_call_operand.vmem [shape: f32[8,4,1], index: 1, kind: input, shape index: {}]
  %s2 = inlined_call_operand.hbm [shape: f32[16,48], index: 2, kind: input, shape index: {}]
  %s3 = inlined_call_operand.hbm [shape: f32[16,48], index: 3, kind: input, shape index: {}]
  %s4 = inlined_call_operand.hbm [shape: f32[1,48], index: 4, kind: input, shape index: {}]
  %s5 = inlined_call_operand.hbm [shape: f32[1,48], index: 5, kind: input, shape index: {}]
  %s6 = inlined_call_operand.hbm [shape: f32[16,48], index: 6, kind: input, shape index: {}]
  %s7 = inlined_call_operand.vmem [shape: f32[16,48], index: 7, kind: input, shape index: {}]
  %s8 = inlined_call_operand.vmem [shape: f32[1,48], index: 8, kind: input, shape index: {}]
  %s9 = inlined_call_operand.vmem [shape: f32[1,48], index: 9, kind: input, shape index: {}]
  %s10 = inlined_call_operand.hbm [shape: f32[8,4,32], index: 10, kind: output, shape index: {}]
  %s11 = sld [smem:[#allocation0]]
  $region70: #{tpu_custom_call.1} parent=0
    _
  %s13 = ssub.s32 1, %s11
  %s14 = scalar_select 0, %s13, %s11
  $region1: #{tpu_custom_call.1} parent=0
    #allocation6 [shape = 'u8[8192]{0}', space=vmem, size = 0x2000, scoped, tag = 'input window, operand 2, single buffered']
    #allocation7 [shape = 's32[1]{0}', space=sflag, size = 0x4, scoped, tag = 'scoped memory for tpu_custom_call.1']
    #allocation8 [shape = 's32[1]{0}', space=sflag, size = 0x4, scoped, tag = 'scoped memory for tpu_custom_call.1']
    #allocation9 [shape = 'u8[8192]{0}', space=vmem, size = 0x2000, scoped, tag = 'input window, operand 3, single buffered']
    #allocation10 [shape = 's32[1]{0}', space=sflag, size = 0x4, scoped, tag = 'scoped memory for tpu_custom_call.1']
    #allocation11 [shape = 'u8[512]{0}', space=vmem, size = 0x400, scoped, tag = 'input window, operand 4, single buffered']
    #allocation12 [shape = 'u8[512]{0}', space=vmem, size = 0x400, scoped, tag = 'input window, operand 5, single buffered']
    #allocation13 [shape = 's32[1]{0}', space=sflag, size = 0x4, scoped, tag = 'scoped memory for tpu_custom_call.1']
    #allocation14 [shape = 'u8[8192]{0}', space=vmem, size = 0x2000, scoped, tag = 'input window, operand 6, single buffered']
    #allocation15 [shape = 'u8[16384]{0}', space=vmem, size = 0x4000, scoped, tag = 'output window, operand 0, single buffered']
    %15 = vsyncpa [#allocation7], 0
    %16 = vsyncpa [#allocation10], 0
    %17 = vsyncpa [#allocation13], 0
    %18 = vsyncpa [#allocation8], 0
    // Predicated region
    $region2: #{tpu_custom_call.1} parent=1 // pred_check
      _
    $region3: #{tpu_custom_call.1} parent=1 // pred_check_branch
      %20 = sbr.rel (0) target = $region5
    $region4: #{tpu_custom_call.1} parent=1 // pred_region
      _
    $region5: #{tpu_custom_call.1} parent=1 // pred_fallthru
      _
    // Predicated region
    $region6: #{tpu_custom_call.1} parent=1 // pred_check
      _
    $region7: #{tpu_custom_call.1} parent=1 // pred_check_branch
      %22 = sbr.rel (0) target = $region9
    $region8: #{tpu_custom_call.1} parent=1 // pred_region
      _
    $region9: #{tpu_custom_call.1} parent=1 // pred_fallthru
      _
    // Predicated region
    $region10: #{tpu_custom_call.1} parent=1 // pred_check
      _
    $region11: #{tpu_custom_call.1} parent=1 // pred_check_branch
      %24 = sbr.rel (0) target = $region13
    $region12: #{tpu_custom_call.1} parent=1 // pred_region
      %s26 = ssub.s32 256, 256
      %27 = vsyncadd [#allocation7], %s26
      %s28 = sshll.u32 [#allocation6], 4
      %s29 = int_to_ptr.vmem [resolvable:$true] %s28
      %34 = dma.hbm_to_vmem [thread:$0]  %s2, 256, %s29, [#allocation7], 128, 128, 8
    $region13: #{tpu_custom_call.1} parent=1 // pred_fallthru
      _
    // Predicated region
    $region14: #{tpu_custom_call.1} parent=1 // pred_check
      _
    $region15: #{tpu_custom_call.1} parent=1 // pred_check_branch
      %36 = sbr.rel (0) target = $region17
    $region16: #{tpu_custom_call.1} parent=1 // pred_region
      %s38 = ssub.s32 256, 256
      %39 = vsyncadd [#allocation10], %s38
      %s40 = sshll.u32 [#allocation9], 4
      %s41 = int_to_ptr.vmem [resolvable:$true] %s40
      %46 = dma.hbm_to_vmem [thread:$0]  %s3, 256, %s41, [#allocation10], 128, 128, 8
    $region17: #{tpu_custom_call.1} parent=1 // pred_fallthru
      _
    // Predicated region
    $region18: #{tpu_custom_call.1} parent=1 // pred_check
      _
    $region19: #{tpu_custom_call.1} parent=1 // pred_check_branch
      %48 = sbr.rel (0) target = $region21
    $region20: #{tpu_custom_call.1} parent=1 // pred_region
      %s50 = ssub.s32 16, 16
      %51 = vsyncadd [#allocation10], %s50
      %s53 = sshll.u32 [#allocation11], 4
      %s54 = int_to_ptr.vmem [resolvable:$true] %s53
      %56 = dma.hbm_to_vmem [thread:$0]  %s4, 16, %s54, [#allocation10]
    $region21: #{tpu_custom_call.1} parent=1 // pred_fallthru
      _
    // Predicated region
    $region22: #{tpu_custom_call.1} parent=1 // pred_check
      _
    $region23: #{tpu_custom_call.1} parent=1 // pred_check_branch
      %58 = sbr.rel (0) target = $region25
    $region24: #{tpu_custom_call.1} parent=1 // pred_region
      %s60 = ssub.s32 16, 16
      %61 = vsyncadd [#allocation13], %s60
      %s63 = sshll.u32 [#allocation12], 4
      %s64 = int_to_ptr.vmem [resolvable:$true] %s63
      %66 = dma.hbm_to_vmem [thread:$0]  %s5, 16, %s64, [#allocation13]
    $region25: #{tpu_custom_call.1} parent=1 // pred_fallthru
      _
    // Predicated region
    $region26: #{tpu_custom_call.1} parent=1 // pred_check
      _
    $region27: #{tpu_custom_call.1} parent=1 // pred_check_branch
      %68 = sbr.rel (0) target = $region29
    $region28: #{tpu_custom_call.1} parent=1 // pred_region
      %s70 = ssub.s32 256, 256
      %71 = vsyncadd [#allocation13], %s70
      %s72 = sshll.u32 [#allocation14], 4
      %s73 = int_to_ptr.vmem [resolvable:$true] %s72
      %78 = dma.hbm_to_vmem [thread:$0]  %s6, 256, %s73, [#allocation13], 128, 128, 8
    $region29: #{tpu_custom_call.1} parent=1 // pred_fallthru
      _
    // Predicated region
    $region30: #{tpu_custom_call.1} parent=1 // pred_check
      _
    $region31: #{tpu_custom_call.1} parent=1 // pred_check_branch
      %80 = sbr.rel (0) target = $region33
    $region32: #{tpu_custom_call.1} parent=1 // pred_region
      _
    $region33: #{tpu_custom_call.1} parent=1 // pred_fallthru
      _
    // Predicated region
    $region34: #{tpu_custom_call.1} parent=1 // pred_check
      _
    $region35: #{tpu_custom_call.1} parent=1 // pred_check_branch
      %82 = sbr.rel (0) target = $region37
    $region36: #{tpu_custom_call.1} parent=1 // pred_region
      _
    $region37: #{tpu_custom_call.1} parent=1 // pred_fallthru
      _
    // Predicated region
    $region38: #{tpu_custom_call.1} parent=1 // pred_check
      _
    $region39: #{tpu_custom_call.1} parent=1 // pred_check_branch
      %84 = sbr.rel (0) target = $region41
    $region40: #{tpu_custom_call.1} parent=1 // pred_region
      _
    $region41: #{tpu_custom_call.1} parent=1 // pred_fallthru
      _
    // Predicated region
    $region42: #{tpu_custom_call.1} parent=1 // pred_check
      _
    $region43: #{tpu_custom_call.1} parent=1 // pred_check_branch
      %86 = sbr.rel (0) target = $region45
    $region44: #{tpu_custom_call.1} parent=1 // pred_region
      %87 = dma.done [#allocation7], 256
    $region45: #{tpu_custom_call.1} parent=1 // pred_fallthru
      _
    // Predicated region
    $region46: #{tpu_custom_call.1} parent=1 // pred_check
      _
    $region47: #{tpu_custom_call.1} parent=1 // pred_check_branch
      %89 = sbr.rel (0) target = $region49
    $region48: #{tpu_custom_call.1} parent=1 // pred_region
      %90 = dma.done [#allocation10], 256
    $region49: #{tpu_custom_call.1} parent=1 // pred_fallthru
      _
    // Predicated region
    $region50: #{tpu_custom_call.1} parent=1 // pred_check
      _
    $region51: #{tpu_custom_call.1} parent=1 // pred_check_branch
      %92 = sbr.rel (0) target = $region53
    $region52: #{tpu_custom_call.1} parent=1 // pred_region
      %93 = dma.done [#allocation10], 16
    $region53: #{tpu_custom_call.1} parent=1 // pred_fallthru
      _
    // Predicated region
    $region54: #{tpu_custom_call.1} parent=1 // pred_check
      _
    $region55: #{tpu_custom_call.1} parent=1 // pred_check_branch
      %95 = sbr.rel (0) target = $region57
    $region56: #{tpu_custom_call.1} parent=1 // pred_region
      %96 = dma.done [#allocation13], 16
    $region57: #{tpu_custom_call.1} parent=1 // pred_fallthru
      _
    // Predicated region
    $region58: #{tpu_custom_call.1} parent=1 // pred_check
      _
    $region59: #{tpu_custom_call.1} parent=1 // pred_check_branch
      %98 = sbr.rel (0) target = $region61
    $region60: #{tpu_custom_call.1} parent=1 // pred_region
      %99 = dma.done [#allocation13], 256
    $region61: #{tpu_custom_call.1} parent=1 // pred_fallthru
      _
    %v100 = vld [vmem:[%s0] sm:$0xf]
    %v101 = vld [vmem:[%s0 + $0x4] sm:$0xf]
    %v102 = vld [vmem:[%s0 + $0x8] sm:$0xf]
    %v103 = vld [vmem:[%s0 + $0xc] sm:$0xf]
    %v104 = vld [vmem:[%s0 + $0x10] sm:$0xf]
    %v105 = vld [vmem:[%s0 + $0x14] sm:$0xf]
    %v106 = vld [vmem:[%s0 + $0x18] sm:$0xf]
    %v107 = vld [vmem:[%s0 + $0x1c] sm:$0xf]
    %v108 = vld [vmem:[#allocation6] sm:$0xff]
    %v109 = vld [vmem:[#allocation6 + $0x8] sm:$0xff]
    %v110 = vld [vmem:[#allocation11] sm:$0x1]
    %v112 = vlaneseq
    %v113 = vshrl.u32 %v112, 7
    %v114 = vsub.s32 0, %v113
    %v115 = vrot.slane %v110, %v114
    %v125 = vcombine.low %v100, %v101
    %v126 = vcombine.low %v102, %v103
    %v127 = vcombine.low %v104, %v105
    %v128 = vcombine.low %v106, %v107
    %vm129 = vcmask 130048
    %v130 = vsel %vm129, %v125, 0
    %v132 = vsel %vm129, %v126, 0
    %v134 = vsel %vm129, %v127, 0
    %v136 = vsel %vm129, %v128, 0
    %138 = vmatprep.subr.mxu0 0.0
    %139 = vmatpush1.msra.mxu0 0.0
    %140 = vmatprep.subr.mxu0 0.0
    %141 = vmatpush1.msra.mxu0 0.0
    %142 = vmatprep.subr.mxu0 0.0
    %143 = vmatpush1.msra.mxu0 0.0
    %144 = vmatprep.subr.mxu0 0.0
    %145 = vmatpush1.msra.mxu0 0.0
    %146 = vmatprep.subr.mxu0 0.0
    %147 = vmatpush1.msra.mxu0 0.0
    %148 = vmatprep.subr.mxu0 0.0
    %149 = vmatpush1.msra.mxu0 0.0
    %150 = vmatprep.subr.mxu0 0.0
    %151 = vmatpush1.msra.mxu0 0.0
    %152 = vmatprep.subr.mxu0 0.0
    %153 = vmatpush1.msra.mxu0 0.0
    %154 = vmatprep.subr.mxu0 0.0
    %155 = vmatpush1.msra.mxu0 0.0
    %156 = vmatprep.subr.mxu0 0.0
    %157 = vmatpush1.msra.mxu0 0.0
    %158 = vmatprep.subr.mxu0 0.0
    %159 = vmatpush1.msra.mxu0 0.0
    %160 = vmatprep.subr.mxu0 0.0
    %161 = vmatpush1.msra.mxu0 0.0
    %162 = vmatprep.subr.mxu0 0.0
    %163 = vmatpush1.msra.mxu0 0.0
    %164 = vmatprep.subr.mxu0 0.0
    %165 = vmatpush1.msra.mxu0 0.0
    %166 = vmatprep.subr.mxu0 0.0
    %167 = vmatpush1.msra.mxu0 %v109
    %168 = vmatprep.subr.mxu0 0.0
    %169 = vmatpush1.msra.mxu0 %v108
    %170 = vmatprep.subr.mxu0 0.0
    %171 = vmatpush2.msra.mxu0 0.0
    %172 = vmatprep.subr.mxu0 0.0
    %173 = vmatpush2.msra.mxu0 0.0
    %174 = vmatprep.subr.mxu0 0.0
    %175 = vmatpush2.msra.mxu0 0.0
    %176 = vmatprep.subr.mxu0 0.0
    %177 = vmatpush2.msra.mxu0 0.0
    %178 = vmatprep.subr.mxu0 0.0
    %179 = vmatpush2.msra.mxu0 0.0
    %180 = vmatprep.subr.mxu0 0.0
    %181 = vmatpush2.msra.mxu0 0.0
    %182 = vmatprep.subr.mxu0 0.0
    %183 = vmatpush2.msra.mxu0 0.0
    %184 = vmatprep.subr.mxu0 0.0
    %185 = vmatpush2.msra.mxu0 0.0
    %186 = vmatprep.subr.mxu0 0.0
    %187 = vmatpush2.msra.mxu0 0.0
    %188 = vmatprep.subr.mxu0 0.0
    %189 = vmatpush2.msra.mxu0 0.0
    %190 = vmatprep.subr.mxu0 0.0
    %191 = vmatpush2.msra.mxu0 0.0
    %192 = vmatprep.subr.mxu0 0.0
    %193 = vmatpush2.msra.mxu0 0.0
    %194 = vmatprep.subr.mxu0 0.0
    %195 = vmatpush2.msra.mxu0 0.0
    %196 = vmatprep.subr.mxu0 0.0
    %197 = vmatpush2.msra.mxu0 0.0
    %198 = vmatprep.subr.mxu0 0.0
    %199 = vmatpush2.msra.mxu0 0.0
    %200 = vmatprep.subr.mxu0 0.0
    %201 = vmatpush2.msra.mxu0 0.0
    %202 = vmatprep.mubr.f32.mxu0 0.0
    %203 = vmatmul.mubr.f32.gmra.mxu0 %v130
    %v204 = vpop.f32.mrf.mxu0
    %v205 = vadd.f32 %v115, %v204
    %v206 = vpop.f32.mrf.mxu0
    %207 = vmatprep.mubr.f32.mxu0 0.0
    %208 = vmatmul.mubr.f32.gmra.mxu0 %v132
    %v209 = vpop.f32.mrf.mxu0
    %v210 = vadd.f32 %v115, %v209
    %v211 = vpop.f32.mrf.mxu0
    %212 = vmatprep.mubr.f32.mxu0 0.0
    %213 = vmatmul.mubr.f32.gmra.mxu0 %v134
    %v214 = vpop.f32.mrf.mxu0
    %v215 = vadd.f32 %v115, %v214
    %v216 = vpop.f32.mrf.mxu0
    %217 = vmatprep.mubr.f32.mxu0 0.0
    %218 = vmatmul.mubr.f32.gmra.mxu0 %v136
    %v219 = vpop.f32.mrf.mxu0
    %v220 = vadd.f32 %v115, %v219
    %v221 = vpop.f32.mrf.mxu0
    %222 = vdwg.mxu0
    %v227 = vcombine.high %v205, %v205
    %v228 = vcombine.high %v210, %v210
    %v229 = vcombine.high %v215, %v215
    %v230 = vcombine.high %v220, %v220
    %vm235 = vcmask 388096
    %236 = vst.msk [vmem:[#allocation2] sm:$0xf] %vm235, %v205
    %237 = vst.msk [vmem:[#allocation2 + $0x4] sm:$0xf] %vm235, %v227
    %238 = vst.msk [vmem:[#allocation2 + $0x8] sm:$0xf] %vm235, %v210
    %239 = vst.msk [vmem:[#allocation2 + $0xc] sm:$0xf] %vm235, %v228
    %240 = vst.msk [vmem:[#allocation2 + $0x10] sm:$0xf] %vm235, %v215
    %241 = vst.msk [vmem:[#allocation2 + $0x14] sm:$0xf] %vm235, %v229
    %242 = vst.msk [vmem:[#allocation2 + $0x18] sm:$0xf] %vm235, %v220
    %243 = vst.msk [vmem:[#allocation2 + $0x1c] sm:$0xf] %vm235, %v230
    %v244 = vld [vmem:[#allocation14] sm:$0xff]
    %v245 = vld [vmem:[#allocation14 + $0x8] sm:$0xff]
    %v246 = vld [vmem:[%s8] sm:$0x1]
    %v248 = vlaneseq
    %v249 = vshrl.u32 %v248, 7
    %v250 = vsub.s32 0, %v249
    %v251 = vrot.slane %v246, %v250
    %253 = vmatprep.subr.mxu0 0.0
    %254 = vmatpush1.msra.mxu0 0.0
    %255 = vmatprep.subr.mxu0 0.0
    %256 = vmatpush1.msra.mxu0 0.0
    %257 = vmatprep.subr.mxu0 0.0
    %258 = vmatpush1.msra.mxu0 0.0
    %259 = vmatprep.subr.mxu0 0.0
    %260 = vmatpush1.msra.mxu0 0.0
    %261 = vmatprep.subr.mxu0 0.0
    %262 = vmatpush1.msra.mxu0 0.0
    %263 = vmatprep.subr.mxu0 0.0
    %264 = vmatpush1.msra.mxu0 0.0
    %265 = vmatprep.subr.mxu0 0.0
    %266 = vmatpush1.msra.mxu0 0.0
    %267 = vmatprep.subr.mxu0 0.0
    %268 = vmatpush1.msra.mxu0 0.0
    %269 = vmatprep.subr.mxu0 0.0
    %270 = vmatpush1.msra.mxu0 0.0
    %271 = vmatprep.subr.mxu0 0.0
    %272 = vmatpush1.msra.mxu0 0.0
    %273 = vmatprep.subr.mxu0 0.0
    %274 = vmatpush1.msra.mxu0 0.0
    %275 = vmatprep.subr.mxu0 0.0
    %276 = vmatpush1.msra.mxu0 0.0
    %277 = vmatprep.subr.mxu0 0.0
    %278 = vmatpush1.msra.mxu0 0.0
    %279 = vmatprep.subr.mxu0 0.0
    %280 = vmatpush1.msra.mxu0 0.0
    %281 = vmatprep.subr.mxu0 0.0
    %282 = vmatpush1.msra.mxu0 %v245
    %283 = vmatprep.subr.mxu0 0.0
    %284 = vmatpush1.msra.mxu0 %v244
    %285 = vmatprep.subr.mxu0 0.0
    %286 = vmatpush2.msra.mxu0 0.0
    %287 = vmatprep.subr.mxu0 0.0
    %288 = vmatpush2.msra.mxu0 0.0
    %289 = vmatprep.subr.mxu0 0.0
    %290 = vmatpush2.msra.mxu0 0.0
    %291 = vmatprep.subr.mxu0 0.0
    %292 = vmatpush2.msra.mxu0 0.0
    %293 = vmatprep.subr.mxu0 0.0
    %294 = vmatpush2.msra.mxu0 0.0
    %295 = vmatprep.subr.mxu0 0.0
    %296 = vmatpush2.msra.mxu0 0.0
    %297 = vmatprep.subr.mxu0 0.0
    %298 = vmatpush2.msra.mxu0 0.0
    %299 = vmatprep.subr.mxu0 0.0
    %300 = vmatpush2.msra.mxu0 0.0
    %301 = vmatprep.subr.mxu0 0.0
    %302 = vmatpush2.msra.mxu0 0.0
    %303 = vmatprep.subr.mxu0 0.0
    %304 = vmatpush2.msra.mxu0 0.0
    %305 = vmatprep.subr.mxu0 0.0
    %306 = vmatpush2.msra.mxu0 0.0
    %307 = vmatprep.subr.mxu0 0.0
    %308 = vmatpush2.msra.mxu0 0.0
    %309 = vmatprep.subr.mxu0 0.0
    %310 = vmatpush2.msra.mxu0 0.0
    %311 = vmatprep.subr.mxu0 0.0
    %312 = vmatpush2.msra.mxu0 0.0
    %313 = vmatprep.subr.mxu0 0.0
    %314 = vmatpush2.msra.mxu0 0.0
    %315 = vmatprep.subr.mxu0 0.0
    %316 = vmatpush2.msra.mxu0 0.0
    %317 = vmatprep.mubr.f32.mxu0 0.0
    %318 = vmatmul.mubr.f32.gmra.mxu0 %v130
    %v319 = vpop.f32.mrf.mxu0
    %v320 = vadd.f32 %v251, %v319
    %v321 = vpop.f32.mrf.mxu0
    %322 = vmatprep.mubr.f32.mxu0 0.0
    %323 = vmatmul.mubr.f32.gmra.mxu0 %v132
    %v324 = vpop.f32.mrf.mxu0
    %v325 = vadd.f32 %v251, %v324
    %v326 = vpop.f32.mrf.mxu0
    %327 = vmatprep.mubr.f32.mxu0 0.0
    %328 = vmatmul.mubr.f32.gmra.mxu0 %v134
    %v329 = vpop.f32.mrf.mxu0
    %v330 = vadd.f32 %v251, %v329
    %v331 = vpop.f32.mrf.mxu0
    %332 = vmatprep.mubr.f32.mxu0 0.0
    %333 = vmatmul.mubr.f32.gmra.mxu0 %v136
    %v334 = vpop.f32.mrf.mxu0
    %v335 = vadd.f32 %v251, %v334
    %v336 = vpop.f32.mrf.mxu0
    %337 = vdwg.mxu0
    %v342 = vcombine.high %v320, %v320
    %v343 = vcombine.high %v325, %v325
    %v344 = vcombine.high %v330, %v330
    %v345 = vcombine.high %v335, %v335
    %350 = vst.msk [vmem:[#allocation3] sm:$0xf] %vm235, %v320
    %351 = vst.msk [vmem:[#allocation3 + $0x4] sm:$0xf] %vm235, %v342
    %352 = vst.msk [vmem:[#allocation3 + $0x8] sm:$0xf] %vm235, %v325
    %353 = vst.msk [vmem:[#allocation3 + $0xc] sm:$0xf] %vm235, %v343
    %354 = vst.msk [vmem:[#allocation3 + $0x10] sm:$0xf] %vm235, %v330
    %355 = vst.msk [vmem:[#allocation3 + $0x14] sm:$0xf] %vm235, %v344
    %356 = vst.msk [vmem:[#allocation3 + $0x18] sm:$0xf] %vm235, %v335
    %357 = vst.msk [vmem:[#allocation3 + $0x1c] sm:$0xf] %vm235, %v345
    %v358 = vld [vmem:[#allocation9] sm:$0xff]
    %v359 = vld [vmem:[#allocation9 + $0x8] sm:$0xff]
    %v360 = vld [vmem:[#allocation12] sm:$0x1]
    %v361 = vld [vmem:[%s7] sm:$0xff]
    %v362 = vld [vmem:[%s7 + $0x8] sm:$0xff]
    %v363 = vld [vmem:[%s9] sm:$0x1]
    %v365 = vlaneseq
    %v366 = vshrl.u32 %v365, 7
    %v367 = vsub.s32 0, %v366
    %v368 = vrot.slane %v360, %v367
    %v371 = vsel %vm129, 0.0, 0
    %373 = vmatprep.subr.mxu0 0.0
    %374 = vmatpush1.msra.mxu0 0.0
    %375 = vmatprep.subr.mxu0 0.0
    %376 = vmatpush1.msra.mxu0 0.0
    %377 = vmatprep.subr.mxu0 0.0
    %378 = vmatpush1.msra.mxu0 0.0
    %379 = vmatprep.subr.mxu0 0.0
    %380 = vmatpush1.msra.mxu0 0.0
    %381 = vmatprep.subr.mxu0 0.0
    %382 = vmatpush1.msra.mxu0 0.0
    %383 = vmatprep.subr.mxu0 0.0
    %384 = vmatpush1.msra.mxu0 0.0
    %385 = vmatprep.subr.mxu0 0.0
    %386 = vmatpush1.msra.mxu0 0.0
    %387 = vmatprep.subr.mxu0 0.0
    %388 = vmatpush1.msra.mxu0 0.0
    %389 = vmatprep.subr.mxu0 0.0
    %390 = vmatpush1.msra.mxu0 0.0
    %391 = vmatprep.subr.mxu0 0.0
    %392 = vmatpush1.msra.mxu0 0.0
    %393 = vmatprep.subr.mxu0 0.0
    %394 = vmatpush1.msra.mxu0 0.0
    %395 = vmatprep.subr.mxu0 0.0
    %396 = vmatpush1.msra.mxu0 0.0
    %397 = vmatprep.subr.mxu0 0.0
    %398 = vmatpush1.msra.mxu0 0.0
    %399 = vmatprep.subr.mxu0 0.0
    %400 = vmatpush1.msra.mxu0 0.0
    %401 = vmatprep.subr.mxu0 0.0
    %402 = vmatpush1.msra.mxu0 %v359
    %403 = vmatprep.subr.mxu0 0.0
    %404 = vmatpush1.msra.mxu0 %v358
    %405 = vmatprep.subr.mxu0 0.0
    %406 = vmatpush2.msra.mxu0 0.0
    %407 = vmatprep.subr.mxu0 0.0
    %408 = vmatpush2.msra.mxu0 0.0
    %409 = vmatprep.subr.mxu0 0.0
    %410 = vmatpush2.msra.mxu0 0.0
    %411 = vmatprep.subr.mxu0 0.0
    %412 = vmatpush2.msra.mxu0 0.0
    %413 = vmatprep.subr.mxu0 0.0
    %414 = vmatpush2.msra.mxu0 0.0
    %415 = vmatprep.subr.mxu0 0.0
    %416 = vmatpush2.msra.mxu0 0.0
    %417 = vmatprep.subr.mxu0 0.0
    %418 = vmatpush2.msra.mxu0 0.0
    %419 = vmatprep.subr.mxu0 0.0
    %420 = vmatpush2.msra.mxu0 0.0
    %421 = vmatprep.subr.mxu0 0.0
    %422 = vmatpush2.msra.mxu0 0.0
    %423 = vmatprep.subr.mxu0 0.0
    %424 = vmatpush2.msra.mxu0 0.0
    %425 = vmatprep.subr.mxu0 0.0
    %426 = vmatpush2.msra.mxu0 0.0
    %427 = vmatprep.subr.mxu0 0.0
    %428 = vmatpush2.msra.mxu0 0.0
    %429 = vmatprep.subr.mxu0 0.0
    %430 = vmatpush2.msra.mxu0 0.0
    %431 = vmatprep.subr.mxu0 0.0
    %432 = vmatpush2.msra.mxu0 0.0
    %433 = vmatprep.subr.mxu0 0.0
    %434 = vmatpush2.msra.mxu0 0.0
    %435 = vmatprep.subr.mxu0 0.0
    %436 = vmatpush2.msra.mxu0 0.0
    %437 = vmatprep.mubr.f32.mxu0 0.0
    %438 = vmatmul.mubr.f32.gmra.mxu0 %v371
    %v439 = vpop.f32.mrf.mxu0
    %v440 = vadd.f32 %v368, %v439
    %v441 = vpop.f32.mrf.mxu0
    %442 = vdwg.mxu0
    %v443 = vld [vmem:[#allocation2] sm:$0xf]
    %v444 = vadd.f32 %v443, %v440
    %v445 = vxor.u32 %v444, 2147483648
    %v446 = vmul.f32 %v445, 1.442695
    %v447 = vpow.pop %v446
    %v448 = vadd.f32 %v447, 1.0
    %v449 = vrcp.pop %v448
    %v450 = vmul.f32 1.0, %v449
    %452 = vrot.lane.b32.xlu0 %v440, 96
    %v453 = vpop.permute.xlu0 %452
    %v455 = vmul.f32 %v450, %v453
    %457 = vrot.lane.b32.xlu0 %v455, 32
    %v458 = vpop.permute.xlu0 %457
    %v460 = vadd.f32 %v443, %v458
    %v461 = vtanh.pop %v460
    %v462 = vsub.f32 1.0, %v450
    %464 = vrot.lane.b32.xlu0 %v461, 112
    %v465 = vpop.permute.xlu0 %464
    %v467 = vmul.f32 %v462, %v465
    %v468 = vmul.f32 %v450, 0.0
    %v469 = vadd.f32 %v467, %v468
    %v470 = vld [vmem:[%s1] sm:$0xf]
    %472 = vset.pattern.permute.xlu0 0
    %473 = vperm.xlu0 %472, %v470
    %v474 = vpop.permute.xlu0 %473
    %v476 = vmul.f32 %v474, %v469
    %v477 = vadd.f32 %v476, 0.0
    %v478 = vmul.f32 %v474, %v477
    %480 = vrot.lane.b32.xlu0 %v478, 112
    %v481 = vpop.permute.xlu0 %480
    %vm483 = vcmask 125952
    %484 = vst.msk [vmem:[#allocation4] sm:$0xf] %vm483, %v481
    %v486 = vlaneseq
    %v487 = vshrl.u32 %v486, 7
    %v488 = vsub.s32 0, %v487
    %v489 = vrot.slane %v363, %v488
    %491 = vmatprep.subr.mxu0 0.0
    %492 = vmatpush1.msra.mxu0 0.0
    %493 = vmatprep.subr.mxu0 0.0
    %494 = vmatpush1.msra.mxu0 0.0
    %495 = vmatprep.subr.mxu0 0.0
    %496 = vmatpush1.msra.mxu0 0.0
    %497 = vmatprep.subr.mxu0 0.0
    %498 = vmatpush1.msra.mxu0 0.0
    %499 = vmatprep.subr.mxu0 0.0
    %500 = vmatpush1.msra.mxu0 0.0
    %501 = vmatprep.subr.mxu0 0.0
    %502 = vmatpush1.msra.mxu0 0.0
    %503 = vmatprep.subr.mxu0 0.0
    %504 = vmatpush1.msra.mxu0 0.0
    %505 = vmatprep.subr.mxu0 0.0
    %506 = vmatpush1.msra.mxu0 0.0
    %507 = vmatprep.subr.mxu0 0.0
    %508 = vmatpush1.msra.mxu0 0.0
    %509 = vmatprep.subr.mxu0 0.0
    %510 = vmatpush1.msra.mxu0 0.0
    %511 = vmatprep.subr.mxu0 0.0
    %512 = vmatpush1.msra.mxu0 0.0
    %513 = vmatprep.subr.mxu0 0.0
    %514 = vmatpush1.msra.mxu0 0.0
    %515 = vmatprep.subr.mxu0 0.0
    %516 = vmatpush1.msra.mxu0 0.0
    %517 = vmatprep.subr.mxu0 0.0
    %518 = vmatpush1.msra.mxu0 0.0
    %519 = vmatprep.subr.mxu0 0.0
    %520 = vmatpush1.msra.mxu0 %v362
    %521 = vmatprep.subr.mxu0 0.0
    %522 = vmatpush1.msra.mxu0 %v361
    %523 = vmatprep.subr.mxu0 0.0
    %524 = vmatpush2.msra.mxu0 0.0
    %525 = vmatprep.subr.mxu0 0.0
    %526 = vmatpush2.msra.mxu0 0.0
    %527 = vmatprep.subr.mxu0 0.0
    %528 = vmatpush2.msra.mxu0 0.0
    %529 = vmatprep.subr.mxu0 0.0
    %530 = vmatpush2.msra.mxu0 0.0
    %531 = vmatprep.subr.mxu0 0.0
    %532 = vmatpush2.msra.mxu0 0.0
    %533 = vmatprep.subr.mxu0 0.0
    %534 = vmatpush2.msra.mxu0 0.0
    %535 = vmatprep.subr.mxu0 0.0
    %536 = vmatpush2.msra.mxu0 0.0
    %537 = vmatprep.subr.mxu0 0.0
    %538 = vmatpush2.msra.mxu0 0.0
    %539 = vmatprep.subr.mxu0 0.0
    %540 = vmatpush2.msra.mxu0 0.0
    %541 = vmatprep.subr.mxu0 0.0
    %542 = vmatpush2.msra.mxu0 0.0
    %543 = vmatprep.subr.mxu0 0.0
    %544 = vmatpush2.msra.mxu0 0.0
    %545 = vmatprep.subr.mxu0 0.0
    %546 = vmatpush2.msra.mxu0 0.0
    %547 = vmatprep.subr.mxu0 0.0
    %548 = vmatpush2.msra.mxu0 0.0
    %549 = vmatprep.subr.mxu0 0.0
    %550 = vmatpush2.msra.mxu0 0.0
    %551 = vmatprep.subr.mxu0 0.0
    %552 = vmatpush2.msra.mxu0 0.0
    %553 = vmatprep.subr.mxu0 0.0
    %554 = vmatpush2.msra.mxu0 0.0
    %555 = vmatprep.mubr.f32.mxu0 0.0
    %556 = vmatmul.mubr.f32.gmra.mxu0 %v371
    %v557 = vpop.f32.mrf.mxu0
    %v558 = vadd.f32 %v489, %v557
    %v559 = vpop.f32.mrf.mxu0
    %560 = vdwg.mxu0
    %s561 = scalar_lea.vmem [#allocation3], 28
    %v562 = vld [vmem:[%s561] sm:$0xf]
    %v563 = vadd.f32 %v562, %v558
    %v564 = vxor.u32 %v563, 2147483648
    %v565 = vmul.f32 %v564, 1.442695
    %v566 = vpow.pop %v565
    %v567 = vadd.f32 %v566, 1.0
    %v568 = vrcp.pop %v567
    %v569 = vmul.f32 1.0, %v568
    %571 = vrot.lane.b32.xlu0 %v558, 96
    %v572 = vpop.permute.xlu0 %571
    %v574 = vmul.f32 %v569, %v572
    %576 = vrot.lane.b32.xlu0 %v574, 32
    %v577 = vpop.permute.xlu0 %576
    %v579 = vadd.f32 %v562, %v577
    %v580 = vtanh.pop %v579
    %v581 = vsub.f32 1.0, %v569
    %583 = vrot.lane.b32.xlu0 %v580, 112
    %v584 = vpop.permute.xlu0 %583
    %v586 = vmul.f32 %v581, %v584
    %v587 = vmul.f32 %v569, 0.0
    %v588 = vadd.f32 %v586, %v587
    %s589 = scalar_lea.vmem %s1, 28
    %v590 = vld [vmem:[%s589] sm:$0xf]
    %592 = vset.pattern.permute.xlu0 0
    %593 = vperm.xlu0 %592, %v590
    %v594 = vpop.permute.xlu0 %593
    %v596 = vmul.f32 %v594, %v588
    %v597 = vadd.f32 %v596, 0.0
    %v598 = vmul.f32 %v594, %v597
    %600 = vrot.lane.b32.xlu0 %v598, 112
    %v601 = vpop.permute.xlu0 %600
    %s603 = scalar_lea.vmem [#allocation5], 28
    %604 = vst.msk [vmem:[%s603] sm:$0xf] %vm483, %v601
    %606 = vrot.lane.b32.xlu0 %v477, 112
    %v607 = vpop.permute.xlu0 %606
    %v608 = vsel %vm129, %v607, 0
    %610 = vmatprep.subr.mxu0 0.0
    %611 = vmatpush1.msra.mxu0 0.0
    %612 = vmatprep.subr.mxu0 0.0
    %613 = vmatpush1.msra.mxu0 0.0
    %614 = vmatprep.subr.mxu0 0.0
    %615 = vmatpush1.msra.mxu0 0.0
    %616 = vmatprep.subr.mxu0 0.0
    %617 = vmatpush1.msra.mxu0 0.0
    %618 = vmatprep.subr.mxu0 0.0
    %619 = vmatpush1.msra.mxu0 0.0
    %620 = vmatprep.subr.mxu0 0.0
    %621 = vmatpush1.msra.mxu0 0.0
    %622 = vmatprep.subr.mxu0 0.0
    %623 = vmatpush1.msra.mxu0 0.0
    %624 = vmatprep.subr.mxu0 0.0
    %625 = vmatpush1.msra.mxu0 0.0
    %626 = vmatprep.subr.mxu0 0.0
    %627 = vmatpush1.msra.mxu0 0.0
    %628 = vmatprep.subr.mxu0 0.0
    %629 = vmatpush1.msra.mxu0 0.0
    %630 = vmatprep.subr.mxu0 0.0
    %631 = vmatpush1.msra.mxu0 0.0
    %632 = vmatprep.subr.mxu0 0.0
    %633 = vmatpush1.msra.mxu0 0.0
    %634 = vmatprep.subr.mxu0 0.0
    %635 = vmatpush1.msra.mxu0 0.0
    %636 = vmatprep.subr.mxu0 0.0
    %637 = vmatpush1.msra.mxu0 0.0
    %638 = vmatprep.subr.mxu0 0.0
    %639 = vmatpush1.msra.mxu0 %v359
    %640 = vmatprep.subr.mxu0 0.0
    %641 = vmatpush1.msra.mxu0 %v358
    %642 = vmatprep.subr.mxu0 0.0
    %643 = vmatpush2.msra.mxu0 0.0
    %644 = vmatprep.subr.mxu0 0.0
    %645 = vmatpush2.msra.mxu0 0.0
    %646 = vmatprep.subr.mxu0 0.0
    %647 = vmatpush2.msra.mxu0 0.0
    %648 = vmatprep.subr.mxu0 0.0
    %649 = vmatpush2.msra.mxu0 0.0
    %650 = vmatprep.subr.mxu0 0.0
    %651 = vmatpush2.msra.mxu0 0.0
    %652 = vmatprep.subr.mxu0 0.0
    %653 = vmatpush2.msra.mxu0 0.0
    %654 = vmatprep.subr.mxu0 0.0
    %655 = vmatpush2.msra.mxu0 0.0
    %656 = vmatprep.subr.mxu0 0.0
    %657 = vmatpush2.msra.mxu0 0.0
    %658 = vmatprep.subr.mxu0 0.0
    %659 = vmatpush2.msra.mxu0 0.0
    %660 = vmatprep.subr.mxu0 0.0
    %661 = vmatpush2.msra.mxu0 0.0
    %662 = vmatprep.subr.mxu0 0.0
    %663 = vmatpush2.msra.mxu0 0.0
    %664 = vmatprep.subr.mxu0 0.0
    %665 = vmatpush2.msra.mxu0 0.0
    %666 = vmatprep.subr.mxu0 0.0
    %667 = vmatpush2.msra.mxu0 0.0
    %668 = vmatprep.subr.mxu0 0.0
    %669 = vmatpush2.msra.mxu0 0.0
    %670 = vmatprep.subr.mxu0 0.0
    %671 = vmatpush2.msra.mxu0 0.0
    %672 = vmatprep.subr.mxu0 0.0
    %673 = vmatpush2.msra.mxu0 0.0
    %674 = vmatprep.mubr.f32.mxu0 0.0
    %675 = vmatmul.mubr.f32.gmra.mxu0 %v608
    %v676 = vpop.f32.mrf.mxu0
    %v677 = vadd.f32 %v368, %v676
    %v678 = vpop.f32.mrf.mxu0
    %679 = vdwg.mxu0
    %s680 = scalar_lea.vmem [#allocation2], 4
    %v681 = vld [vmem:[%s680] sm:$0xf]
    %v682 = vadd.f32 %v681, %v677
    %v683 = vxor.u32 %v682, 2147483648
    %v684 = vmul.f32 %v683, 1.442695
    %v685 = vpow.pop %v684
    %v686 = vadd.f32 %v685, 1.0
    %v687 = vrcp.pop %v686
    %v688 = vmul.f32 1.0, %v687
    %690 = vrot.lane.b32.xlu0 %v677, 96
    %v691 = vpop.permute.xlu0 %690
    %v693 = vmul.f32 %v688, %v691
    %695 = vrot.lane.b32.xlu0 %v693, 32
    %v696 = vpop.permute.xlu0 %695
    %v698 = vadd.f32 %v681, %v696
    %v699 = vtanh.pop %v698
    %v700 = vsub.f32 1.0, %v688
    %702 = vrot.lane.b32.xlu0 %v699, 112
    %v703 = vpop.permute.xlu0 %702
    %v705 = vmul.f32 %v700, %v703
    %v706 = vmul.f32 %v688, %v477
    %v707 = vadd.f32 %v705, %v706
    %s708 = scalar_lea.vmem %s1, 4
    %v709 = vld [vmem:[%s708] sm:$0xf]
    %v710 = vsub.f32 %v707, %v477
    %712 = vset.pattern.permute.xlu0 0
    %713 = vperm.xlu0 %712, %v709
    %v714 = vpop.permute.xlu0 %713
    %v716 = vmul.f32 %v714, %v710
    %v717 = vadd.f32 %v477, %v716
    %v718 = vmul.f32 %v714, %v717
    %720 = vrot.lane.b32.xlu0 %v718, 112
    %v721 = vpop.permute.xlu0 %720
    %s723 = scalar_lea.vmem [#allocation4], 4
    %724 = vst.msk [vmem:[%s723] sm:$0xf] %vm483, %v721
    %726 = vrot.lane.b32.xlu0 %v597, 112
    %v727 = vpop.permute.xlu0 %726
    %v728 = vsel %vm129, %v727, 0
    %730 = vmatprep.subr.mxu0 0.0
    %731 = vmatpush1.msra.mxu0 0.0
    %732 = vmatprep.subr.mxu0 0.0
    %733 = vmatpush1.msra.mxu0 0.0
    %734 = vmatprep.subr.mxu0 0.0
    %735 = vmatpush1.msra.mxu0 0.0
    %736 = vmatprep.subr.mxu0 0.0
    %737 = vmatpush1.msra.mxu0 0.0
    %738 = vmatprep.subr.mxu0 0.0
    %739 = vmatpush1.msra.mxu0 0.0
    %740 = vmatprep.subr.mxu0 0.0
    %741 = vmatpush1.msra.mxu0 0.0
    %742 = vmatprep.subr.mxu0 0.0
    %743 = vmatpush1.msra.mxu0 0.0
    %744 = vmatprep.subr.mxu0 0.0
    %745 = vmatpush1.msra.mxu0 0.0
    %746 = vmatprep.subr.mxu0 0.0
    %747 = vmatpush1.msra.mxu0 0.0
    %748 = vmatprep.subr.mxu0 0.0
    %749 = vmatpush1.msra.mxu0 0.0
    %750 = vmatprep.subr.mxu0 0.0
    %751 = vmatpush1.msra.mxu0 0.0
    %752 = vmatprep.subr.mxu0 0.0
    %753 = vmatpush1.msra.mxu0 0.0
    %754 = vmatprep.subr.mxu0 0.0
    %755 = vmatpush1.msra.mxu0 0.0
    %756 = vmatprep.subr.mxu0 0.0
    %757 = vmatpush1.msra.mxu0 0.0
    %758 = vmatprep.subr.mxu0 0.0
    %759 = vmatpush1.msra.mxu0 %v362
    %760 = vmatprep.subr.mxu0 0.0
    %761 = vmatpush1.msra.mxu0 %v361
    %762 = vmatprep.subr.mxu0 0.0
    %763 = vmatpush2.msra.mxu0 0.0
    %764 = vmatprep.subr.mxu0 0.0
    %765 = vmatpush2.msra.mxu0 0.0
    %766 = vmatprep.subr.mxu0 0.0
    %767 = vmatpush2.msra.mxu0 0.0
    %768 = vmatprep.subr.mxu0 0.0
    %769 = vmatpush2.msra.mxu0 0.0
    %770 = vmatprep.subr.mxu0 0.0
    %771 = vmatpush2.msra.mxu0 0.0
    %772 = vmatprep.subr.mxu0 0.0
    %773 = vmatpush2.msra.mxu0 0.0
    %774 = vmatprep.subr.mxu0 0.0
    %775 = vmatpush2.msra.mxu0 0.0
    %776 = vmatprep.subr.mxu0 0.0
    %777 = vmatpush2.msra.mxu0 0.0
    %778 = vmatprep.subr.mxu0 0.0
    %779 = vmatpush2.msra.mxu0 0.0
    %780 = vmatprep.subr.mxu0 0.0
    %781 = vmatpush2.msra.mxu0 0.0
    %782 = vmatprep.subr.mxu0 0.0
    %783 = vmatpush2.msra.mxu0 0.0
    %784 = vmatprep.subr.mxu0 0.0
    %785 = vmatpush2.msra.mxu0 0.0
    %786 = vmatprep.subr.mxu0 0.0
    %787 = vmatpush2.msra.mxu0 0.0
    %788 = vmatprep.subr.mxu0 0.0
    %789 = vmatpush2.msra.mxu0 0.0
    %790 = vmatprep.subr.mxu0 0.0
    %791 = vmatpush2.msra.mxu0 0.0
    %792 = vmatprep.subr.mxu0 0.0
    %793 = vmatpush2.msra.mxu0 0.0
    %794 = vmatprep.mubr.f32.mxu0 0.0
    %795 = vmatmul.mubr.f32.gmra.mxu0 %v728
    %v796 = vpop.f32.mrf.mxu0
    %v797 = vadd.f32 %v489, %v796
    %v798 = vpop.f32.mrf.mxu0
    %799 = vdwg.mxu0
    %s800 = scalar_lea.vmem [#allocation3], 24
    %v801 = vld [vmem:[%s800] sm:$0xf]
    %v802 = vadd.f32 %v801, %v797
    %v803 = vxor.u32 %v802, 2147483648
    %v804 = vmul.f32 %v803, 1.442695
    %v805 = vpow.pop %v804
    %v806 = vadd.f32 %v805, 1.0
    %v807 = vrcp.pop %v806
    %v808 = vmul.f32 1.0, %v807
    %810 = vrot.lane.b32.xlu0 %v797, 96
    %v811 = vpop.permute.xlu0 %810
    %v813 = vmul.f32 %v808, %v811
    %815 = vrot.lane.b32.xlu0 %v813, 32
    %v816 = vpop.permute.xlu0 %815
    %v818 = vadd.f32 %v801, %v816
    %v819 = vtanh.pop %v818
    %v820 = vsub.f32 1.0, %v808
    %822 = vrot.lane.b32.xlu0 %v819, 112
    %v823 = vpop.permute.xlu0 %822
    %v825 = vmul.f32 %v820, %v823
    %v826 = vmul.f32 %v808, %v597
    %v827 = vadd.f32 %v825, %v826
    %s828 = scalar_lea.vmem %s1, 24
    %v829 = vld [vmem:[%s828] sm:$0xf]
    %v830 = vsub.f32 %v827, %v597
    %832 = vset.pattern.permute.xlu0 0
    %833 = vperm.xlu0 %832, %v829
    %v834 = vpop.permute.xlu0 %833
    %v836 = vmul.f32 %v834, %v830
    %v837 = vadd.f32 %v597, %v836
    %v838 = vmul.f32 %v834, %v837
    %840 = vrot.lane.b32.xlu0 %v838, 112
    %v841 = vpop.permute.xlu0 %840
    %s843 = scalar_lea.vmem [#allocation5], 24
    %844 = vst.msk [vmem:[%s843] sm:$0xf] %vm483, %v841
    %846 = vrot.lane.b32.xlu0 %v717, 112
    %v847 = vpop.permute.xlu0 %846
    %v848 = vsel %vm129, %v847, 0
    %850 = vmatprep.subr.mxu0 0.0
    %851 = vmatpush1.msra.mxu0 0.0
    %852 = vmatprep.subr.mxu0 0.0
    %853 = vmatpush1.msra.mxu0 0.0
    %854 = vmatprep.subr.mxu0 0.0
    %855 = vmatpush1.msra.mxu0 0.0
    %856 = vmatprep.subr.mxu0 0.0
    %857 = vmatpush1.msra.mxu0 0.0
    %858 = vmatprep.subr.mxu0 0.0
    %859 = vmatpush1.msra.mxu0 0.0
    %860 = vmatprep.subr.mxu0 0.0
    %861 = vmatpush1.msra.mxu0 0.0
    %862 = vmatprep.subr.mxu0 0.0
    %863 = vmatpush1.msra.mxu0 0.0
    %864 = vmatprep.subr.mxu0 0.0
    %865 = vmatpush1.msra.mxu0 0.0
    %866 = vmatprep.subr.mxu0 0.0
    %867 = vmatpush1.msra.mxu0 0.0
    %868 = vmatprep.subr.mxu0 0.0
    %869 = vmatpush1.msra.mxu0 0.0
    %870 = vmatprep.subr.mxu0 0.0
    %871 = vmatpush1.msra.mxu0 0.0
    %872 = vmatprep.subr.mxu0 0.0
    %873 = vmatpush1.msra.mxu0 0.0
    %874 = vmatprep.subr.mxu0 0.0
    %875 = vmatpush1.msra.mxu0 0.0
    %876 = vmatprep.subr.mxu0 0.0
    %877 = vmatpush1.msra.mxu0 0.0
    %878 = vmatprep.subr.mxu0 0.0
    %879 = vmatpush1.msra.mxu0 %v359
    %880 = vmatprep.subr.mxu0 0.0
    %881 = vmatpush1.msra.mxu0 %v358
    %882 = vmatprep.subr.mxu0 0.0
    %883 = vmatpush2.msra.mxu0 0.0
    %884 = vmatprep.subr.mxu0 0.0
    %885 = vmatpush2.msra.mxu0 0.0
    %886 = vmatprep.subr.mxu0 0.0
    %887 = vmatpush2.msra.mxu0 0.0
    %888 = vmatprep.subr.mxu0 0.0
    %889 = vmatpush2.msra.mxu0 0.0
    %890 = vmatprep.subr.mxu0 0.0
    %891 = vmatpush2.msra.mxu0 0.0
    %892 = vmatprep.subr.mxu0 0.0
    %893 = vmatpush2.msra.mxu0 0.0
    %894 = vmatprep.subr.mxu0 0.0
    %895 = vmatpush2.msra.mxu0 0.0
    %896 = vmatprep.subr.mxu0 0.0
    %897 = vmatpush2.msra.mxu0 0.0
    %898 = vmatprep.subr.mxu0 0.0
    %899 = vmatpush2.msra.mxu0 0.0
    %900 = vmatprep.subr.mxu0 0.0
    %901 = vmatpush2.msra.mxu0 0.0
    %902 = vmatprep.subr.mxu0 0.0
    %903 = vmatpush2.msra.mxu0 0.0
    %904 = vmatprep.subr.mxu0 0.0
    %905 = vmatpush2.msra.mxu0 0.0
    %906 = vmatprep.subr.mxu0 0.0
    %907 = vmatpush2.msra.mxu0 0.0
    %908 = vmatprep.subr.mxu0 0.0
    %909 = vmatpush2.msra.mxu0 0.0
    %910 = vmatprep.subr.mxu0 0.0
    %911 = vmatpush2.msra.mxu0 0.0
    %912 = vmatprep.subr.mxu0 0.0
    %913 = vmatpush2.msra.mxu0 0.0
    %914 = vmatprep.mubr.f32.mxu0 0.0
    %915 = vmatmul.mubr.f32.gmra.mxu0 %v848
    %v916 = vpop.f32.mrf.mxu0
    %v917 = vadd.f32 %v368, %v916
    %v918 = vpop.f32.mrf.mxu0
    %919 = vdwg.mxu0
    %s920 = scalar_lea.vmem [#allocation2], 8
    %v921 = vld [vmem:[%s920] sm:$0xf]
    %v922 = vadd.f32 %v921, %v917
    %v923 = vxor.u32 %v922, 2147483648
    %v924 = vmul.f32 %v923, 1.442695
    %v925 = vpow.pop %v924
    %v926 = vadd.f32 %v925, 1.0
    %v927 = vrcp.pop %v926
    %v928 = vmul.f32 1.0, %v927
    %930 = vrot.lane.b32.xlu0 %v917, 96
    %v931 = vpop.permute.xlu0 %930
    %v933 = vmul.f32 %v928, %v931
    %935 = vrot.lane.b32.xlu0 %v933, 32
    %v936 = vpop.permute.xlu0 %935
    %v938 = vadd.f32 %v921, %v936
    %v939 = vtanh.pop %v938
    %v940 = vsub.f32 1.0, %v928
    %942 = vrot.lane.b32.xlu0 %v939, 112
    %v943 = vpop.permute.xlu0 %942
    %v945 = vmul.f32 %v940, %v943
    %v946 = vmul.f32 %v928, %v717
    %v947 = vadd.f32 %v945, %v946
    %s948 = scalar_lea.vmem %s1, 8
    %v949 = vld [vmem:[%s948] sm:$0xf]
    %v950 = vsub.f32 %v947, %v717
    %952 = vset.pattern.permute.xlu0 0
    %953 = vperm.xlu0 %952, %v949
    %v954 = vpop.permute.xlu0 %953
    %v956 = vmul.f32 %v954, %v950
    %v957 = vadd.f32 %v717, %v956
    %v958 = vmul.f32 %v954, %v957
    %960 = vrot.lane.b32.xlu0 %v958, 112
    %v961 = vpop.permute.xlu0 %960
    %s963 = scalar_lea.vmem [#allocation4], 8
    %964 = vst.msk [vmem:[%s963] sm:$0xf] %vm483, %v961
    %966 = vrot.lane.b32.xlu0 %v837, 112
    %v967 = vpop.permute.xlu0 %966
    %v968 = vsel %vm129, %v967, 0
    %970 = vmatprep.subr.mxu0 0.0
    %971 = vmatpush1.msra.mxu0 0.0
    %972 = vmatprep.subr.mxu0 0.0
    %973 = vmatpush1.msra.mxu0 0.0
    %974 = vmatprep.subr.mxu0 0.0
    %975 = vmatpush1.msra.mxu0 0.0
    %976 = vmatprep.subr.mxu0 0.0
    %977 = vmatpush1.msra.mxu0 0.0
    %978 = vmatprep.subr.mxu0 0.0
    %979 = vmatpush1.msra.mxu0 0.0
    %980 = vmatprep.subr.mxu0 0.0
    %981 = vmatpush1.msra.mxu0 0.0
    %982 = vmatprep.subr.mxu0 0.0
    %983 = vmatpush1.msra.mxu0 0.0
    %984 = vmatprep.subr.mxu0 0.0
    %985 = vmatpush1.msra.mxu0 0.0
    %986 = vmatprep.subr.mxu0 0.0
    %987 = vmatpush1.msra.mxu0 0.0
    %988 = vmatprep.subr.mxu0 0.0
    %989 = vmatpush1.msra.mxu0 0.0
    %990 = vmatprep.subr.mxu0 0.0
    %991 = vmatpush1.msra.mxu0 0.0
    %992 = vmatprep.subr.mxu0 0.0
    %993 = vmatpush1.msra.mxu0 0.0
    %994 = vmatprep.subr.mxu0 0.0
    %995 = vmatpush1.msra.mxu0 0.0
    %996 = vmatprep.subr.mxu0 0.0
    %997 = vmatpush1.msra.mxu0 0.0
    %998 = vmatprep.subr.mxu0 0.0
    %999 = vmatpush1.msra.mxu0 %v362
    %1000 = vmatprep.subr.mxu0 0.0
    %1001 = vmatpush1.msra.mxu0 %v361
    %1002 = vmatprep.subr.mxu0 0.0
    %1003 = vmatpush2.msra.mxu0 0.0
    %1004 = vmatprep.subr.mxu0 0.0
    %1005 = vmatpush2.msra.mxu0 0.0
    %1006 = vmatprep.subr.mxu0 0.0
    %1007 = vmatpush2.msra.mxu0 0.0
    %1008 = vmatprep.subr.mxu0 0.0
    %1009 = vmatpush2.msra.mxu0 0.0
    %1010 = vmatprep.subr.mxu0 0.0
    %1011 = vmatpush2.msra.mxu0 0.0
    %1012 = vmatprep.subr.mxu0 0.0
    %1013 = vmatpush2.msra.mxu0 0.0
    %1014 = vmatprep.subr.mxu0 0.0
    %1015 = vmatpush2.msra.mxu0 0.0
    %1016 = vmatprep.subr.mxu0 0.0
    %1017 = vmatpush2.msra.mxu0 0.0
    %1018 = vmatprep.subr.mxu0 0.0
    %1019 = vmatpush2.msra.mxu0 0.0
    %1020 = vmatprep.subr.mxu0 0.0
    %1021 = vmatpush2.msra.mxu0 0.0
    %1022 = vmatprep.subr.mxu0 0.0
    %1023 = vmatpush2.msra.mxu0 0.0
    %1024 = vmatprep.subr.mxu0 0.0
    %1025 = vmatpush2.msra.mxu0 0.0
    %1026 = vmatprep.subr.mxu0 0.0
    %1027 = vmatpush2.msra.mxu0 0.0
    %1028 = vmatprep.subr.mxu0 0.0
    %1029 = vmatpush2.msra.mxu0 0.0
    %1030 = vmatprep.subr.mxu0 0.0
    %1031 = vmatpush2.msra.mxu0 0.0
    %1032 = vmatprep.subr.mxu0 0.0
    %1033 = vmatpush2.msra.mxu0 0.0
    %1034 = vmatprep.mubr.f32.mxu0 0.0
    %1035 = vmatmul.mubr.f32.gmra.mxu0 %v968
    %v1036 = vpop.f32.mrf.mxu0
    %v1037 = vadd.f32 %v489, %v1036
    %v1038 = vpop.f32.mrf.mxu0
    %1039 = vdwg.mxu0
    %s1040 = scalar_lea.vmem [#allocation3], 20
    %v1041 = vld [vmem:[%s1040] sm:$0xf]
    %v1042 = vadd.f32 %v1041, %v1037
    %v1043 = vxor.u32 %v1042, 2147483648
    %v1044 = vmul.f32 %v1043, 1.442695
    %v1045 = vpow.pop %v1044
    %v1046 = vadd.f32 %v1045, 1.0
    %v1047 = vrcp.pop %v1046
    %v1048 = vmul.f32 1.0, %v1047
    %1050 = vrot.lane.b32.xlu0 %v1037, 96
    %v1051 = vpop.permute.xlu0 %1050
    %v1053 = vmul.f32 %v1048, %v1051
    %1055 = vrot.lane.b32.xlu0 %v1053, 32
    %v1056 = vpop.permute.xlu0 %1055
    %v1058 = vadd.f32 %v1041, %v1056
    %v1059 = vtanh.pop %v1058
    %v1060 = vsub.f32 1.0, %v1048
    %1062 = vrot.lane.b32.xlu0 %v1059, 112
    %v1063 = vpop.permute.xlu0 %1062
    %v1065 = vmul.f32 %v1060, %v1063
    %v1066 = vmul.f32 %v1048, %v837
    %v1067 = vadd.f32 %v1065, %v1066
    %s1068 = scalar_lea.vmem %s1, 20
    %v1069 = vld [vmem:[%s1068] sm:$0xf]
    %v1070 = vsub.f32 %v1067, %v837
    %1072 = vset.pattern.permute.xlu0 0
    %1073 = vperm.xlu0 %1072, %v1069
    %v1074 = vpop.permute.xlu0 %1073
    %v1076 = vmul.f32 %v1074, %v1070
    %v1077 = vadd.f32 %v837, %v1076
    %v1078 = vmul.f32 %v1074, %v1077
    %1080 = vrot.lane.b32.xlu0 %v1078, 112
    %v1081 = vpop.permute.xlu0 %1080
    %s1083 = scalar_lea.vmem [#allocation5], 20
    %1084 = vst.msk [vmem:[%s1083] sm:$0xf] %vm483, %v1081
    %1086 = vrot.lane.b32.xlu0 %v957, 112
    %v1087 = vpop.permute.xlu0 %1086
    %v1088 = vsel %vm129, %v1087, 0
    %1090 = vmatprep.subr.mxu0 0.0
    %1091 = vmatpush1.msra.mxu0 0.0
    %1092 = vmatprep.subr.mxu0 0.0
    %1093 = vmatpush1.msra.mxu0 0.0
    %1094 = vmatprep.subr.mxu0 0.0
    %1095 = vmatpush1.msra.mxu0 0.0
    %1096 = vmatprep.subr.mxu0 0.0
    %1097 = vmatpush1.msra.mxu0 0.0
    %1098 = vmatprep.subr.mxu0 0.0
    %1099 = vmatpush1.msra.mxu0 0.0
    %1100 = vmatprep.subr.mxu0 0.0
    %1101 = vmatpush1.msra.mxu0 0.0
    %1102 = vmatprep.subr.mxu0 0.0
    %1103 = vmatpush1.msra.mxu0 0.0
    %1104 = vmatprep.subr.mxu0 0.0
    %1105 = vmatpush1.msra.mxu0 0.0
    %1106 = vmatprep.subr.mxu0 0.0
    %1107 = vmatpush1.msra.mxu0 0.0
    %1108 = vmatprep.subr.mxu0 0.0
    %1109 = vmatpush1.msra.mxu0 0.0
    %1110 = vmatprep.subr.mxu0 0.0
    %1111 = vmatpush1.msra.mxu0 0.0
    %1112 = vmatprep.subr.mxu0 0.0
    %1113 = vmatpush1.msra.mxu0 0.0
    %1114 = vmatprep.subr.mxu0 0.0
    %1115 = vmatpush1.msra.mxu0 0.0
    %1116 = vmatprep.subr.mxu0 0.0
    %1117 = vmatpush1.msra.mxu0 0.0
    %1118 = vmatprep.subr.mxu0 0.0
    %1119 = vmatpush1.msra.mxu0 %v359
    %1120 = vmatprep.subr.mxu0 0.0
    %1121 = vmatpush1.msra.mxu0 %v358
    %1122 = vmatprep.subr.mxu0 0.0
    %1123 = vmatpush2.msra.mxu0 0.0
    %1124 = vmatprep.subr.mxu0 0.0
    %1125 = vmatpush2.msra.mxu0 0.0
    %1126 = vmatprep.subr.mxu0 0.0
    %1127 = vmatpush2.msra.mxu0 0.0
    %1128 = vmatprep.subr.mxu0 0.0
    %1129 = vmatpush2.msra.mxu0 0.0
    %1130 = vmatprep.subr.mxu0 0.0
    %1131 = vmatpush2.msra.mxu0 0.0
    %1132 = vmatprep.subr.mxu0 0.0
    %1133 = vmatpush2.msra.mxu0 0.0
    %1134 = vmatprep.subr.mxu0 0.0
    %1135 = vmatpush2.msra.mxu0 0.0
    %1136 = vmatprep.subr.mxu0 0.0
    %1137 = vmatpush2.msra.mxu0 0.0
    %1138 = vmatprep.subr.mxu0 0.0
    %1139 = vmatpush2.msra.mxu0 0.0
    %1140 = vmatprep.subr.mxu0 0.0
    %1141 = vmatpush2.msra.mxu0 0.0
    %1142 = vmatprep.subr.mxu0 0.0
    %1143 = vmatpush2.msra.mxu0 0.0
    %1144 = vmatprep.subr.mxu0 0.0
    %1145 = vmatpush2.msra.mxu0 0.0
    %1146 = vmatprep.subr.mxu0 0.0
    %1147 = vmatpush2.msra.mxu0 0.0
    %1148 = vmatprep.subr.mxu0 0.0
    %1149 = vmatpush2.msra.mxu0 0.0
    %1150 = vmatprep.subr.mxu0 0.0
    %1151 = vmatpush2.msra.mxu0 0.0
    %1152 = vmatprep.subr.mxu0 0.0
    %1153 = vmatpush2.msra.mxu0 0.0
    %1154 = vmatprep.mubr.f32.mxu0 0.0
    %1155 = vmatmul.mubr.f32.gmra.mxu0 %v1088
    %v1156 = vpop.f32.mrf.mxu0
    %v1157 = vadd.f32 %v368, %v1156
    %v1158 = vpop.f32.mrf.mxu0
    %1159 = vdwg.mxu0
    %s1160 = scalar_lea.vmem [#allocation2], 12
    %v1161 = vld [vmem:[%s1160] sm:$0xf]
    %v1162 = vadd.f32 %v1161, %v1157
    %v1163 = vxor.u32 %v1162, 2147483648
    %v1164 = vmul.f32 %v1163, 1.442695
    %v1165 = vpow.pop %v1164
    %v1166 = vadd.f32 %v1165, 1.0
    %v1167 = vrcp.pop %v1166
    %v1168 = vmul.f32 1.0, %v1167
    %1170 = vrot.lane.b32.xlu0 %v1157, 96
    %v1171 = vpop.permute.xlu0 %1170
    %v1173 = vmul.f32 %v1168, %v1171
    %1175 = vrot.lane.b32.xlu0 %v1173, 32
    %v1176 = vpop.permute.xlu0 %1175
    %v1178 = vadd.f32 %v1161, %v1176
    %v1179 = vtanh.pop %v1178
    %v1180 = vsub.f32 1.0, %v1168
    %1182 = vrot.lane.b32.xlu0 %v1179, 112
    %v1183 = vpop.permute.xlu0 %1182
    %v1185 = vmul.f32 %v1180, %v1183
    %v1186 = vmul.f32 %v1168, %v957
    %v1187 = vadd.f32 %v1185, %v1186
    %s1188 = scalar_lea.vmem %s1, 12
    %v1189 = vld [vmem:[%s1188] sm:$0xf]
    %v1190 = vsub.f32 %v1187, %v957
    %1192 = vset.pattern.permute.xlu0 0
    %1193 = vperm.xlu0 %1192, %v1189
    %v1194 = vpop.permute.xlu0 %1193
    %v1196 = vmul.f32 %v1194, %v1190
    %v1197 = vadd.f32 %v957, %v1196
    %v1198 = vmul.f32 %v1194, %v1197
    %1200 = vrot.lane.b32.xlu0 %v1198, 112
    %v1201 = vpop.permute.xlu0 %1200
    %s1203 = scalar_lea.vmem [#allocation4], 12
    %1204 = vst.msk [vmem:[%s1203] sm:$0xf] %vm483, %v1201
    %1206 = vrot.lane.b32.xlu0 %v1077, 112
    %v1207 = vpop.permute.xlu0 %1206
    %v1208 = vsel %vm129, %v1207, 0
    %1210 = vmatprep.subr.mxu0 0.0
    %1211 = vmatpush1.msra.mxu0 0.0
    %1212 = vmatprep.subr.mxu0 0.0
    %1213 = vmatpush1.msra.mxu0 0.0
    %1214 = vmatprep.subr.mxu0 0.0
    %1215 = vmatpush1.msra.mxu0 0.0
    %1216 = vmatprep.subr.mxu0 0.0
    %1217 = vmatpush1.msra.mxu0 0.0
    %1218 = vmatprep.subr.mxu0 0.0
    %1219 = vmatpush1.msra.mxu0 0.0
    %1220 = vmatprep.subr.mxu0 0.0
    %1221 = vmatpush1.msra.mxu0 0.0
    %1222 = vmatprep.subr.mxu0 0.0
    %1223 = vmatpush1.msra.mxu0 0.0
    %1224 = vmatprep.subr.mxu0 0.0
    %1225 = vmatpush1.msra.mxu0 0.0
    %1226 = vmatprep.subr.mxu0 0.0
    %1227 = vmatpush1.msra.mxu0 0.0
    %1228 = vmatprep.subr.mxu0 0.0
    %1229 = vmatpush1.msra.mxu0 0.0
    %1230 = vmatprep.subr.mxu0 0.0
    %1231 = vmatpush1.msra.mxu0 0.0
    %1232 = vmatprep.subr.mxu0 0.0
    %1233 = vmatpush1.msra.mxu0 0.0
    %1234 = vmatprep.subr.mxu0 0.0
    %1235 = vmatpush1.msra.mxu0 0.0
    %1236 = vmatprep.subr.mxu0 0.0
    %1237 = vmatpush1.msra.mxu0 0.0
    %1238 = vmatprep.subr.mxu0 0.0
    %1239 = vmatpush1.msra.mxu0 %v362
    %1240 = vmatprep.subr.mxu0 0.0
    %1241 = vmatpush1.msra.mxu0 %v361
    %1242 = vmatprep.subr.mxu0 0.0
    %1243 = vmatpush2.msra.mxu0 0.0
    %1244 = vmatprep.subr.mxu0 0.0
    %1245 = vmatpush2.msra.mxu0 0.0
    %1246 = vmatprep.subr.mxu0 0.0
    %1247 = vmatpush2.msra.mxu0 0.0
    %1248 = vmatprep.subr.mxu0 0.0
    %1249 = vmatpush2.msra.mxu0 0.0
    %1250 = vmatprep.subr.mxu0 0.0
    %1251 = vmatpush2.msra.mxu0 0.0
    %1252 = vmatprep.subr.mxu0 0.0
    %1253 = vmatpush2.msra.mxu0 0.0
    %1254 = vmatprep.subr.mxu0 0.0
    %1255 = vmatpush2.msra.mxu0 0.0
    %1256 = vmatprep.subr.mxu0 0.0
    %1257 = vmatpush2.msra.mxu0 0.0
    %1258 = vmatprep.subr.mxu0 0.0
    %1259 = vmatpush2.msra.mxu0 0.0
    %1260 = vmatprep.subr.mxu0 0.0
    %1261 = vmatpush2.msra.mxu0 0.0
    %1262 = vmatprep.subr.mxu0 0.0
    %1263 = vmatpush2.msra.mxu0 0.0
    %1264 = vmatprep.subr.mxu0 0.0
    %1265 = vmatpush2.msra.mxu0 0.0
    %1266 = vmatprep.subr.mxu0 0.0
    %1267 = vmatpush2.msra.mxu0 0.0
    %1268 = vmatprep.subr.mxu0 0.0
    %1269 = vmatpush2.msra.mxu0 0.0
    %1270 = vmatprep.subr.mxu0 0.0
    %1271 = vmatpush2.msra.mxu0 0.0
    %1272 = vmatprep.subr.mxu0 0.0
    %1273 = vmatpush2.msra.mxu0 0.0
    %1274 = vmatprep.mubr.f32.mxu0 0.0
    %1275 = vmatmul.mubr.f32.gmra.mxu0 %v1208
    %v1276 = vpop.f32.mrf.mxu0
    %v1277 = vadd.f32 %v489, %v1276
    %v1278 = vpop.f32.mrf.mxu0
    %1279 = vdwg.mxu0
    %s1280 = scalar_lea.vmem [#allocation3], 16
    %v1281 = vld [vmem:[%s1280] sm:$0xf]
    %v1282 = vadd.f32 %v1281, %v1277
    %v1283 = vxor.u32 %v1282, 2147483648
    %v1284 = vmul.f32 %v1283, 1.442695
    %v1285 = vpow.pop %v1284
    %v1286 = vadd.f32 %v1285, 1.0
    %v1287 = vrcp.pop %v1286
    %v1288 = vmul.f32 1.0, %v1287
    %1290 = vrot.lane.b32.xlu0 %v1277, 96
    %v1291 = vpop.permute.xlu0 %1290
    %v1293 = vmul.f32 %v1288, %v1291
    %1295 = vrot.lane.b32.xlu0 %v1293, 32
    %v1296 = vpop.permute.xlu0 %1295
    %v1298 = vadd.f32 %v1281, %v1296
    %v1299 = vtanh.pop %v1298
    %v1300 = vsub.f32 1.0, %v1288
    %1302 = vrot.lane.b32.xlu0 %v1299, 112
    %v1303 = vpop.permute.xlu0 %1302
    %v1305 = vmul.f32 %v1300, %v1303
    %v1306 = vmul.f32 %v1288, %v1077
    %v1307 = vadd.f32 %v1305, %v1306
    %s1308 = scalar_lea.vmem %s1, 16
    %v1309 = vld [vmem:[%s1308] sm:$0xf]
    %v1310 = vsub.f32 %v1307, %v1077
    %1312 = vset.pattern.permute.xlu0 0
    %1313 = vperm.xlu0 %1312, %v1309
    %v1314 = vpop.permute.xlu0 %1313
    %v1316 = vmul.f32 %v1314, %v1310
    %v1317 = vadd.f32 %v1077, %v1316
    %v1318 = vmul.f32 %v1314, %v1317
    %1320 = vrot.lane.b32.xlu0 %v1318, 112
    %v1321 = vpop.permute.xlu0 %1320
    %s1323 = scalar_lea.vmem [#allocation5], 16
    %1324 = vst.msk [vmem:[%s1323] sm:$0xf] %vm483, %v1321
    %1326 = vrot.lane.b32.xlu0 %v1197, 112
    %v1327 = vpop.permute.xlu0 %1326
    %v1328 = vsel %vm129, %v1327, 0
    %1330 = vmatprep.subr.mxu0 0.0
    %1331 = vmatpush1.msra.mxu0 0.0
    %1332 = vmatprep.subr.mxu0 0.0
    %1333 = vmatpush1.msra.mxu0 0.0
    %1334 = vmatprep.subr.mxu0 0.0
    %1335 = vmatpush1.msra.mxu0 0.0
    %1336 = vmatprep.subr.mxu0 0.0
    %1337 = vmatpush1.msra.mxu0 0.0
    %1338 = vmatprep.subr.mxu0 0.0
    %1339 = vmatpush1.msra.mxu0 0.0
    %1340 = vmatprep.subr.mxu0 0.0
    %1341 = vmatpush1.msra.mxu0 0.0
    %1342 = vmatprep.subr.mxu0 0.0
    %1343 = vmatpush1.msra.mxu0 0.0
    %1344 = vmatprep.subr.mxu0 0.0
    %1345 = vmatpush1.msra.mxu0 0.0
    %1346 = vmatprep.subr.mxu0 0.0
    %1347 = vmatpush1.msra.mxu0 0.0
    %1348 = vmatprep.subr.mxu0 0.0
    %1349 = vmatpush1.msra.mxu0 0.0
    %1350 = vmatprep.subr.mxu0 0.0
    %1351 = vmatpush1.msra.mxu0 0.0
    %1352 = vmatprep.subr.mxu0 0.0
    %1353 = vmatpush1.msra.mxu0 0.0
    %1354 = vmatprep.subr.mxu0 0.0
    %1355 = vmatpush1.msra.mxu0 0.0
    %1356 = vmatprep.subr.mxu0 0.0
    %1357 = vmatpush1.msra.mxu0 0.0
    %1358 = vmatprep.subr.mxu0 0.0
    %1359 = vmatpush1.msra.mxu0 %v359
    %1360 = vmatprep.subr.mxu0 0.0
    %1361 = vmatpush1.msra.mxu0 %v358
    %1362 = vmatprep.subr.mxu0 0.0
    %1363 = vmatpush2.msra.mxu0 0.0
    %1364 = vmatprep.subr.mxu0 0.0
    %1365 = vmatpush2.msra.mxu0 0.0
    %1366 = vmatprep.subr.mxu0 0.0
    %1367 = vmatpush2.msra.mxu0 0.0
    %1368 = vmatprep.subr.mxu0 0.0
    %1369 = vmatpush2.msra.mxu0 0.0
    %1370 = vmatprep.subr.mxu0 0.0
    %1371 = vmatpush2.msra.mxu0 0.0
    %1372 = vmatprep.subr.mxu0 0.0
    %1373 = vmatpush2.msra.mxu0 0.0
    %1374 = vmatprep.subr.mxu0 0.0
    %1375 = vmatpush2.msra.mxu0 0.0
    %1376 = vmatprep.subr.mxu0 0.0
    %1377 = vmatpush2.msra.mxu0 0.0
    %1378 = vmatprep.subr.mxu0 0.0
    %1379 = vmatpush2.msra.mxu0 0.0
    %1380 = vmatprep.subr.mxu0 0.0
    %1381 = vmatpush2.msra.mxu0 0.0
    %1382 = vmatprep.subr.mxu0 0.0
    %1383 = vmatpush2.msra.mxu0 0.0
    %1384 = vmatprep.subr.mxu0 0.0
    %1385 = vmatpush2.msra.mxu0 0.0
    %1386 = vmatprep.subr.mxu0 0.0
    %1387 = vmatpush2.msra.mxu0 0.0
    %1388 = vmatprep.subr.mxu0 0.0
    %1389 = vmatpush2.msra.mxu0 0.0
    %1390 = vmatprep.subr.mxu0 0.0
    %1391 = vmatpush2.msra.mxu0 0.0
    %1392 = vmatprep.subr.mxu0 0.0
    %1393 = vmatpush2.msra.mxu0 0.0
    %1394 = vmatprep.mubr.f32.mxu0 0.0
    %1395 = vmatmul.mubr.f32.gmra.mxu0 %v1328
    %v1396 = vpop.f32.mrf.mxu0
    %v1397 = vadd.f32 %v368, %v1396
    %v1398 = vpop.f32.mrf.mxu0
    %1399 = vdwg.mxu0
    %s1400 = scalar_lea.vmem [#allocation2], 16
    %v1401 = vld [vmem:[%s1400] sm:$0xf]
    %v1402 = vadd.f32 %v1401, %v1397
    %v1403 = vxor.u32 %v1402, 2147483648
    %v1404 = vmul.f32 %v1403, 1.442695
    %v1405 = vpow.pop %v1404
    %v1406 = vadd.f32 %v1405, 1.0
    %v1407 = vrcp.pop %v1406
    %v1408 = vmul.f32 1.0, %v1407
    %1410 = vrot.lane.b32.xlu0 %v1397, 96
    %v1411 = vpop.permute.xlu0 %1410
    %v1413 = vmul.f32 %v1408, %v1411
    %1415 = vrot.lane.b32.xlu0 %v1413, 32
    %v1416 = vpop.permute.xlu0 %1415
    %v1418 = vadd.f32 %v1401, %v1416
    %v1419 = vtanh.pop %v1418
    %v1420 = vsub.f32 1.0, %v1408
    %1422 = vrot.lane.b32.xlu0 %v1419, 112
    %v1423 = vpop.permute.xlu0 %1422
    %v1425 = vmul.f32 %v1420, %v1423
    %v1426 = vmul.f32 %v1408, %v1197
    %v1427 = vadd.f32 %v1425, %v1426
    %v1428 = vld [vmem:[%s1308] sm:$0xf]
    %v1429 = vsub.f32 %v1427, %v1197
    %1431 = vset.pattern.permute.xlu0 0
    %1432 = vperm.xlu0 %1431, %v1428
    %v1433 = vpop.permute.xlu0 %1432
    %v1435 = vmul.f32 %v1433, %v1429
    %v1436 = vadd.f32 %v1197, %v1435
    %v1437 = vmul.f32 %v1433, %v1436
    %1439 = vrot.lane.b32.xlu0 %v1437, 112
    %v1440 = vpop.permute.xlu0 %1439
    %s1442 = scalar_lea.vmem [#allocation4], 16
    %1443 = vst.msk [vmem:[%s1442] sm:$0xf] %vm483, %v1440
    %1445 = vrot.lane.b32.xlu0 %v1317, 112
    %v1446 = vpop.permute.xlu0 %1445
    %v1447 = vsel %vm129, %v1446, 0
    %1449 = vmatprep.subr.mxu0 0.0
    %1450 = vmatpush1.msra.mxu0 0.0
    %1451 = vmatprep.subr.mxu0 0.0
    %1452 = vmatpush1.msra.mxu0 0.0
    %1453 = vmatprep.subr.mxu0 0.0
    %1454 = vmatpush1.msra.mxu0 0.0
    %1455 = vmatprep.subr.mxu0 0.0
    %1456 = vmatpush1.msra.mxu0 0.0
    %1457 = vmatprep.subr.mxu0 0.0
    %1458 = vmatpush1.msra.mxu0 0.0
    %1459 = vmatprep.subr.mxu0 0.0
    %1460 = vmatpush1.msra.mxu0 0.0
    %1461 = vmatprep.subr.mxu0 0.0
    %1462 = vmatpush1.msra.mxu0 0.0
    %1463 = vmatprep.subr.mxu0 0.0
    %1464 = vmatpush1.msra.mxu0 0.0
    %1465 = vmatprep.subr.mxu0 0.0
    %1466 = vmatpush1.msra.mxu0 0.0
    %1467 = vmatprep.subr.mxu0 0.0
    %1468 = vmatpush1.msra.mxu0 0.0
    %1469 = vmatprep.subr.mxu0 0.0
    %1470 = vmatpush1.msra.mxu0 0.0
    %1471 = vmatprep.subr.mxu0 0.0
    %1472 = vmatpush1.msra.mxu0 0.0
    %1473 = vmatprep.subr.mxu0 0.0
    %1474 = vmatpush1.msra.mxu0 0.0
    %1475 = vmatprep.subr.mxu0 0.0
    %1476 = vmatpush1.msra.mxu0 0.0
    %1477 = vmatprep.subr.mxu0 0.0
    %1478 = vmatpush1.msra.mxu0 %v362
    %1479 = vmatprep.subr.mxu0 0.0
    %1480 = vmatpush1.msra.mxu0 %v361
    %1481 = vmatprep.subr.mxu0 0.0
    %1482 = vmatpush2.msra.mxu0 0.0
    %1483 = vmatprep.subr.mxu0 0.0
    %1484 = vmatpush2.msra.mxu0 0.0
    %1485 = vmatprep.subr.mxu0 0.0
    %1486 = vmatpush2.msra.mxu0 0.0
    %1487 = vmatprep.subr.mxu0 0.0
    %1488 = vmatpush2.msra.mxu0 0.0
    %1489 = vmatprep.subr.mxu0 0.0
    %1490 = vmatpush2.msra.mxu0 0.0
    %1491 = vmatprep.subr.mxu0 0.0
    %1492 = vmatpush2.msra.mxu0 0.0
    %1493 = vmatprep.subr.mxu0 0.0
    %1494 = vmatpush2.msra.mxu0 0.0
    %1495 = vmatprep.subr.mxu0 0.0
    %1496 = vmatpush2.msra.mxu0 0.0
    %1497 = vmatprep.subr.mxu0 0.0
    %1498 = vmatpush2.msra.mxu0 0.0
    %1499 = vmatprep.subr.mxu0 0.0
    %1500 = vmatpush2.msra.mxu0 0.0
    %1501 = vmatprep.subr.mxu0 0.0
    %1502 = vmatpush2.msra.mxu0 0.0
    %1503 = vmatprep.subr.mxu0 0.0
    %1504 = vmatpush2.msra.mxu0 0.0
    %1505 = vmatprep.subr.mxu0 0.0
    %1506 = vmatpush2.msra.mxu0 0.0
    %1507 = vmatprep.subr.mxu0 0.0
    %1508 = vmatpush2.msra.mxu0 0.0
    %1509 = vmatprep.subr.mxu0 0.0
    %1510 = vmatpush2.msra.mxu0 0.0
    %1511 = vmatprep.subr.mxu0 0.0
    %1512 = vmatpush2.msra.mxu0 0.0
    %1513 = vmatprep.mubr.f32.mxu0 0.0
    %1514 = vmatmul.mubr.f32.gmra.mxu0 %v1447
    %v1515 = vpop.f32.mrf.mxu0
    %v1516 = vadd.f32 %v489, %v1515
    %v1517 = vpop.f32.mrf.mxu0
    %1518 = vdwg.mxu0
    %s1519 = scalar_lea.vmem [#allocation3], 12
    %v1520 = vld [vmem:[%s1519] sm:$0xf]
    %v1521 = vadd.f32 %v1520, %v1516
    %v1522 = vxor.u32 %v1521, 2147483648
    %v1523 = vmul.f32 %v1522, 1.442695
    %v1524 = vpow.pop %v1523
    %v1525 = vadd.f32 %v1524, 1.0
    %v1526 = vrcp.pop %v1525
    %v1527 = vmul.f32 1.0, %v1526
    %1529 = vrot.lane.b32.xlu0 %v1516, 96
    %v1530 = vpop.permute.xlu0 %1529
    %v1532 = vmul.f32 %v1527, %v1530
    %1534 = vrot.lane.b32.xlu0 %v1532, 32
    %v1535 = vpop.permute.xlu0 %1534
    %v1537 = vadd.f32 %v1520, %v1535
    %v1538 = vtanh.pop %v1537
    %v1539 = vsub.f32 1.0, %v1527
    %1541 = vrot.lane.b32.xlu0 %v1538, 112
    %v1542 = vpop.permute.xlu0 %1541
    %v1544 = vmul.f32 %v1539, %v1542
    %v1545 = vmul.f32 %v1527, %v1317
    %v1546 = vadd.f32 %v1544, %v1545
    %v1547 = vld [vmem:[%s1188] sm:$0xf]
    %v1548 = vsub.f32 %v1546, %v1317
    %1550 = vset.pattern.permute.xlu0 0
    %1551 = vperm.xlu0 %1550, %v1547
    %v1552 = vpop.permute.xlu0 %1551
    %v1554 = vmul.f32 %v1552, %v1548
    %v1555 = vadd.f32 %v1317, %v1554
    %v1556 = vmul.f32 %v1552, %v1555
    %1558 = vrot.lane.b32.xlu0 %v1556, 112
    %v1559 = vpop.permute.xlu0 %1558
    %s1561 = scalar_lea.vmem [#allocation5], 12
    %1562 = vst.msk [vmem:[%s1561] sm:$0xf] %vm483, %v1559
    %1564 = vrot.lane.b32.xlu0 %v1436, 112
    %v1565 = vpop.permute.xlu0 %1564
    %v1566 = vsel %vm129, %v1565, 0
    %1568 = vmatprep.subr.mxu0 0.0
    %1569 = vmatpush1.msra.mxu0 0.0
    %1570 = vmatprep.subr.mxu0 0.0
    %1571 = vmatpush1.msra.mxu0 0.0
    %1572 = vmatprep.subr.mxu0 0.0
    %1573 = vmatpush1.msra.mxu0 0.0
    %1574 = vmatprep.subr.mxu0 0.0
    %1575 = vmatpush1.msra.mxu0 0.0
    %1576 = vmatprep.subr.mxu0 0.0
    %1577 = vmatpush1.msra.mxu0 0.0
    %1578 = vmatprep.subr.mxu0 0.0
    %1579 = vmatpush1.msra.mxu0 0.0
    %1580 = vmatprep.subr.mxu0 0.0
    %1581 = vmatpush1.msra.mxu0 0.0
    %1582 = vmatprep.subr.mxu0 0.0
    %1583 = vmatpush1.msra.mxu0 0.0
    %1584 = vmatprep.subr.mxu0 0.0
    %1585 = vmatpush1.msra.mxu0 0.0
    %1586 = vmatprep.subr.mxu0 0.0
    %1587 = vmatpush1.msra.mxu0 0.0
    %1588 = vmatprep.subr.mxu0 0.0
    %1589 = vmatpush1.msra.mxu0 0.0
    %1590 = vmatprep.subr.mxu0 0.0
    %1591 = vmatpush1.msra.mxu0 0.0
    %1592 = vmatprep.subr.mxu0 0.0
    %1593 = vmatpush1.msra.mxu0 0.0
    %1594 = vmatprep.subr.mxu0 0.0
    %1595 = vmatpush1.msra.mxu0 0.0
    %1596 = vmatprep.subr.mxu0 0.0
    %1597 = vmatpush1.msra.mxu0 %v359
    %1598 = vmatprep.subr.mxu0 0.0
    %1599 = vmatpush1.msra.mxu0 %v358
    %1600 = vmatprep.subr.mxu0 0.0
    %1601 = vmatpush2.msra.mxu0 0.0
    %1602 = vmatprep.subr.mxu0 0.0
    %1603 = vmatpush2.msra.mxu0 0.0
    %1604 = vmatprep.subr.mxu0 0.0
    %1605 = vmatpush2.msra.mxu0 0.0
    %1606 = vmatprep.subr.mxu0 0.0
    %1607 = vmatpush2.msra.mxu0 0.0
    %1608 = vmatprep.subr.mxu0 0.0
    %1609 = vmatpush2.msra.mxu0 0.0
    %1610 = vmatprep.subr.mxu0 0.0
    %1611 = vmatpush2.msra.mxu0 0.0
    %1612 = vmatprep.subr.mxu0 0.0
    %1613 = vmatpush2.msra.mxu0 0.0
    %1614 = vmatprep.subr.mxu0 0.0
    %1615 = vmatpush2.msra.mxu0 0.0
    %1616 = vmatprep.subr.mxu0 0.0
    %1617 = vmatpush2.msra.mxu0 0.0
    %1618 = vmatprep.subr.mxu0 0.0
    %1619 = vmatpush2.msra.mxu0 0.0
    %1620 = vmatprep.subr.mxu0 0.0
    %1621 = vmatpush2.msra.mxu0 0.0
    %1622 = vmatprep.subr.mxu0 0.0
    %1623 = vmatpush2.msra.mxu0 0.0
    %1624 = vmatprep.subr.mxu0 0.0
    %1625 = vmatpush2.msra.mxu0 0.0
    %1626 = vmatprep.subr.mxu0 0.0
    %1627 = vmatpush2.msra.mxu0 0.0
    %1628 = vmatprep.subr.mxu0 0.0
    %1629 = vmatpush2.msra.mxu0 0.0
    %1630 = vmatprep.subr.mxu0 0.0
    %1631 = vmatpush2.msra.mxu0 0.0
    %1632 = vmatprep.mubr.f32.mxu0 0.0
    %1633 = vmatmul.mubr.f32.gmra.mxu0 %v1566
    %v1634 = vpop.f32.mrf.mxu0
    %v1635 = vadd.f32 %v368, %v1634
    %v1636 = vpop.f32.mrf.mxu0
    %1637 = vdwg.mxu0
    %s1638 = scalar_lea.vmem [#allocation2], 20
    %v1639 = vld [vmem:[%s1638] sm:$0xf]
    %v1640 = vadd.f32 %v1639, %v1635
    %v1641 = vxor.u32 %v1640, 2147483648
    %v1642 = vmul.f32 %v1641, 1.442695
    %v1643 = vpow.pop %v1642
    %v1644 = vadd.f32 %v1643, 1.0
    %v1645 = vrcp.pop %v1644
    %v1646 = vmul.f32 1.0, %v1645
    %1648 = vrot.lane.b32.xlu0 %v1635, 96
    %v1649 = vpop.permute.xlu0 %1648
    %v1651 = vmul.f32 %v1646, %v1649
    %1653 = vrot.lane.b32.xlu0 %v1651, 32
    %v1654 = vpop.permute.xlu0 %1653
    %v1656 = vadd.f32 %v1639, %v1654
    %v1657 = vtanh.pop %v1656
    %v1658 = vsub.f32 1.0, %v1646
    %1660 = vrot.lane.b32.xlu0 %v1657, 112
    %v1661 = vpop.permute.xlu0 %1660
    %v1663 = vmul.f32 %v1658, %v1661
    %v1664 = vmul.f32 %v1646, %v1436
    %v1665 = vadd.f32 %v1663, %v1664
    %v1666 = vld [vmem:[%s1068] sm:$0xf]
    %v1667 = vsub.f32 %v1665, %v1436
    %1669 = vset.pattern.permute.xlu0 0
    %1670 = vperm.xlu0 %1669, %v1666
    %v1671 = vpop.permute.xlu0 %1670
    %v1673 = vmul.f32 %v1671, %v1667
    %v1674 = vadd.f32 %v1436, %v1673
    %v1675 = vmul.f32 %v1671, %v1674
    %1677 = vrot.lane.b32.xlu0 %v1675, 112
    %v1678 = vpop.permute.xlu0 %1677
    %s1680 = scalar_lea.vmem [#allocation4], 20
    %1681 = vst.msk [vmem:[%s1680] sm:$0xf] %vm483, %v1678
    %1683 = vrot.lane.b32.xlu0 %v1555, 112
    %v1684 = vpop.permute.xlu0 %1683
    %v1685 = vsel %vm129, %v1684, 0
    %1687 = vmatprep.subr.mxu0 0.0
    %1688 = vmatpush1.msra.mxu0 0.0
    %1689 = vmatprep.subr.mxu0 0.0
    %1690 = vmatpush1.msra.mxu0 0.0
    %1691 = vmatprep.subr.mxu0 0.0
    %1692 = vmatpush1.msra.mxu0 0.0
    %1693 = vmatprep.subr.mxu0 0.0
    %1694 = vmatpush1.msra.mxu0 0.0
    %1695 = vmatprep.subr.mxu0 0.0
    %1696 = vmatpush1.msra.mxu0 0.0
    %1697 = vmatprep.subr.mxu0 0.0
    %1698 = vmatpush1.msra.mxu0 0.0
    %1699 = vmatprep.subr.mxu0 0.0
    %1700 = vmatpush1.msra.mxu0 0.0
    %1701 = vmatprep.subr.mxu0 0.0
    %1702 = vmatpush1.msra.mxu0 0.0
    %1703 = vmatprep.subr.mxu0 0.0
    %1704 = vmatpush1.msra.mxu0 0.0
    %1705 = vmatprep.subr.mxu0 0.0
    %1706 = vmatpush1.msra.mxu0 0.0
    %1707 = vmatprep.subr.mxu0 0.0
    %1708 = vmatpush1.msra.mxu0 0.0
    %1709 = vmatprep.subr.mxu0 0.0
    %1710 = vmatpush1.msra.mxu0 0.0
    %1711 = vmatprep.subr.mxu0 0.0
    %1712 = vmatpush1.msra.mxu0 0.0
    %1713 = vmatprep.subr.mxu0 0.0
    %1714 = vmatpush1.msra.mxu0 0.0
    %1715 = vmatprep.subr.mxu0 0.0
    %1716 = vmatpush1.msra.mxu0 %v362
    %1717 = vmatprep.subr.mxu0 0.0
    %1718 = vmatpush1.msra.mxu0 %v361
    %1719 = vmatprep.subr.mxu0 0.0
    %1720 = vmatpush2.msra.mxu0 0.0
    %1721 = vmatprep.subr.mxu0 0.0
    %1722 = vmatpush2.msra.mxu0 0.0
    %1723 = vmatprep.subr.mxu0 0.0
    %1724 = vmatpush2.msra.mxu0 0.0
    %1725 = vmatprep.subr.mxu0 0.0
    %1726 = vmatpush2.msra.mxu0 0.0
    %1727 = vmatprep.subr.mxu0 0.0
    %1728 = vmatpush2.msra.mxu0 0.0
    %1729 = vmatprep.subr.mxu0 0.0
    %1730 = vmatpush2.msra.mxu0 0.0
    %1731 = vmatprep.subr.mxu0 0.0
    %1732 = vmatpush2.msra.mxu0 0.0
    %1733 = vmatprep.subr.mxu0 0.0
    %1734 = vmatpush2.msra.mxu0 0.0
    %1735 = vmatprep.subr.mxu0 0.0
    %1736 = vmatpush2.msra.mxu0 0.0
    %1737 = vmatprep.subr.mxu0 0.0
    %1738 = vmatpush2.msra.mxu0 0.0
    %1739 = vmatprep.subr.mxu0 0.0
    %1740 = vmatpush2.msra.mxu0 0.0
    %1741 = vmatprep.subr.mxu0 0.0
    %1742 = vmatpush2.msra.mxu0 0.0
    %1743 = vmatprep.subr.mxu0 0.0
    %1744 = vmatpush2.msra.mxu0 0.0
    %1745 = vmatprep.subr.mxu0 0.0
    %1746 = vmatpush2.msra.mxu0 0.0
    %1747 = vmatprep.subr.mxu0 0.0
    %1748 = vmatpush2.msra.mxu0 0.0
    %1749 = vmatprep.subr.mxu0 0.0
    %1750 = vmatpush2.msra.mxu0 0.0
    %1751 = vmatprep.mubr.f32.mxu0 0.0
    %1752 = vmatmul.mubr.f32.gmra.mxu0 %v1685
    %v1753 = vpop.f32.mrf.mxu0
    %v1754 = vadd.f32 %v489, %v1753
    %v1755 = vpop.f32.mrf.mxu0
    %1756 = vdwg.mxu0
    %s1757 = scalar_lea.vmem [#allocation3], 8
    %v1758 = vld [vmem:[%s1757] sm:$0xf]
    %v1759 = vadd.f32 %v1758, %v1754
    %v1760 = vxor.u32 %v1759, 2147483648
    %v1761 = vmul.f32 %v1760, 1.442695
    %v1762 = vpow.pop %v1761
    %v1763 = vadd.f32 %v1762, 1.0
    %v1764 = vrcp.pop %v1763
    %v1765 = vmul.f32 1.0, %v1764
    %1767 = vrot.lane.b32.xlu0 %v1754, 96
    %v1768 = vpop.permute.xlu0 %1767
    %v1770 = vmul.f32 %v1765, %v1768
    %1772 = vrot.lane.b32.xlu0 %v1770, 32
    %v1773 = vpop.permute.xlu0 %1772
    %v1775 = vadd.f32 %v1758, %v1773
    %v1776 = vtanh.pop %v1775
    %v1777 = vsub.f32 1.0, %v1765
    %1779 = vrot.lane.b32.xlu0 %v1776, 112
    %v1780 = vpop.permute.xlu0 %1779
    %v1782 = vmul.f32 %v1777, %v1780
    %v1783 = vmul.f32 %v1765, %v1555
    %v1784 = vadd.f32 %v1782, %v1783
    %v1785 = vld [vmem:[%s948] sm:$0xf]
    %v1786 = vsub.f32 %v1784, %v1555
    %1788 = vset.pattern.permute.xlu0 0
    %1789 = vperm.xlu0 %1788, %v1785
    %v1790 = vpop.permute.xlu0 %1789
    %v1792 = vmul.f32 %v1790, %v1786
    %v1793 = vadd.f32 %v1555, %v1792
    %v1794 = vmul.f32 %v1790, %v1793
    %1796 = vrot.lane.b32.xlu0 %v1794, 112
    %v1797 = vpop.permute.xlu0 %1796
    %s1799 = scalar_lea.vmem [#allocation5], 8
    %1800 = vst.msk [vmem:[%s1799] sm:$0xf] %vm483, %v1797
    %1802 = vrot.lane.b32.xlu0 %v1674, 112
    %v1803 = vpop.permute.xlu0 %1802
    %v1804 = vsel %vm129, %v1803, 0
    %1806 = vmatprep.subr.mxu0 0.0
    %1807 = vmatpush1.msra.mxu0 0.0
    %1808 = vmatprep.subr.mxu0 0.0
    %1809 = vmatpush1.msra.mxu0 0.0
    %1810 = vmatprep.subr.mxu0 0.0
    %1811 = vmatpush1.msra.mxu0 0.0
    %1812 = vmatprep.subr.mxu0 0.0
    %1813 = vmatpush1.msra.mxu0 0.0
    %1814 = vmatprep.subr.mxu0 0.0
    %1815 = vmatpush1.msra.mxu0 0.0
    %1816 = vmatprep.subr.mxu0 0.0
    %1817 = vmatpush1.msra.mxu0 0.0
    %1818 = vmatprep.subr.mxu0 0.0
    %1819 = vmatpush1.msra.mxu0 0.0
    %1820 = vmatprep.subr.mxu0 0.0
    %1821 = vmatpush1.msra.mxu0 0.0
    %1822 = vmatprep.subr.mxu0 0.0
    %1823 = vmatpush1.msra.mxu0 0.0
    %1824 = vmatprep.subr.mxu0 0.0
    %1825 = vmatpush1.msra.mxu0 0.0
    %1826 = vmatprep.subr.mxu0 0.0
    %1827 = vmatpush1.msra.mxu0 0.0
    %1828 = vmatprep.subr.mxu0 0.0
    %1829 = vmatpush1.msra.mxu0 0.0
    %1830 = vmatprep.subr.mxu0 0.0
    %1831 = vmatpush1.msra.mxu0 0.0
    %1832 = vmatprep.subr.mxu0 0.0
    %1833 = vmatpush1.msra.mxu0 0.0
    %1834 = vmatprep.subr.mxu0 0.0
    %1835 = vmatpush1.msra.mxu0 %v359
    %1836 = vmatprep.subr.mxu0 0.0
    %1837 = vmatpush1.msra.mxu0 %v358
    %1838 = vmatprep.subr.mxu0 0.0
    %1839 = vmatpush2.msra.mxu0 0.0
    %1840 = vmatprep.subr.mxu0 0.0
    %1841 = vmatpush2.msra.mxu0 0.0
    %1842 = vmatprep.subr.mxu0 0.0
    %1843 = vmatpush2.msra.mxu0 0.0
    %1844 = vmatprep.subr.mxu0 0.0
    %1845 = vmatpush2.msra.mxu0 0.0
    %1846 = vmatprep.subr.mxu0 0.0
    %1847 = vmatpush2.msra.mxu0 0.0
    %1848 = vmatprep.subr.mxu0 0.0
    %1849 = vmatpush2.msra.mxu0 0.0
    %1850 = vmatprep.subr.mxu0 0.0
    %1851 = vmatpush2.msra.mxu0 0.0
    %1852 = vmatprep.subr.mxu0 0.0
    %1853 = vmatpush2.msra.mxu0 0.0
    %1854 = vmatprep.subr.mxu0 0.0
    %1855 = vmatpush2.msra.mxu0 0.0
    %1856 = vmatprep.subr.mxu0 0.0
    %1857 = vmatpush2.msra.mxu0 0.0
    %1858 = vmatprep.subr.mxu0 0.0
    %1859 = vmatpush2.msra.mxu0 0.0
    %1860 = vmatprep.subr.mxu0 0.0
    %1861 = vmatpush2.msra.mxu0 0.0
    %1862 = vmatprep.subr.mxu0 0.0
    %1863 = vmatpush2.msra.mxu0 0.0
    %1864 = vmatprep.subr.mxu0 0.0
    %1865 = vmatpush2.msra.mxu0 0.0
    %1866 = vmatprep.subr.mxu0 0.0
    %1867 = vmatpush2.msra.mxu0 0.0
    %1868 = vmatprep.subr.mxu0 0.0
    %1869 = vmatpush2.msra.mxu0 0.0
    %1870 = vmatprep.mubr.f32.mxu0 0.0
    %1871 = vmatmul.mubr.f32.gmra.mxu0 %v1804
    %v1872 = vpop.f32.mrf.mxu0
    %v1873 = vadd.f32 %v368, %v1872
    %v1874 = vpop.f32.mrf.mxu0
    %1875 = vdwg.mxu0
    %s1876 = scalar_lea.vmem [#allocation2], 24
    %v1877 = vld [vmem:[%s1876] sm:$0xf]
    %v1878 = vadd.f32 %v1877, %v1873
    %v1879 = vxor.u32 %v1878, 2147483648
    %v1880 = vmul.f32 %v1879, 1.442695
    %v1881 = vpow.pop %v1880
    %v1882 = vadd.f32 %v1881, 1.0
    %v1883 = vrcp.pop %v1882
    %v1884 = vmul.f32 1.0, %v1883
    %1886 = vrot.lane.b32.xlu0 %v1873, 96
    %v1887 = vpop.permute.xlu0 %1886
    %v1889 = vmul.f32 %v1884, %v1887
    %1891 = vrot.lane.b32.xlu0 %v1889, 32
    %v1892 = vpop.permute.xlu0 %1891
    %v1894 = vadd.f32 %v1877, %v1892
    %v1895 = vtanh.pop %v1894
    %v1896 = vsub.f32 1.0, %v1884
    %1898 = vrot.lane.b32.xlu0 %v1895, 112
    %v1899 = vpop.permute.xlu0 %1898
    %v1901 = vmul.f32 %v1896, %v1899
    %v1902 = vmul.f32 %v1884, %v1674
    %v1903 = vadd.f32 %v1901, %v1902
    %v1904 = vld [vmem:[%s828] sm:$0xf]
    %v1905 = vsub.f32 %v1903, %v1674
    %1907 = vset.pattern.permute.xlu0 0
    %1908 = vperm.xlu0 %1907, %v1904
    %v1909 = vpop.permute.xlu0 %1908
    %v1911 = vmul.f32 %v1909, %v1905
    %v1912 = vadd.f32 %v1674, %v1911
    %v1913 = vmul.f32 %v1909, %v1912
    %1915 = vrot.lane.b32.xlu0 %v1913, 112
    %v1916 = vpop.permute.xlu0 %1915
    %s1918 = scalar_lea.vmem [#allocation4], 24
    %1919 = vst.msk [vmem:[%s1918] sm:$0xf] %vm483, %v1916
    %1921 = vrot.lane.b32.xlu0 %v1793, 112
    %v1922 = vpop.permute.xlu0 %1921
    %v1923 = vsel %vm129, %v1922, 0
    %1925 = vmatprep.subr.mxu0 0.0
    %1926 = vmatpush1.msra.mxu0 0.0
    %1927 = vmatprep.subr.mxu0 0.0
    %1928 = vmatpush1.msra.mxu0 0.0
    %1929 = vmatprep.subr.mxu0 0.0
    %1930 = vmatpush1.msra.mxu0 0.0
    %1931 = vmatprep.subr.mxu0 0.0
    %1932 = vmatpush1.msra.mxu0 0.0
    %1933 = vmatprep.subr.mxu0 0.0
    %1934 = vmatpush1.msra.mxu0 0.0
    %1935 = vmatprep.subr.mxu0 0.0
    %1936 = vmatpush1.msra.mxu0 0.0
    %1937 = vmatprep.subr.mxu0 0.0
    %1938 = vmatpush1.msra.mxu0 0.0
    %1939 = vmatprep.subr.mxu0 0.0
    %1940 = vmatpush1.msra.mxu0 0.0
    %1941 = vmatprep.subr.mxu0 0.0
    %1942 = vmatpush1.msra.mxu0 0.0
    %1943 = vmatprep.subr.mxu0 0.0
    %1944 = vmatpush1.msra.mxu0 0.0
    %1945 = vmatprep.subr.mxu0 0.0
    %1946 = vmatpush1.msra.mxu0 0.0
    %1947 = vmatprep.subr.mxu0 0.0
    %1948 = vmatpush1.msra.mxu0 0.0
    %1949 = vmatprep.subr.mxu0 0.0
    %1950 = vmatpush1.msra.mxu0 0.0
    %1951 = vmatprep.subr.mxu0 0.0
    %1952 = vmatpush1.msra.mxu0 0.0
    %1953 = vmatprep.subr.mxu0 0.0
    %1954 = vmatpush1.msra.mxu0 %v362
    %1955 = vmatprep.subr.mxu0 0.0
    %1956 = vmatpush1.msra.mxu0 %v361
    %1957 = vmatprep.subr.mxu0 0.0
    %1958 = vmatpush2.msra.mxu0 0.0
    %1959 = vmatprep.subr.mxu0 0.0
    %1960 = vmatpush2.msra.mxu0 0.0
    %1961 = vmatprep.subr.mxu0 0.0
    %1962 = vmatpush2.msra.mxu0 0.0
    %1963 = vmatprep.subr.mxu0 0.0
    %1964 = vmatpush2.msra.mxu0 0.0
    %1965 = vmatprep.subr.mxu0 0.0
    %1966 = vmatpush2.msra.mxu0 0.0
    %1967 = vmatprep.subr.mxu0 0.0
    %1968 = vmatpush2.msra.mxu0 0.0
    %1969 = vmatprep.subr.mxu0 0.0
    %1970 = vmatpush2.msra.mxu0 0.0
    %1971 = vmatprep.subr.mxu0 0.0
    %1972 = vmatpush2.msra.mxu0 0.0
    %1973 = vmatprep.subr.mxu0 0.0
    %1974 = vmatpush2.msra.mxu0 0.0
    %1975 = vmatprep.subr.mxu0 0.0
    %1976 = vmatpush2.msra.mxu0 0.0
    %1977 = vmatprep.subr.mxu0 0.0
    %1978 = vmatpush2.msra.mxu0 0.0
    %1979 = vmatprep.subr.mxu0 0.0
    %1980 = vmatpush2.msra.mxu0 0.0
    %1981 = vmatprep.subr.mxu0 0.0
    %1982 = vmatpush2.msra.mxu0 0.0
    %1983 = vmatprep.subr.mxu0 0.0
    %1984 = vmatpush2.msra.mxu0 0.0
    %1985 = vmatprep.subr.mxu0 0.0
    %1986 = vmatpush2.msra.mxu0 0.0
    %1987 = vmatprep.subr.mxu0 0.0
    %1988 = vmatpush2.msra.mxu0 0.0
    %1989 = vmatprep.mubr.f32.mxu0 0.0
    %1990 = vmatmul.mubr.f32.gmra.mxu0 %v1923
    %v1991 = vpop.f32.mrf.mxu0
    %v1992 = vadd.f32 %v489, %v1991
    %v1993 = vpop.f32.mrf.mxu0
    %1994 = vdwg.mxu0
    %s1995 = scalar_lea.vmem [#allocation3], 4
    %v1996 = vld [vmem:[%s1995] sm:$0xf]
    %v1997 = vadd.f32 %v1996, %v1992
    %v1998 = vxor.u32 %v1997, 2147483648
    %v1999 = vmul.f32 %v1998, 1.442695
    %v2000 = vpow.pop %v1999
    %v2001 = vadd.f32 %v2000, 1.0
    %v2002 = vrcp.pop %v2001
    %v2003 = vmul.f32 1.0, %v2002
    %2005 = vrot.lane.b32.xlu0 %v1992, 96
    %v2006 = vpop.permute.xlu0 %2005
    %v2008 = vmul.f32 %v2003, %v2006
    %2010 = vrot.lane.b32.xlu0 %v2008, 32
    %v2011 = vpop.permute.xlu0 %2010
    %v2013 = vadd.f32 %v1996, %v2011
    %v2014 = vtanh.pop %v2013
    %v2015 = vsub.f32 1.0, %v2003
    %2017 = vrot.lane.b32.xlu0 %v2014, 112
    %v2018 = vpop.permute.xlu0 %2017
    %v2020 = vmul.f32 %v2015, %v2018
    %v2021 = vmul.f32 %v2003, %v1793
    %v2022 = vadd.f32 %v2020, %v2021
    %v2023 = vld [vmem:[%s708] sm:$0xf]
    %v2024 = vsub.f32 %v2022, %v1793
    %2026 = vset.pattern.permute.xlu0 0
    %2027 = vperm.xlu0 %2026, %v2023
    %v2028 = vpop.permute.xlu0 %2027
    %v2030 = vmul.f32 %v2028, %v2024
    %v2031 = vadd.f32 %v1793, %v2030
    %v2032 = vmul.f32 %v2028, %v2031
    %2034 = vrot.lane.b32.xlu0 %v2032, 112
    %v2035 = vpop.permute.xlu0 %2034
    %s2037 = scalar_lea.vmem [#allocation5], 4
    %2038 = vst.msk [vmem:[%s2037] sm:$0xf] %vm483, %v2035
    %2040 = vrot.lane.b32.xlu0 %v1912, 112
    %v2041 = vpop.permute.xlu0 %2040
    %v2042 = vsel %vm129, %v2041, 0
    %2044 = vmatprep.subr.mxu0 0.0
    %2045 = vmatpush1.msra.mxu0 0.0
    %2046 = vmatprep.subr.mxu0 0.0
    %2047 = vmatpush1.msra.mxu0 0.0
    %2048 = vmatprep.subr.mxu0 0.0
    %2049 = vmatpush1.msra.mxu0 0.0
    %2050 = vmatprep.subr.mxu0 0.0
    %2051 = vmatpush1.msra.mxu0 0.0
    %2052 = vmatprep.subr.mxu0 0.0
    %2053 = vmatpush1.msra.mxu0 0.0
    %2054 = vmatprep.subr.mxu0 0.0
    %2055 = vmatpush1.msra.mxu0 0.0
    %2056 = vmatprep.subr.mxu0 0.0
    %2057 = vmatpush1.msra.mxu0 0.0
    %2058 = vmatprep.subr.mxu0 0.0
    %2059 = vmatpush1.msra.mxu0 0.0
    %2060 = vmatprep.subr.mxu0 0.0
    %2061 = vmatpush1.msra.mxu0 0.0
    %2062 = vmatprep.subr.mxu0 0.0
    %2063 = vmatpush1.msra.mxu0 0.0
    %2064 = vmatprep.subr.mxu0 0.0
    %2065 = vmatpush1.msra.mxu0 0.0
    %2066 = vmatprep.subr.mxu0 0.0
    %2067 = vmatpush1.msra.mxu0 0.0
    %2068 = vmatprep.subr.mxu0 0.0
    %2069 = vmatpush1.msra.mxu0 0.0
    %2070 = vmatprep.subr.mxu0 0.0
    %2071 = vmatpush1.msra.mxu0 0.0
    %2072 = vmatprep.subr.mxu0 0.0
    %2073 = vmatpush1.msra.mxu0 %v359
    %2074 = vmatprep.subr.mxu0 0.0
    %2075 = vmatpush1.msra.mxu0 %v358
    %2076 = vmatprep.subr.mxu0 0.0
    %2077 = vmatpush2.msra.mxu0 0.0
    %2078 = vmatprep.subr.mxu0 0.0
    %2079 = vmatpush2.msra.mxu0 0.0
    %2080 = vmatprep.subr.mxu0 0.0
    %2081 = vmatpush2.msra.mxu0 0.0
    %2082 = vmatprep.subr.mxu0 0.0
    %2083 = vmatpush2.msra.mxu0 0.0
    %2084 = vmatprep.subr.mxu0 0.0
    %2085 = vmatpush2.msra.mxu0 0.0
    %2086 = vmatprep.subr.mxu0 0.0
    %2087 = vmatpush2.msra.mxu0 0.0
    %2088 = vmatprep.subr.mxu0 0.0
    %2089 = vmatpush2.msra.mxu0 0.0
    %2090 = vmatprep.subr.mxu0 0.0
    %2091 = vmatpush2.msra.mxu0 0.0
    %2092 = vmatprep.subr.mxu0 0.0
    %2093 = vmatpush2.msra.mxu0 0.0
    %2094 = vmatprep.subr.mxu0 0.0
    %2095 = vmatpush2.msra.mxu0 0.0
    %2096 = vmatprep.subr.mxu0 0.0
    %2097 = vmatpush2.msra.mxu0 0.0
    %2098 = vmatprep.subr.mxu0 0.0
    %2099 = vmatpush2.msra.mxu0 0.0
    %2100 = vmatprep.subr.mxu0 0.0
    %2101 = vmatpush2.msra.mxu0 0.0
    %2102 = vmatprep.subr.mxu0 0.0
    %2103 = vmatpush2.msra.mxu0 0.0
    %2104 = vmatprep.subr.mxu0 0.0
    %2105 = vmatpush2.msra.mxu0 0.0
    %2106 = vmatprep.subr.mxu0 0.0
    %2107 = vmatpush2.msra.mxu0 0.0
    %2108 = vmatprep.mubr.f32.mxu0 0.0
    %2109 = vmatmul.mubr.f32.gmra.mxu0 %v2042
    %v2110 = vpop.f32.mrf.mxu0
    %v2111 = vadd.f32 %v368, %v2110
    %v2112 = vpop.f32.mrf.mxu0
    %2113 = vdwg.mxu0
    %s2114 = scalar_lea.vmem [#allocation2], 28
    %v2115 = vld [vmem:[%s2114] sm:$0xf]
    %v2116 = vadd.f32 %v2115, %v2111
    %v2117 = vxor.u32 %v2116, 2147483648
    %v2118 = vmul.f32 %v2117, 1.442695
    %v2119 = vpow.pop %v2118
    %v2120 = vadd.f32 %v2119, 1.0
    %v2121 = vrcp.pop %v2120
    %v2122 = vmul.f32 1.0, %v2121
    %2124 = vrot.lane.b32.xlu0 %v2111, 96
    %v2125 = vpop.permute.xlu0 %2124
    %v2127 = vmul.f32 %v2122, %v2125
    %2129 = vrot.lane.b32.xlu0 %v2127, 32
    %v2130 = vpop.permute.xlu0 %2129
    %v2132 = vadd.f32 %v2115, %v2130
    %v2133 = vtanh.pop %v2132
    %v2134 = vsub.f32 1.0, %v2122
    %2136 = vrot.lane.b32.xlu0 %v2133, 112
    %v2137 = vpop.permute.xlu0 %2136
    %v2139 = vmul.f32 %v2134, %v2137
    %v2140 = vmul.f32 %v2122, %v1912
    %v2141 = vadd.f32 %v2139, %v2140
    %v2142 = vld [vmem:[%s589] sm:$0xf]
    %v2143 = vsub.f32 %v2141, %v1912
    %2145 = vset.pattern.permute.xlu0 0
    %2146 = vperm.xlu0 %2145, %v2142
    %v2147 = vpop.permute.xlu0 %2146
    %v2149 = vmul.f32 %v2147, %v2143
    %v2150 = vadd.f32 %v1912, %v2149
    %v2151 = vmul.f32 %v2147, %v2150
    %2153 = vrot.lane.b32.xlu0 %v2151, 112
    %v2154 = vpop.permute.xlu0 %2153
    %s2156 = scalar_lea.vmem [#allocation4], 28
    %2157 = vst.msk [vmem:[%s2156] sm:$0xf] %vm483, %v2154
    %2159 = vrot.lane.b32.xlu0 %v2031, 112
    %v2160 = vpop.permute.xlu0 %2159
    %v2161 = vsel %vm129, %v2160, 0
    %2163 = vmatprep.subr.mxu0 0.0
    %2164 = vmatpush1.msra.mxu0 0.0
    %2165 = vmatprep.subr.mxu0 0.0
    %2166 = vmatpush1.msra.mxu0 0.0
    %2167 = vmatprep.subr.mxu0 0.0
    %2168 = vmatpush1.msra.mxu0 0.0
    %2169 = vmatprep.subr.mxu0 0.0
    %2170 = vmatpush1.msra.mxu0 0.0
    %2171 = vmatprep.subr.mxu0 0.0
    %2172 = vmatpush1.msra.mxu0 0.0
    %2173 = vmatprep.subr.mxu0 0.0
    %2174 = vmatpush1.msra.mxu0 0.0
    %2175 = vmatprep.subr.mxu0 0.0
    %2176 = vmatpush1.msra.mxu0 0.0
    %2177 = vmatprep.subr.mxu0 0.0
    %2178 = vmatpush1.msra.mxu0 0.0
    %2179 = vmatprep.subr.mxu0 0.0
    %2180 = vmatpush1.msra.mxu0 0.0
    %2181 = vmatprep.subr.mxu0 0.0
    %2182 = vmatpush1.msra.mxu0 0.0
    %2183 = vmatprep.subr.mxu0 0.0
    %2184 = vmatpush1.msra.mxu0 0.0
    %2185 = vmatprep.subr.mxu0 0.0
    %2186 = vmatpush1.msra.mxu0 0.0
    %2187 = vmatprep.subr.mxu0 0.0
    %2188 = vmatpush1.msra.mxu0 0.0
    %2189 = vmatprep.subr.mxu0 0.0
    %2190 = vmatpush1.msra.mxu0 0.0
    %2191 = vmatprep.subr.mxu0 0.0
    %2192 = vmatpush1.msra.mxu0 %v362
    %2193 = vmatprep.subr.mxu0 0.0
    %2194 = vmatpush1.msra.mxu0 %v361
    %2195 = vmatprep.subr.mxu0 0.0
    %2196 = vmatpush2.msra.mxu0 0.0
    %2197 = vmatprep.subr.mxu0 0.0
    %2198 = vmatpush2.msra.mxu0 0.0
    %2199 = vmatprep.subr.mxu0 0.0
    %2200 = vmatpush2.msra.mxu0 0.0
    %2201 = vmatprep.subr.mxu0 0.0
    %2202 = vmatpush2.msra.mxu0 0.0
    %2203 = vmatprep.subr.mxu0 0.0
    %2204 = vmatpush2.msra.mxu0 0.0
    %2205 = vmatprep.subr.mxu0 0.0
    %2206 = vmatpush2.msra.mxu0 0.0
    %2207 = vmatprep.subr.mxu0 0.0
    %2208 = vmatpush2.msra.mxu0 0.0
    %2209 = vmatprep.subr.mxu0 0.0
    %2210 = vmatpush2.msra.mxu0 0.0
    %2211 = vmatprep.subr.mxu0 0.0
    %2212 = vmatpush2.msra.mxu0 0.0
    %2213 = vmatprep.subr.mxu0 0.0
    %2214 = vmatpush2.msra.mxu0 0.0
    %2215 = vmatprep.subr.mxu0 0.0
    %2216 = vmatpush2.msra.mxu0 0.0
    %2217 = vmatprep.subr.mxu0 0.0
    %2218 = vmatpush2.msra.mxu0 0.0
    %2219 = vmatprep.subr.mxu0 0.0
    %2220 = vmatpush2.msra.mxu0 0.0
    %2221 = vmatprep.subr.mxu0 0.0
    %2222 = vmatpush2.msra.mxu0 0.0
    %2223 = vmatprep.subr.mxu0 0.0
    %2224 = vmatpush2.msra.mxu0 0.0
    %2225 = vmatprep.subr.mxu0 0.0
    %2226 = vmatpush2.msra.mxu0 0.0
    %2227 = vmatprep.mubr.f32.mxu0 0.0
    %2228 = vmatmul.mubr.f32.gmra.mxu0 %v2161
    %v2229 = vpop.f32.mrf.mxu0
    %v2230 = vadd.f32 %v489, %v2229
    %v2231 = vpop.f32.mrf.mxu0
    %2232 = vdwg.mxu0
    %v2233 = vld [vmem:[#allocation3] sm:$0xf]
    %v2234 = vadd.f32 %v2233, %v2230
    %v2235 = vxor.u32 %v2234, 2147483648
    %v2236 = vmul.f32 %v2235, 1.442695
    %v2237 = vpow.pop %v2236
    %v2238 = vadd.f32 %v2237, 1.0
    %v2239 = vrcp.pop %v2238
    %v2240 = vmul.f32 1.0, %v2239
    %2242 = vrot.lane.b32.xlu0 %v2230, 96
    %v2243 = vpop.permute.xlu0 %2242
    %v2245 = vmul.f32 %v2240, %v2243
    %2247 = vrot.lane.b32.xlu0 %v2245, 32
    %v2248 = vpop.permute.xlu0 %2247
    %v2250 = vadd.f32 %v2233, %v2248
    %v2251 = vtanh.pop %v2250
    %v2252 = vsub.f32 1.0, %v2240
    %2254 = vrot.lane.b32.xlu0 %v2251, 112
    %v2255 = vpop.permute.xlu0 %2254
    %v2257 = vmul.f32 %v2252, %v2255
    %v2258 = vmul.f32 %v2240, %v2031
    %v2259 = vadd.f32 %v2257, %v2258
    %v2260 = vld [vmem:[%s1] sm:$0xf]
    %v2261 = vsub.f32 %v2259, %v2031
    %2263 = vset.pattern.permute.xlu0 0
    %2264 = vperm.xlu0 %2263, %v2260
    %v2265 = vpop.permute.xlu0 %2264
    %v2267 = vmul.f32 %v2265, %v2261
    %v2268 = vadd.f32 %v2031, %v2267
    %v2269 = vmul.f32 %v2265, %v2268
    %2271 = vrot.lane.b32.xlu0 %v2269, 112
    %v2272 = vpop.permute.xlu0 %2271
    %2274 = vst.msk [vmem:[#allocation5] sm:$0xf] %vm483, %v2272
    %v2275 = vld [vmem:[#allocation4] sm:$0xf]
    %v2276 = vld [vmem:[#allocation4 + $0x4] sm:$0xf]
    %v2277 = vld [vmem:[#allocation4 + $0x8] sm:$0xf]
    %v2278 = vld [vmem:[#allocation4 + $0xc] sm:$0xf]
    %v2279 = vld [vmem:[#allocation4 + $0x10] sm:$0xf]
    %v2280 = vld [vmem:[#allocation4 + $0x14] sm:$0xf]
    %v2281 = vld [vmem:[#allocation4 + $0x18] sm:$0xf]
    %v2282 = vld [vmem:[#allocation4 + $0x1c] sm:$0xf]
    %v2283 = vld [vmem:[#allocation5] sm:$0xf]
    %v2284 = vld [vmem:[#allocation5 + $0x4] sm:$0xf]
    %v2285 = vld [vmem:[#allocation5 + $0x8] sm:$0xf]
    %v2286 = vld [vmem:[#allocation5 + $0xc] sm:$0xf]
    %v2287 = vld [vmem:[#allocation5 + $0x10] sm:$0xf]
    %v2288 = vld [vmem:[#allocation5 + $0x14] sm:$0xf]
    %v2289 = vld [vmem:[#allocation5 + $0x18] sm:$0xf]
    %v2290 = vld [vmem:[#allocation5 + $0x1c] sm:$0xf]
    %2299 = vrot.lane.b32.xlu0 %v2283, 16
    %v2300 = vpop.permute.xlu0 %2299
    %2301 = vrot.lane.b32.xlu0 %v2284, 16
    %v2302 = vpop.permute.xlu0 %2301
    %2303 = vrot.lane.b32.xlu0 %v2285, 16
    %v2304 = vpop.permute.xlu0 %2303
    %2305 = vrot.lane.b32.xlu0 %v2286, 16
    %v2306 = vpop.permute.xlu0 %2305
    %2307 = vrot.lane.b32.xlu0 %v2287, 16
    %v2308 = vpop.permute.xlu0 %2307
    %2309 = vrot.lane.b32.xlu0 %v2288, 16
    %v2310 = vpop.permute.xlu0 %2309
    %2311 = vrot.lane.b32.xlu0 %v2289, 16
    %v2312 = vpop.permute.xlu0 %2311
    %2313 = vrot.lane.b32.xlu0 %v2290, 16
    %v2314 = vpop.permute.xlu0 %2313
    %v2323 = vsel %vm129, %v2275, %v2300
    %v2324 = vsel %vm129, %v2276, %v2302
    %v2325 = vsel %vm129, %v2277, %v2304
    %v2326 = vsel %vm129, %v2278, %v2306
    %v2327 = vsel %vm129, %v2279, %v2308
    %v2328 = vsel %vm129, %v2280, %v2310
    %v2329 = vsel %vm129, %v2281, %v2312
    %v2330 = vsel %vm129, %v2282, %v2314
    %vm2331 = vcmask 257024
    %2332 = vst.msk [vmem:[#allocation15] sm:$0xf] %vm2331, %v2323
    %2333 = vst.msk [vmem:[#allocation15 + $0x4] sm:$0xf] %vm2331, %v2324
    %2334 = vst.msk [vmem:[#allocation15 + $0x8] sm:$0xf] %vm2331, %v2325
    %2335 = vst.msk [vmem:[#allocation15 + $0xc] sm:$0xf] %vm2331, %v2326
    %2336 = vst.msk [vmem:[#allocation15 + $0x10] sm:$0xf] %vm2331, %v2327
    %2337 = vst.msk [vmem:[#allocation15 + $0x14] sm:$0xf] %vm2331, %v2328
    %2338 = vst.msk [vmem:[#allocation15 + $0x18] sm:$0xf] %vm2331, %v2329
    %2339 = vst.msk [vmem:[#allocation15 + $0x1c] sm:$0xf] %vm2331, %v2330
    // Predicated region
    $region62: #{tpu_custom_call.1} parent=1 // pred_check
      _
    $region63: #{tpu_custom_call.1} parent=1 // pred_check_branch
      %2341 = sbr.rel (0) target = $region65
    $region64: #{tpu_custom_call.1} parent=1 // pred_region
      %s2343 = ssub.s32 512, 512
      %2344 = vsyncadd [#allocation8], %s2343
      %s2345 = sshll.u32 [#allocation15], 4
      %s2346 = int_to_ptr.vmem [resolvable:$true] %s2345
      %2351 = dma.vmem_to_hbm [thread:$0]  %s2346, 512, %s10, [#allocation8], 64, 64, 4
    $region65: #{tpu_custom_call.1} parent=1 // pred_fallthru
      _
    // Predicated region
    $region66: #{tpu_custom_call.1} parent=1 // pred_check
      _
    $region67: #{tpu_custom_call.1} parent=1 // pred_check_branch
      %2353 = sbr.rel (0) target = $region69
    $region68: #{tpu_custom_call.1} parent=1 // pred_region
      %2354 = dma.done [#allocation8], 512
    $region69: #{tpu_custom_call.1} parent=1 // pred_fallthru
      _
    %2355 = vsyncpa [#allocation7], 1
    %2356 = vsyncpa [#allocation10], 1
    %2357 = vsyncpa [#allocation13], 1
    %2358 = vsyncpa [#allocation8], 1

</llo_original>
